<compile_context>
chip_gen: v7x
topology: tpu7x:2x2x1
jax: 0.10.0
libtpu: 0.0.40
codegen_flags: <defaults>
</compile_context>

<pallas_src>
import functools

import jax
import jax.numpy as jnp
from jax.experimental import pallas as pl
from jax.experimental.pallas import tpu as pltpu


# --------------------------- in-kernel helpers ---------------------------

def _elu(x):
    # exp() only on the non-positive branch (keeps unselected branch finite).
    return jnp.where(x > 0, x, jnp.exp(jnp.minimum(x, 0.0)) - 1.0)


def _erf_approx(x):
    # Abramowitz & Stegun 7.1.26; |error| < 1.5e-7 (float32-accurate erf).
    p = 0.3275911
    a1, a2, a3, a4, a5 = (0.254829592, -0.284496736, 1.421413741,
                          -1.453152027, 1.061405429)
    sgn = jnp.where(x >= 0, 1.0, -1.0)
    ax = jnp.abs(x)
    t = 1.0 / (1.0 + p * ax)
    poly = ((((a5 * t + a4) * t + a3) * t + a2) * t + a1) * t
    return sgn * (1.0 - poly * jnp.exp(-ax * ax))


def _gelu(x):
    return 0.5 * x * (1.0 + _erf_approx(x * 0.7071067811865476))


# ------------------------------ fused kernel ------------------------------

def _eegae_kernel(x_ref, m_ref, beta_ref, eenh_ref, eenhb_ref,
                  lng_ref, lnb_ref, wqkv_ref, bqkv_ref, wo_ref, bo_ref,
                  w1_ref, b1_ref, w2_ref, b2_ref,
                  denh_ref, denhb_ref, bnsc_ref, bnsh_ref, g_ref, gb_ref,
                  o_ref, z_scr, attn_scr, zdec_scr, *,
                  batch, seq_len, channels, num_heads, num_layers,
                  pool_k, pool_s):
    """Whole EEGAE forward in one kernel (everything resident in VMEM/vregs).

    x_ref     : (B, inC*H*W)        flattened NCHW input
    m_ref     : (inC*H*W, Wout*C)   temporal+spatial conv + BN folded Toeplitz
    beta_ref  : (1, Wout*C)         folded conv/BN bias (tiled over w)
    eenh_ref  : (C, C)   encoder 1x1 enhance conv (transposed); eenhb_ref (1, C)
    lng/lnb   : (L, 1, C)           LayerNorm params, stacked over layers
    wqkv/bqkv : (L, C, 3C) / (L, 1, 3C)
    wo/bo     : (L, C, C)  / (L, 1, C)
    w1/b1     : (L, C, E*C)/ (L, 1, E*C)
    w2/b2     : (L, E*C, C)/ (L, 1, C)
    denh/denhb: (C, C) / (1, C)     decoder 1x1 enhance conv
    bnsc/bnsh : (1, C)              decoder BatchNorm(eval) scale / shift
    g_ref     : (S*C, inC*Hd*Wf)    nearest-upsample + sconvT + tconvT folded
    gb_ref    : (1, inC*Hd*Wf)      folded transpose-conv biases (border-aware)
    o_ref     : (B, inC*Hd*Wf)
    scratch   : z_scr (B*S, C), attn_scr (B*S, C), zdec_scr (B, S*C)
    """
    C = channels
    S = seq_len
    Dh = C // num_heads
    scale = 1.0 / (Dh ** 0.5)

    # ---------------- encoder: Toeplitz matmul + ELU + AvgPool ----------------
    h = (jnp.dot(x_ref[...], m_ref[...], preferred_element_type=jnp.float32)
         + beta_ref[...])                               # (B, Wout*C), cols (w, c)
    h = _elu(h)
    pools = []
    for wp in range(S):                                 # AvgPool2d((1,k),(1,s))
        base = wp * pool_s
        acc = h[:, base * C:(base + 1) * C]
        for d in range(1, pool_k):
            acc = acc + h[:, (base + d) * C:(base + d + 1) * C]
        pools.append(acc * (1.0 / pool_k))
    pooled = jnp.concatenate(pools, axis=1)             # (B, S*C), cols (s, c)

    # layout change (B, S*C) -> (B*S, C) via static slice stores (rows (b, s))
    for b in range(batch):
        for s in range(S):
            z_scr[b * S + s:b * S + s + 1, :] = pooled[b:b + 1, s * C:(s + 1) * C]

    # encoder 1x1 enhance conv (per-token (C,C) matmul)
    z = (jnp.dot(z_scr[...], eenh_ref[...], preferred_element_type=jnp.float32)
         + eenhb_ref[...])                              # (B*S, C)

    # ---------------- transformer encoder blocks ----------------
    for l in range(num_layers):
        lng = lng_ref[l]                                # (1, C)
        lnb = lnb_ref[l]

        def layer_norm(xv):
            m = jnp.mean(xv, axis=-1, keepdims=True)
            v = jnp.mean(jnp.square(xv - m), axis=-1, keepdims=True)
            return (xv - m) * jax.lax.rsqrt(v + 1e-5) * lng + lnb

        # ---- attention branch ----
        xn = layer_norm(z)
        qkv = (jnp.dot(xn, wqkv_ref[l], preferred_element_type=jnp.float32)
               + bqkv_ref[l])                           # (B*S, 3C)
        for b in range(batch):
            qb = qkv[b * S:(b + 1) * S, 0:C]
            kb = qkv[b * S:(b + 1) * S, C:2 * C]
            vb = qkv[b * S:(b + 1) * S, 2 * C:3 * C]
            for hh in range(num_heads):
                qh = qb[:, hh * Dh:(hh + 1) * Dh] * scale
                kh = kb[:, hh * Dh:(hh + 1) * Dh]
                vh = vb[:, hh * Dh:(hh + 1) * Dh]
                sc = jax.lax.dot_general(qh, kh, (((1,), (1,)), ((), ())),
                                         preferred_element_type=jnp.float32)
                sc = sc - jnp.max(sc, axis=-1, keepdims=True)
                p = jnp.exp(sc)
                p = p * pl.reciprocal(jnp.sum(p, axis=-1, keepdims=True),
                                      approx=True)
                attn_scr[b * S:(b + 1) * S, hh * Dh:(hh + 1) * Dh] = jnp.dot(
                    p, vh, preferred_element_type=jnp.float32)
        attn = (jnp.dot(attn_scr[...], wo_ref[l],
                        preferred_element_type=jnp.float32) + bo_ref[l])
        x1 = z + attn                                   # residual 1

        # ---- feed-forward branch (shared LayerNorm params, as in PyTorch) ----
        xn2 = layer_norm(x1)
        hid = (jnp.dot(xn2, w1_ref[l], preferred_element_type=jnp.float32)
               + b1_ref[l])
        hid = _gelu(hid)
        ff = (jnp.dot(hid, w2_ref[l], preferred_element_type=jnp.float32)
              + b2_ref[l])
        z = x1 + ff                                     # residual 2

    # ---------------- decoder ----------------
    d = (jnp.dot(z, denh_ref[...], preferred_element_type=jnp.float32)
         + denhb_ref[...])                              # 1x1 enhance conv
    # ELU then BN (eval); both pointwise, so they commute with the nearest
    # upsample (pure value duplication), which is folded into g_ref.
    d = _elu(d) * bnsc_ref[...] + bnsh_ref[...]         # (B*S, C)

    # layout change (B*S, C) -> (B, S*C)
    for b in range(batch):
        for s in range(S):
            zdec_scr[b:b + 1, s * C:(s + 1) * C] = d[b * S + s:b * S + s + 1, :]

    o_ref[...] = (jnp.dot(zdec_scr[...], g_ref[...],
                          preferred_element_type=jnp.float32) + gb_ref[...])


# ----------------------------- parameter packing -----------------------------

def pack_params(params, cfg, x_shape):
    """Repack raw PyTorch-layout params into kernel-ready matrices (done once)."""
    B, inC, H, W = x_shape
    C = cfg['channel_size']
    T = cfg['temporal_conv_size']
    Sp = cfg['spatial_conv_size']
    k_pool, s_pool = cfg['avg_kernel'], cfg['avg_stride']
    assert Sp == H, "spatial conv consumes the full electrode height"
    Wout = W - T + 1
    S = (Wout - k_pool) // s_pool + 1                   # transformer sequence length
    f32 = jnp.float32

    # ------------- encoder: fold tconv + sconv + BN into one Toeplitz matmul -------
    enc = params['enc']
    sc = enc['bn_g'] / jnp.sqrt(enc['bn_v'] + 1e-5)
    sh = enc['bn_b'] - enc['bn_m'] * sc
    wt = enc['tconv_w'][:, :, 0, :]                     # (C, inC, T)   [c1, cin, t]
    ws = enc['sconv_w'][:, :, :, 0]                     # (C, C, Sp)    [c2, c1, s]
    A = jnp.einsum('oes,eit->oist', ws, wt)             # (C, inC, Sp, T) [c2,cin,s,t]
    A = A * sc[:, None, None, None]
    beta = sc * (jnp.einsum('oes,e->o', ws, enc['tconv_b']) + enc['sconv_b']) + sh
    jm = jnp.arange(W)[:, None] - jnp.arange(Wout)[None, :]     # t = j - w   (W, Wout)
    valid = (jm >= 0) & (jm < T)
    tcl = jnp.clip(jm, 0, T - 1)
    Ap = jnp.transpose(A, (1, 2, 3, 0))                 # (inC, Sp, T, C)
    M = Ap[:, :, tcl, :]                                # (inC, Sp, W, Wout, C)
    M = jnp.where(valid[None, None, :, :, None], M, 0.0)
    M = M.reshape(inC * Sp * W, Wout * C).astype(f32)
    beta_row = jnp.tile(beta, (Wout,)).reshape(1, Wout * C).astype(f32)
    e_enhT = enc['econv_w'].reshape(C, C).T.astype(f32)           # (C, C)
    e_enhb = enc['econv_b'].reshape(1, C).astype(f32)

    # ------------- transformer layers: transpose + stack along a layer axis --------
    def _stack(fn):
        return jnp.stack([fn(lp) for lp in params['layers']], axis=0).astype(f32)

    ln_g = _stack(lambda lp: lp['ln_g'].reshape(1, C))            # (L, 1, C)
    ln_b = _stack(lambda lp: lp['ln_b'].reshape(1, C))
    wqkv = _stack(lambda lp: lp['in_proj_w'].T)                   # (L, C, 3C)
    bqkv = _stack(lambda lp: lp['in_proj_b'].reshape(1, 3 * C))
    wo = _stack(lambda lp: lp['out_proj_w'].T)                    # (L, C, C)
    bo = _stack(lambda lp: lp['out_proj_b'].reshape(1, C))
    w1 = _stack(lambda lp: lp['ff1_w'].T)                         # (L, C, E*C)
    b1 = _stack(lambda lp: lp['ff1_b'].reshape(1, -1))
    w2 = _stack(lambda lp: lp['ff2_w'].T)                         # (L, E*C, C)
    b2 = _stack(lambda lp: lp['ff2_b'].reshape(1, C))

    # ------------- decoder: fold upsample + sconvT + tconvT into one matmul --------
    dec = params['dec']
    Wup = 104                                            # nn.Upsample((1, 104))
    Wf = Wup + T - 1
    d_enhT = dec['econv_w'].reshape(C, C).T.astype(f32)
    d_enhb = dec['econv_b'].reshape(1, C).astype(f32)
    dsc = dec['bn_g'] / jnp.sqrt(dec['bn_v'] + 1e-5)
    dsh = dec['bn_b'] - dec['bn_m'] * dsc
    bn_sc = dsc.reshape(1, C).astype(f32)
    bn_sh = dsh.reshape(1, C).astype(f32)

    wsd = dec['sconv_w'][:, :, :, 0]                     # (C, C, Sp)   [c1, c2, s]
    wtd = dec['tconv_w'][:, :, 0, :]                     # (C, inC, T)  [c2, co, t]
    Ad = jnp.einsum('ies,eot->iost', wsd, wtd)           # (C, inC, Sp, T) [c1,co,s,t]
    jm2 = jnp.arange(Wf)[None, :] - jnp.arange(Wup)[:, None]    # t = j - w  (Wup, Wf)
    valid2 = (jm2 >= 0) & (jm2 < T)
    tcl2 = jnp.clip(jm2, 0, T - 1)
    G4 = Ad[:, :, :, tcl2]                               # (C, inC, Sp, Wup, Wf)
    G4 = jnp.where(valid2[None, None, None, :, :], G4, 0.0)
    src = (jnp.arange(Wup) * S) // Wup                   # nearest-neighbour sources
    onehot = (src[None, :] == jnp.arange(S)[:, None]).astype(f32)      # (S, Wup)
    G2 = jnp.einsum('xw,ioswj->xiosj', onehot, G4)       # (S, C, inC, Sp, Wf)
    G2 = G2.reshape(S * C, inC * Sp * Wf).astype(f32)
    # bias: transpose-conv biases, border-aware along j
    jj = jnp.arange(Wf)[:, None]
    tt = jnp.arange(T)[None, :]
    vmask = (((jj - tt) >= 0) & ((jj - tt) < Wup)).astype(f32)          # (Wf, T)
    wt_sum = jnp.einsum('jt,eot->jeo', vmask, wtd)       # (Wf, C, inC)
    bias_jo = jnp.einsum('jeo,e->jo', wt_sum, dec['sconv_b'])           # (Wf, inC)
    gb3 = dec['tconv_b'][:, None, None] + jnp.transpose(bias_jo)[:, None, :]
    gb3 = jnp.broadcast_to(gb3, (inC, Sp, Wf))
    gb_row = gb3.reshape(1, inC * Sp * Wf).astype(f32)

    return dict(M=M, beta_row=beta_row, e_enhT=e_enhT, e_enhb=e_enhb,
                ln_g=ln_g, ln_b=ln_b, wqkv=wqkv, bqkv=bqkv, wo=wo, bo=bo,
                w1=w1, b1=b1, w2=w2, b2=b2,
                d_enhT=d_enhT, d_enhb=d_enhb, bn_sc=bn_sc, bn_sh=bn_sh,
                G2=G2, gb_row=gb_row)


# -------------------------------- forward --------------------------------

def make_forward(params, cfg, x_shape):
    B, inC, H, W = x_shape
    C = cfg['channel_size']
    T = cfg['temporal_conv_size']
    k_pool, s_pool = cfg['avg_kernel'], cfg['avg_stride']
    Wout = W - T + 1
    S = (Wout - k_pool) // s_pool + 1
    Hd = cfg['spatial_conv_size']
    Wf = 104 + T - 1
    L = cfg['num_attention']
    packed = pack_params(params, cfg, x_shape)
    N = packed['G2'].shape[1]

    kernel = functools.partial(
        _eegae_kernel, batch=B, seq_len=S, channels=C,
        num_heads=cfg['num_head'], num_layers=L,
        pool_k=k_pool, pool_s=s_pool)

    fused = pl.pallas_call(
        kernel,
        out_shape=jax.ShapeDtypeStruct((B, N), jnp.float32),
        scratch_shapes=[pltpu.VMEM((B * S, C), jnp.float32),     # token layout
                        pltpu.VMEM((B * S, C), jnp.float32),     # attention out
                        pltpu.VMEM((B, S * C), jnp.float32)],    # decoder layout
    )

    def forward(x):
        x2 = x.reshape(B, inC * H * W).astype(jnp.float32)
        out = fused(x2, packed['M'], packed['beta_row'], packed['e_enhT'],
                    packed['e_enhb'], packed['ln_g'], packed['ln_b'],
                    packed['wqkv'], packed['bqkv'], packed['wo'], packed['bo'],
                    packed['w1'], packed['b1'], packed['w2'], packed['b2'],
                    packed['d_enhT'], packed['d_enhb'], packed['bn_sc'],
                    packed['bn_sh'], packed['G2'], packed['gb_row'])
        return out.reshape(B, inC, Hd, Wf)

    return jax.jit(forward)


# ---------------------------- plain-JAX reference ----------------------------

def _ref_block(z, prm, n_heads):
    B, S, C = z.shape
    Dh = C // n_heads

    def ln(x):
        m = x.mean(-1, keepdims=True)
        v = ((x - m) ** 2).mean(-1, keepdims=True)
        return (x - m) / jnp.sqrt(v + 1e-5) * prm['ln_g'] + prm['ln_b']

    xn = ln(z)
    qkv = xn @ prm['in_proj_w'].T + prm['in_proj_b']
    q, k, v = qkv[..., :C], qkv[..., C:2 * C], qkv[..., 2 * C:]

    def heads(t):
        return t.reshape(B, S, n_heads, Dh).transpose(0, 2, 1, 3)

    s = jnp.einsum('bhqd,bhkd->bhqk', heads(q), heads(k)) / jnp.sqrt(float(Dh))
    pw = jax.nn.softmax(s, axis=-1)
    o = jnp.einsum('bhqk,bhkd->bhqd', pw, heads(v))
    o = o.transpose(0, 2, 1, 3).reshape(B, S, C)
    x1 = z + (o @ prm['out_proj_w'].T + prm['out_proj_b'])
    h = ln(x1) @ prm['ff1_w'].T + prm['ff1_b']
    h = 0.5 * h * (1.0 + jax.scipy.special.erf(h / jnp.sqrt(2.0)))
    return x1 + (h @ prm['ff2_w'].T + prm['ff2_b'])


def _ref_forward(x, params, cfg):
    enc = params['enc']
    B, inC, H, W = x.shape
    C = cfg['channel_size']
    T = cfg['temporal_conv_size']
    Wout = W - T + 1
    t1 = enc['tconv_b'][None, :, None, None] * jnp.ones((B, C, H, Wout), jnp.float32)
    for t in range(T):
        t1 = t1 + jnp.einsum('bihw,ci->bchw', x[:, :, :, t:t + Wout],
                             enc['tconv_w'][:, :, 0, t])
    t2 = jnp.einsum('bcsw,ocs->bow', t1, enc['sconv_w'][:, :, :, 0])
    t2 = (t2 + enc['sconv_b'][None, :, None])[:, :, None, :]
    sc = enc['bn_g'] / jnp.sqrt(enc['bn_v'] + 1e-5)
    sh = enc['bn_b'] - enc['bn_m'] * sc
    t3 = t2 * sc[None, :, None, None] + sh[None, :, None, None]
    t3 = jnp.where(t3 > 0, t3, jnp.exp(jnp.minimum(t3, 0.0)) - 1.0)
    k, st = cfg['avg_kernel'], cfg['avg_stride']
    Wp = (Wout - k) // st + 1
    t4 = jnp.stack([jnp.mean(t3[:, :, :, i * st:i * st + k], axis=-1)
                    for i in range(Wp)], axis=-1)
    t5 = (jnp.einsum('bchw,oc->bohw', t4, enc['econv_w'][:, :, 0, 0])
          + enc['econv_b'][None, :, None, None])
    z = jnp.transpose(t5, (0, 2, 3, 1))[:, 0]
    for lp in params['layers']:
        z = _ref_block(z, lp, cfg['num_head'])
    dec = params['dec']
    xd = jnp.transpose(z[:, None, :, :], (0, 3, 1, 2))            # (B, C, 1, S)
    d1 = (jnp.einsum('bchw,oc->bohw', xd, dec['econv_w'][:, :, 0, 0])
          + dec['econv_b'][None, :, None, None])
    S_ = d1.shape[-1]
    src = (jnp.arange(104) * S_) // 104
    d2 = d1[:, :, :, src]
    d2 = jnp.where(d2 > 0, d2, jnp.exp(jnp.minimum(d2, 0.0)) - 1.0)
    dsc = dec['bn_g'] / jnp.sqrt(dec['bn_v'] + 1e-5)
    dsh = dec['bn_b'] - dec['bn_m'] * dsc
    d3 = d2 * dsc[None, :, None, None] + dsh[None, :, None, None]
    d4 = (jnp.einsum('bcxw,cos->bosw', d3, dec['sconv_w'][:, :, :, 0])
          + dec['sconv_b'][None, :, None, None])
    wt_d = dec['tconv_w'][:, :, 0, :]
    Wu = d4.shape[-1]
    Wf = Wu + T - 1
    d5 = jnp.zeros((B, wt_d.shape[1], d4.shape[2], Wf), jnp.float32)
    for t in range(T):
        d5 = d5.at[:, :, :, t:t + Wu].add(
            jnp.einsum('bcsw,co->bosw', d4, wt_d[:, :, t]))
    return d5 + dec['tconv_b'][None, :, None, None]


# --------------------------------- params ---------------------------------

def init_params(key, cfg):
    C = cfg['channel_size']
    inC = cfg['in_channels']
    T = cfg['temporal_conv_size']
    S = cfg['spatial_conv_size']
    E = cfg['expansion']
    keys = iter(jax.random.split(key, 64))

    def nrm(shape, scale=0.1):
        return scale * jax.random.normal(next(keys), shape, jnp.float32)

    enc = dict(
        tconv_w=nrm((C, inC, 1, T)), tconv_b=nrm((C,)),
        sconv_w=nrm((C, C, S, 1)), sconv_b=nrm((C,)),
        bn_g=jnp.ones((C,), jnp.float32), bn_b=jnp.zeros((C,), jnp.float32),
        bn_m=jnp.zeros((C,), jnp.float32), bn_v=jnp.ones((C,), jnp.float32),
        econv_w=nrm((C, C, 1, 1)), econv_b=nrm((C,)),
    )
    layers = []
    for _ in range(cfg['num_attention']):
        layers.append(dict(
            ln_g=jnp.ones((C,), jnp.float32), ln_b=jnp.zeros((C,), jnp.float32),
            in_proj_w=nrm((3 * C, C)), in_proj_b=nrm((3 * C,)),
            out_proj_w=nrm((C, C)), out_proj_b=nrm((C,)),
            ff1_w=nrm((E * C, C)), ff1_b=nrm((E * C,)),
            ff2_w=nrm((C, E * C)), ff2_b=nrm((C,)),
        ))
    dec = dict(
        econv_w=nrm((C, C, 1, 1)), econv_b=nrm((C,)),
        bn_g=jnp.ones((C,), jnp.float32), bn_b=jnp.zeros((C,), jnp.float32),
        bn_m=jnp.zeros((C,), jnp.float32), bn_v=jnp.ones((C,), jnp.float32),
        sconv_w=nrm((C, C, S, 1)), sconv_b=nrm((C,)),
        tconv_w=nrm((C, inC, 1, T)), tconv_b=nrm((inC,)),
    )
    return dict(enc=enc, layers=layers, dec=dec)


if __name__ == "__main__":
    cfg = dict(
        in_channels=1, channel_size=16, temporal_conv_size=5,
        spatial_conv_size=4, avg_kernel=4, avg_stride=2,
        dropout=0.1, num_head=2, expansion=2, num_attention=2,
    )
    key = jax.random.PRNGKey(0)
    pkey, xkey = jax.random.split(key)
    params = init_params(pkey, cfg)

    # input: (B, in_channels, electrodes=spatial_conv_size, time) NCHW
    B, H, W = 2, cfg['spatial_conv_size'], 16
    x = jax.random.normal(xkey, (B, cfg['in_channels'], H, W), jnp.float32)

    forward = make_forward(params, cfg, x.shape)
    out = jax.block_until_ready(forward(x))

    Wf = 104 + cfg['temporal_conv_size'] - 1
    expected = (B, cfg['in_channels'], cfg['spatial_conv_size'], Wf)
    assert out.shape == expected, (out.shape, expected)
    assert bool(jnp.all(jnp.isfinite(out)))

    # sanity check against an independent plain-JAX implementation
    ref = _ref_forward(x, params, cfg)
    max_err = float(jnp.max(jnp.abs(out - ref)))
    assert max_err < 1e-2, f"mismatch vs plain-JAX reference: {max_err}"

    print("KERNEL_OK")
</pallas_src>

<mosaic_0001>
module attributes {stable_mosaic.version = 11 : i64} {
  func.func @_eegae_kernel(%arg0: memref<2x64xf32, #tpu.memory_space<vmem>>, %arg1: memref<64x192xf32, #tpu.memory_space<vmem>>, %arg2: memref<1x192xf32, #tpu.memory_space<vmem>>, %arg3: memref<16x16xf32, #tpu.memory_space<vmem>>, %arg4: memref<1x16xf32, #tpu.memory_space<vmem>>, %arg5: memref<2x1x16xf32, #tpu.memory_space<vmem>>, %arg6: memref<2x1x16xf32, #tpu.memory_space<vmem>>, %arg7: memref<2x16x48xf32, #tpu.memory_space<vmem>>, %arg8: memref<2x1x48xf32, #tpu.memory_space<vmem>>, %arg9: memref<2x16x16xf32, #tpu.memory_space<vmem>>, %arg10: memref<2x1x16xf32, #tpu.memory_space<vmem>>, %arg11: memref<2x16x32xf32, #tpu.memory_space<vmem>>, %arg12: memref<2x1x32xf32, #tpu.memory_space<vmem>>, %arg13: memref<2x32x16xf32, #tpu.memory_space<vmem>>, %arg14: memref<2x1x16xf32, #tpu.memory_space<vmem>>, %arg15: memref<16x16xf32, #tpu.memory_space<vmem>>, %arg16: memref<1x16xf32, #tpu.memory_space<vmem>>, %arg17: memref<1x16xf32, #tpu.memory_space<vmem>>, %arg18: memref<1x16xf32, #tpu.memory_space<vmem>>, %arg19: memref<80x432xf32, #tpu.memory_space<vmem>>, %arg20: memref<1x432xf32, #tpu.memory_space<vmem>>, %arg21: memref<2x432xf32, #tpu.memory_space<vmem>>, %arg22: memref<10x16xf32, #tpu.memory_space<vmem>>, %arg23: memref<10x16xf32, #tpu.memory_space<vmem>>, %arg24: memref<2x80xf32, #tpu.memory_space<vmem>>) attributes {dimension_semantics = [], scalar_prefetch = 0 : i64, scratch_operands = 3 : i64, tpu.core_type = #tpu.core_type<tc>} {
    %c0 = arith.constant 0 : index
    %c0_0 = arith.constant 0 : index
    %0 = vector.load %arg0[%c0, %c0_0] : memref<2x64xf32, #tpu.memory_space<vmem>>, vector<2x64xf32>
    %c0_1 = arith.constant 0 : index
    %c0_2 = arith.constant 0 : index
    %1 = vector.load %arg1[%c0_1, %c0_2] : memref<64x192xf32, #tpu.memory_space<vmem>>, vector<64x192xf32>
    %cst = arith.constant dense<0.000000e+00> : vector<2x192xf32>
    %2 = tpu.matmul %0, %1, %cst {dimension_numbers = #tpu.dot_dimension_numbers<[1], [0], [0], [1], [0, 0, 1, 1], [], []>} : vector<2x64xf32>, vector<64x192xf32>, vector<2x192xf32> -> vector<2x192xf32>
    %c0_3 = arith.constant 0 : index
    %c0_4 = arith.constant 0 : index
    %3 = vector.load %arg2[%c0_3, %c0_4] : memref<1x192xf32, #tpu.memory_space<vmem>>, vector<1x192xf32>
    %4 = vector.broadcast %3 : vector<1x192xf32> to vector<2x192xf32>
    %5 = arith.addf %2, %4 : vector<2x192xf32>
    %cst_5 = arith.constant 0.000000e+00 : f32
    %6 = vector.broadcast %cst_5 : f32 to vector<2x192xf32>
    %7 = arith.cmpf ogt, %5, %6 : vector<2x192xf32>
    %cst_6 = arith.constant 0.000000e+00 : f32
    %8 = vector.broadcast %cst_6 : f32 to vector<2x192xf32>
    %9 = arith.minimumf %5, %8 : vector<2x192xf32>
    %10 = math.exp %9 : vector<2x192xf32>
    %cst_7 = arith.constant 1.000000e+00 : f32
    %11 = vector.broadcast %cst_7 : f32 to vector<2x192xf32>
    %12 = arith.subf %10, %11 : vector<2x192xf32>
    %13 = arith.select %7, %5, %12 : vector<2x192xi1>, vector<2x192xf32>
    %14 = vector.extract_strided_slice %13 {offsets = [0, 0], sizes = [2, 16], strides = [1, 1]} : vector<2x192xf32> to vector<2x16xf32>
    %15 = vector.extract_strided_slice %13 {offsets = [0, 16], sizes = [2, 16], strides = [1, 1]} : vector<2x192xf32> to vector<2x16xf32>
    %16 = arith.addf %14, %15 : vector<2x16xf32>
    %17 = vector.extract_strided_slice %13 {offsets = [0, 32], sizes = [2, 16], strides = [1, 1]} : vector<2x192xf32> to vector<2x16xf32>
    %18 = arith.addf %16, %17 : vector<2x16xf32>
    %19 = vector.extract_strided_slice %13 {offsets = [0, 48], sizes = [2, 16], strides = [1, 1]} : vector<2x192xf32> to vector<2x16xf32>
    %20 = arith.addf %18, %19 : vector<2x16xf32>
    %cst_8 = arith.constant 2.500000e-01 : f32
    %21 = vector.broadcast %cst_8 : f32 to vector<2x16xf32>
    %22 = arith.mulf %20, %21 : vector<2x16xf32>
    %23 = vector.extract_strided_slice %13 {offsets = [0, 32], sizes = [2, 16], strides = [1, 1]} : vector<2x192xf32> to vector<2x16xf32>
    %24 = vector.extract_strided_slice %13 {offsets = [0, 48], sizes = [2, 16], strides = [1, 1]} : vector<2x192xf32> to vector<2x16xf32>
    %25 = arith.addf %23, %24 : vector<2x16xf32>
    %26 = vector.extract_strided_slice %13 {offsets = [0, 64], sizes = [2, 16], strides = [1, 1]} : vector<2x192xf32> to vector<2x16xf32>
    %27 = arith.addf %25, %26 : vector<2x16xf32>
    %28 = vector.extract_strided_slice %13 {offsets = [0, 80], sizes = [2, 16], strides = [1, 1]} : vector<2x192xf32> to vector<2x16xf32>
    %29 = arith.addf %27, %28 : vector<2x16xf32>
    %cst_9 = arith.constant 2.500000e-01 : f32
    %30 = vector.broadcast %cst_9 : f32 to vector<2x16xf32>
    %31 = arith.mulf %29, %30 : vector<2x16xf32>
    %32 = vector.extract_strided_slice %13 {offsets = [0, 64], sizes = [2, 16], strides = [1, 1]} : vector<2x192xf32> to vector<2x16xf32>
    %33 = vector.extract_strided_slice %13 {offsets = [0, 80], sizes = [2, 16], strides = [1, 1]} : vector<2x192xf32> to vector<2x16xf32>
    %34 = arith.addf %32, %33 : vector<2x16xf32>
    %35 = vector.extract_strided_slice %13 {offsets = [0, 96], sizes = [2, 16], strides = [1, 1]} : vector<2x192xf32> to vector<2x16xf32>
    %36 = arith.addf %34, %35 : vector<2x16xf32>
    %37 = vector.extract_strided_slice %13 {offsets = [0, 112], sizes = [2, 16], strides = [1, 1]} : vector<2x192xf32> to vector<2x16xf32>
    %38 = arith.addf %36, %37 : vector<2x16xf32>
    %cst_10 = arith.constant 2.500000e-01 : f32
    %39 = vector.broadcast %cst_10 : f32 to vector<2x16xf32>
    %40 = arith.mulf %38, %39 : vector<2x16xf32>
    %41 = vector.extract_strided_slice %13 {offsets = [0, 96], sizes = [2, 16], strides = [1, 1]} : vector<2x192xf32> to vector<2x16xf32>
    %42 = vector.extract_strided_slice %13 {offsets = [0, 112], sizes = [2, 16], strides = [1, 1]} : vector<2x192xf32> to vector<2x16xf32>
    %43 = arith.addf %41, %42 : vector<2x16xf32>
    %44 = vector.extract_strided_slice %13 {offsets = [0, 128], sizes = [2, 16], strides = [1, 1]} : vector<2x192xf32> to vector<2x16xf32>
    %45 = arith.addf %43, %44 : vector<2x16xf32>
    %46 = vector.extract_strided_slice %13 {offsets = [0, 144], sizes = [2, 16], strides = [1, 1]} : vector<2x192xf32> to vector<2x16xf32>
    %47 = arith.addf %45, %46 : vector<2x16xf32>
    %cst_11 = arith.constant 2.500000e-01 : f32
    %48 = vector.broadcast %cst_11 : f32 to vector<2x16xf32>
    %49 = arith.mulf %47, %48 : vector<2x16xf32>
    %50 = vector.extract_strided_slice %13 {offsets = [0, 128], sizes = [2, 16], strides = [1, 1]} : vector<2x192xf32> to vector<2x16xf32>
    %51 = vector.extract_strided_slice %13 {offsets = [0, 144], sizes = [2, 16], strides = [1, 1]} : vector<2x192xf32> to vector<2x16xf32>
    %52 = arith.addf %50, %51 : vector<2x16xf32>
    %53 = vector.extract_strided_slice %13 {offsets = [0, 160], sizes = [2, 16], strides = [1, 1]} : vector<2x192xf32> to vector<2x16xf32>
    %54 = arith.addf %52, %53 : vector<2x16xf32>
    %55 = vector.extract_strided_slice %13 {offsets = [0, 176], sizes = [2, 16], strides = [1, 1]} : vector<2x192xf32> to vector<2x16xf32>
    %56 = arith.addf %54, %55 : vector<2x16xf32>
    %cst_12 = arith.constant 2.500000e-01 : f32
    %57 = vector.broadcast %cst_12 : f32 to vector<2x16xf32>
    %58 = arith.mulf %56, %57 : vector<2x16xf32>
    %59 = tpu.concatenate %22, %31, %40, %49, %58 in 1 : vector<2x16xf32>, vector<2x16xf32>, vector<2x16xf32>, vector<2x16xf32>, vector<2x16xf32> -> vector<2x80xf32>
    %60 = vector.extract_strided_slice %59 {offsets = [0, 0], sizes = [1, 16], strides = [1, 1]} : vector<2x80xf32> to vector<1x16xf32>
    %c0_13 = arith.constant 0 : index
    %c0_14 = arith.constant 0 : index
    %61 = vector.load %arg22[%c0_13, %c0_14] : memref<10x16xf32, #tpu.memory_space<vmem>>, vector<1x16xf32>
    tpu.vector_store %arg22[%c0_13, %c0_14], %60 {strides = array<i32>} : memref<10x16xf32, #tpu.memory_space<vmem>>, vector<1x16xf32>,
    %62 = vector.extract_strided_slice %59 {offsets = [0, 16], sizes = [1, 16], strides = [1, 1]} : vector<2x80xf32> to vector<1x16xf32>
    %c1 = arith.constant 1 : index
    %c0_15 = arith.constant 0 : index
    %63 = vector.load %arg22[%c1, %c0_15] : memref<10x16xf32, #tpu.memory_space<vmem>>, vector<1x16xf32>
    tpu.vector_store %arg22[%c1, %c0_15], %62 {strides = array<i32>} : memref<10x16xf32, #tpu.memory_space<vmem>>, vector<1x16xf32>,
    %64 = vector.extract_strided_slice %59 {offsets = [0, 32], sizes = [1, 16], strides = [1, 1]} : vector<2x80xf32> to vector<1x16xf32>
    %c2 = arith.constant 2 : index
    %c0_16 = arith.constant 0 : index
    %65 = vector.load %arg22[%c2, %c0_16] : memref<10x16xf32, #tpu.memory_space<vmem>>, vector<1x16xf32>
    tpu.vector_store %arg22[%c2, %c0_16], %64 {strides = array<i32>} : memref<10x16xf32, #tpu.memory_space<vmem>>, vector<1x16xf32>,
    %66 = vector.extract_strided_slice %59 {offsets = [0, 48], sizes = [1, 16], strides = [1, 1]} : vector<2x80xf32> to vector<1x16xf32>
    %c3 = arith.constant 3 : index
    %c0_17 = arith.constant 0 : index
    %67 = vector.load %arg22[%c3, %c0_17] : memref<10x16xf32, #tpu.memory_space<vmem>>, vector<1x16xf32>
    tpu.vector_store %arg22[%c3, %c0_17], %66 {strides = array<i32>} : memref<10x16xf32, #tpu.memory_space<vmem>>, vector<1x16xf32>,
    %68 = vector.extract_strided_slice %59 {offsets = [0, 64], sizes = [1, 16], strides = [1, 1]} : vector<2x80xf32> to vector<1x16xf32>
    %c4 = arith.constant 4 : index
    %c0_18 = arith.constant 0 : index
    %69 = vector.load %arg22[%c4, %c0_18] : memref<10x16xf32, #tpu.memory_space<vmem>>, vector<1x16xf32>
    tpu.vector_store %arg22[%c4, %c0_18], %68 {strides = array<i32>} : memref<10x16xf32, #tpu.memory_space<vmem>>, vector<1x16xf32>,
    %70 = vector.extract_strided_slice %59 {offsets = [1, 0], sizes = [1, 16], strides = [1, 1]} : vector<2x80xf32> to vector<1x16xf32>
    %c5 = arith.constant 5 : index
    %c0_19 = arith.constant 0 : index
    %71 = vector.load %arg22[%c5, %c0_19] : memref<10x16xf32, #tpu.memory_space<vmem>>, vector<1x16xf32>
    tpu.vector_store %arg22[%c5, %c0_19], %70 {strides = array<i32>} : memref<10x16xf32, #tpu.memory_space<vmem>>, vector<1x16xf32>,
    %72 = vector.extract_strided_slice %59 {offsets = [1, 16], sizes = [1, 16], strides = [1, 1]} : vector<2x80xf32> to vector<1x16xf32>
    %c6 = arith.constant 6 : index
    %c0_20 = arith.constant 0 : index
    %73 = vector.load %arg22[%c6, %c0_20] : memref<10x16xf32, #tpu.memory_space<vmem>>, vector<1x16xf32>
    tpu.vector_store %arg22[%c6, %c0_20], %72 {strides = array<i32>} : memref<10x16xf32, #tpu.memory_space<vmem>>, vector<1x16xf32>,
    %74 = vector.extract_strided_slice %59 {offsets = [1, 32], sizes = [1, 16], strides = [1, 1]} : vector<2x80xf32> to vector<1x16xf32>
    %c7 = arith.constant 7 : index
    %c0_21 = arith.constant 0 : index
    %75 = vector.load %arg22[%c7, %c0_21] : memref<10x16xf32, #tpu.memory_space<vmem>>, vector<1x16xf32>
    tpu.vector_store %arg22[%c7, %c0_21], %74 {strides = array<i32>} : memref<10x16xf32, #tpu.memory_space<vmem>>, vector<1x16xf32>,
    %76 = vector.extract_strided_slice %59 {offsets = [1, 48], sizes = [1, 16], strides = [1, 1]} : vector<2x80xf32> to vector<1x16xf32>
    %c8 = arith.constant 8 : index
    %c0_22 = arith.constant 0 : index
    %77 = vector.load %arg22[%c8, %c0_22] : memref<10x16xf32, #tpu.memory_space<vmem>>, vector<1x16xf32>
    tpu.vector_store %arg22[%c8, %c0_22], %76 {strides = array<i32>} : memref<10x16xf32, #tpu.memory_space<vmem>>, vector<1x16xf32>,
    %78 = vector.extract_strided_slice %59 {offsets = [1, 64], sizes = [1, 16], strides = [1, 1]} : vector<2x80xf32> to vector<1x16xf32>
    %c9 = arith.constant 9 : index
    %c0_23 = arith.constant 0 : index
    %79 = vector.load %arg22[%c9, %c0_23] : memref<10x16xf32, #tpu.memory_space<vmem>>, vector<1x16xf32>
    tpu.vector_store %arg22[%c9, %c0_23], %78 {strides = array<i32>} : memref<10x16xf32, #tpu.memory_space<vmem>>, vector<1x16xf32>,
    %c0_24 = arith.constant 0 : index
    %c0_25 = arith.constant 0 : index
    %80 = vector.load %arg22[%c0_24, %c0_25] : memref<10x16xf32, #tpu.memory_space<vmem>>, vector<10x16xf32>
    %c0_26 = arith.constant 0 : index
    %c0_27 = arith.constant 0 : index
    %81 = vector.load %arg3[%c0_26, %c0_27] : memref<16x16xf32, #tpu.memory_space<vmem>>, vector<16x16xf32>
    %cst_28 = arith.constant dense<0.000000e+00> : vector<10x16xf32>
    %82 = tpu.matmul %80, %81, %cst_28 {dimension_numbers = #tpu.dot_dimension_numbers<[1], [0], [0], [1], [0, 0, 1, 1], [], []>} : vector<10x16xf32>, vector<16x16xf32>, vector<10x16xf32> -> vector<10x16xf32>
    %c0_29 = arith.constant 0 : index
    %c0_30 = arith.constant 0 : index
    %83 = vector.load %arg4[%c0_29, %c0_30] : memref<1x16xf32, #tpu.memory_space<vmem>>, vector<1x16xf32>
    %84 = vector.broadcast %83 : vector<1x16xf32> to vector<10x16xf32>
    %85 = arith.addf %82, %84 : vector<10x16xf32>
    %c0_31 = arith.constant 0 : index
    %c0_32 = arith.constant 0 : index
    %c0_33 = arith.constant 0 : index
    %86 = vector.load %arg5[%c0_31, %c0_32, %c0_33] : memref<2x1x16xf32, #tpu.memory_space<vmem>>, vector<1x1x16xf32>
    %87 = vector.shape_cast %86 : vector<1x1x16xf32> to vector<1x16xf32>
    %c0_34 = arith.constant 0 : index
    %c0_35 = arith.constant 0 : index
    %c0_36 = arith.constant 0 : index
    %88 = vector.load %arg6[%c0_34, %c0_35, %c0_36] : memref<2x1x16xf32, #tpu.memory_space<vmem>>, vector<1x1x16xf32>
    %89 = vector.shape_cast %88 : vector<1x1x16xf32> to vector<1x16xf32>
    %cst_37 = arith.constant dense<0.000000e+00> : vector<10xf32>
    %90 = vector.multi_reduction <add>, %85, %cst_37 [1] : vector<10x16xf32> to vector<10xf32>
    %91 = vector.shape_cast %90 : vector<10xf32> to vector<10x1xf32>
    %cst_38 = arith.constant 1.600000e+01 : f32
    %92 = vector.broadcast %cst_38 : f32 to vector<10x1xf32>
    %93 = arith.divf %91, %92 : vector<10x1xf32>
    %94 = vector.broadcast %93 : vector<10x1xf32> to vector<10x16xf32>
    %95 = arith.subf %85, %94 : vector<10x16xf32>
    %96 = arith.mulf %95, %95 : vector<10x16xf32>
    %cst_39 = arith.constant dense<0.000000e+00> : vector<10xf32>
    %97 = vector.multi_reduction <add>, %96, %cst_39 [1] : vector<10x16xf32> to vector<10xf32>
    %98 = vector.shape_cast %97 : vector<10xf32> to vector<10x1xf32>
    %cst_40 = arith.constant 1.600000e+01 : f32
    %99 = vector.broadcast %cst_40 : f32 to vector<10x1xf32>
    %100 = arith.divf %98, %99 : vector<10x1xf32>
    %101 = vector.broadcast %93 : vector<10x1xf32> to vector<10x16xf32>
    %102 = arith.subf %85, %101 : vector<10x16xf32>
    %cst_41 = arith.constant 9.99999974E-6 : f32
    %103 = vector.broadcast %cst_41 : f32 to vector<10x1xf32>
    %104 = arith.addf %100, %103 : vector<10x1xf32>
    %105 = math.rsqrt %104 : vector<10x1xf32>
    %106 = vector.broadcast %105 : vector<10x1xf32> to vector<10x16xf32>
    %107 = arith.mulf %102, %106 : vector<10x16xf32>
    %108 = vector.broadcast %87 : vector<1x16xf32> to vector<10x16xf32>
    %109 = arith.mulf %107, %108 : vector<10x16xf32>
    %110 = vector.broadcast %89 : vector<1x16xf32> to vector<10x16xf32>
    %111 = arith.addf %109, %110 : vector<10x16xf32>
    %c0_42 = arith.constant 0 : index
    %c0_43 = arith.constant 0 : index
    %c0_44 = arith.constant 0 : index
    %112 = vector.load %arg7[%c0_42, %c0_43, %c0_44] : memref<2x16x48xf32, #tpu.memory_space<vmem>>, vector<1x16x48xf32>
    %113 = vector.shape_cast %112 : vector<1x16x48xf32> to vector<16x48xf32>
    %cst_45 = arith.constant dense<0.000000e+00> : vector<10x48xf32>
    %114 = tpu.matmul %111, %113, %cst_45 {dimension_numbers = #tpu.dot_dimension_numbers<[1], [0], [0], [1], [0, 0, 1, 1], [], []>} : vector<10x16xf32>, vector<16x48xf32>, vector<10x48xf32> -> vector<10x48xf32>
    %c0_46 = arith.constant 0 : index
    %c0_47 = arith.constant 0 : index
    %c0_48 = arith.constant 0 : index
    %115 = vector.load %arg8[%c0_46, %c0_47, %c0_48] : memref<2x1x48xf32, #tpu.memory_space<vmem>>, vector<1x1x48xf32>
    %116 = vector.shape_cast %115 : vector<1x1x48xf32> to vector<1x48xf32>
    %117 = vector.broadcast %116 : vector<1x48xf32> to vector<10x48xf32>
    %118 = arith.addf %114, %117 : vector<10x48xf32>
    %119 = vector.extract_strided_slice %118 {offsets = [0, 0], sizes = [5, 16], strides = [1, 1]} : vector<10x48xf32> to vector<5x16xf32>
    %120 = vector.extract_strided_slice %118 {offsets = [0, 16], sizes = [5, 16], strides = [1, 1]} : vector<10x48xf32> to vector<5x16xf32>
    %121 = vector.extract_strided_slice %118 {offsets = [0, 32], sizes = [5, 16], strides = [1, 1]} : vector<10x48xf32> to vector<5x16xf32>
    %122 = vector.extract_strided_slice %119 {offsets = [0, 0], sizes = [5, 8], strides = [1, 1]} : vector<5x16xf32> to vector<5x8xf32>
    %cst_49 = arith.constant 0.353553385 : f32
    %123 = vector.broadcast %cst_49 : f32 to vector<5x8xf32>
    %124 = arith.mulf %122, %123 : vector<5x8xf32>
    %125 = vector.extract_strided_slice %120 {offsets = [0, 0], sizes = [5, 8], strides = [1, 1]} : vector<5x16xf32> to vector<5x8xf32>
    %126 = vector.extract_strided_slice %121 {offsets = [0, 0], sizes = [5, 8], strides = [1, 1]} : vector<5x16xf32> to vector<5x8xf32>
    %cst_50 = arith.constant dense<0.000000e+00> : vector<5x5xf32>
    %127 = tpu.matmul %124, %125, %cst_50 {dimension_numbers = #tpu.dot_dimension_numbers<[1], [1], [0], [0], [0, 0, 1, 0], [], []>} : vector<5x8xf32>, vector<5x8xf32>, vector<5x5xf32> -> vector<5x5xf32>
    %cst_51 = arith.constant dense<0xFF800000> : vector<5xf32>
    %128 = vector.multi_reduction <maximumf>, %127, %cst_51 [1] : vector<5x5xf32> to vector<5xf32>
    %129 = vector.shape_cast %128 : vector<5xf32> to vector<5x1xf32>
    %130 = vector.broadcast %129 : vector<5x1xf32> to vector<5x5xf32>
    %131 = arith.subf %127, %130 : vector<5x5xf32>
    %132 = math.exp %131 : vector<5x5xf32>
    %cst_52 = arith.constant dense<0.000000e+00> : vector<5xf32>
    %133 = vector.multi_reduction <add>, %132, %cst_52 [1] : vector<5x5xf32> to vector<5xf32>
    %134 = vector.shape_cast %133 : vector<5xf32> to vector<5x1xf32>
    %135 = tpu.reciprocal %134 {approx = true} : vector<5x1xf32> -> vector<5x1xf32>
    %136 = vector.broadcast %135 : vector<5x1xf32> to vector<5x5xf32>
    %137 = arith.mulf %132, %136 : vector<5x5xf32>
    %cst_53 = arith.constant dense<0.000000e+00> : vector<5x8xf32>
    %138 = tpu.matmul %137, %126, %cst_53 {dimension_numbers = #tpu.dot_dimension_numbers<[1], [0], [0], [1], [0, 0, 1, 1], [], []>} : vector<5x5xf32>, vector<5x8xf32>, vector<5x8xf32> -> vector<5x8xf32>
    %c0_54 = arith.constant 0 : index
    %c0_55 = arith.constant 0 : index
    %139 = vector.load %arg23[%c0_54, %c0_55] : memref<10x16xf32, #tpu.memory_space<vmem>>, vector<5x8xf32>
    tpu.vector_store %arg23[%c0_54, %c0_55], %138 {strides = array<i32>} : memref<10x16xf32, #tpu.memory_space<vmem>>, vector<5x8xf32>,
    %140 = vector.extract_strided_slice %119 {offsets = [0, 8], sizes = [5, 8], strides = [1, 1]} : vector<5x16xf32> to vector<5x8xf32>
    %cst_56 = arith.constant 0.353553385 : f32
    %141 = vector.broadcast %cst_56 : f32 to vector<5x8xf32>
    %142 = arith.mulf %140, %141 : vector<5x8xf32>
    %143 = vector.extract_strided_slice %120 {offsets = [0, 8], sizes = [5, 8], strides = [1, 1]} : vector<5x16xf32> to vector<5x8xf32>
    %144 = vector.extract_strided_slice %121 {offsets = [0, 8], sizes = [5, 8], strides = [1, 1]} : vector<5x16xf32> to vector<5x8xf32>
    %cst_57 = arith.constant dense<0.000000e+00> : vector<5x5xf32>
    %145 = tpu.matmul %142, %143, %cst_57 {dimension_numbers = #tpu.dot_dimension_numbers<[1], [1], [0], [0], [0, 0, 1, 0], [], []>} : vector<5x8xf32>, vector<5x8xf32>, vector<5x5xf32> -> vector<5x5xf32>
    %cst_58 = arith.constant dense<0xFF800000> : vector<5xf32>
    %146 = vector.multi_reduction <maximumf>, %145, %cst_58 [1] : vector<5x5xf32> to vector<5xf32>
    %147 = vector.shape_cast %146 : vector<5xf32> to vector<5x1xf32>
    %148 = vector.broadcast %147 : vector<5x1xf32> to vector<5x5xf32>
    %149 = arith.subf %145, %148 : vector<5x5xf32>
    %150 = math.exp %149 : vector<5x5xf32>
    %cst_59 = arith.constant dense<0.000000e+00> : vector<5xf32>
    %151 = vector.multi_reduction <add>, %150, %cst_59 [1] : vector<5x5xf32> to vector<5xf32>
    %152 = vector.shape_cast %151 : vector<5xf32> to vector<5x1xf32>
    %153 = tpu.reciprocal %152 {approx = true} : vector<5x1xf32> -> vector<5x1xf32>
    %154 = vector.broadcast %153 : vector<5x1xf32> to vector<5x5xf32>
    %155 = arith.mulf %150, %154 : vector<5x5xf32>
    %cst_60 = arith.constant dense<0.000000e+00> : vector<5x8xf32>
    %156 = tpu.matmul %155, %144, %cst_60 {dimension_numbers = #tpu.dot_dimension_numbers<[1], [0], [0], [1], [0, 0, 1, 1], [], []>} : vector<5x5xf32>, vector<5x8xf32>, vector<5x8xf32> -> vector<5x8xf32>
    %c0_61 = arith.constant 0 : index
    %c8_62 = arith.constant 8 : index
    %157 = vector.load %arg23[%c0_61, %c8_62] : memref<10x16xf32, #tpu.memory_space<vmem>>, vector<5x8xf32>
    tpu.vector_store %arg23[%c0_61, %c8_62], %156 {strides = array<i32>} : memref<10x16xf32, #tpu.memory_space<vmem>>, vector<5x8xf32>,
    %158 = vector.extract_strided_slice %118 {offsets = [5, 0], sizes = [5, 16], strides = [1, 1]} : vector<10x48xf32> to vector<5x16xf32>
    %159 = vector.extract_strided_slice %118 {offsets = [5, 16], sizes = [5, 16], strides = [1, 1]} : vector<10x48xf32> to vector<5x16xf32>
    %160 = vector.extract_strided_slice %118 {offsets = [5, 32], sizes = [5, 16], strides = [1, 1]} : vector<10x48xf32> to vector<5x16xf32>
    %161 = vector.extract_strided_slice %158 {offsets = [0, 0], sizes = [5, 8], strides = [1, 1]} : vector<5x16xf32> to vector<5x8xf32>
    %cst_63 = arith.constant 0.353553385 : f32
    %162 = vector.broadcast %cst_63 : f32 to vector<5x8xf32>
    %163 = arith.mulf %161, %162 : vector<5x8xf32>
    %164 = vector.extract_strided_slice %159 {offsets = [0, 0], sizes = [5, 8], strides = [1, 1]} : vector<5x16xf32> to vector<5x8xf32>
    %165 = vector.extract_strided_slice %160 {offsets = [0, 0], sizes = [5, 8], strides = [1, 1]} : vector<5x16xf32> to vector<5x8xf32>
    %cst_64 = arith.constant dense<0.000000e+00> : vector<5x5xf32>
    %166 = tpu.matmul %163, %164, %cst_64 {dimension_numbers = #tpu.dot_dimension_numbers<[1], [1], [0], [0], [0, 0, 1, 0], [], []>} : vector<5x8xf32>, vector<5x8xf32>, vector<5x5xf32> -> vector<5x5xf32>
    %cst_65 = arith.constant dense<0xFF800000> : vector<5xf32>
    %167 = vector.multi_reduction <maximumf>, %166, %cst_65 [1] : vector<5x5xf32> to vector<5xf32>
    %168 = vector.shape_cast %167 : vector<5xf32> to vector<5x1xf32>
    %169 = vector.broadcast %168 : vector<5x1xf32> to vector<5x5xf32>
    %170 = arith.subf %166, %169 : vector<5x5xf32>
    %171 = math.exp %170 : vector<5x5xf32>
    %cst_66 = arith.constant dense<0.000000e+00> : vector<5xf32>
    %172 = vector.multi_reduction <add>, %171, %cst_66 [1] : vector<5x5xf32> to vector<5xf32>
    %173 = vector.shape_cast %172 : vector<5xf32> to vector<5x1xf32>
    %174 = tpu.reciprocal %173 {approx = true} : vector<5x1xf32> -> vector<5x1xf32>
    %175 = vector.broadcast %174 : vector<5x1xf32> to vector<5x5xf32>
    %176 = arith.mulf %171, %175 : vector<5x5xf32>
    %cst_67 = arith.constant dense<0.000000e+00> : vector<5x8xf32>
    %177 = tpu.matmul %176, %165, %cst_67 {dimension_numbers = #tpu.dot_dimension_numbers<[1], [0], [0], [1], [0, 0, 1, 1], [], []>} : vector<5x5xf32>, vector<5x8xf32>, vector<5x8xf32> -> vector<5x8xf32>
    %c5_68 = arith.constant 5 : index
    %c0_69 = arith.constant 0 : index
    %178 = vector.load %arg23[%c5_68, %c0_69] : memref<10x16xf32, #tpu.memory_space<vmem>>, vector<5x8xf32>
    tpu.vector_store %arg23[%c5_68, %c0_69], %177 {strides = array<i32>} : memref<10x16xf32, #tpu.memory_space<vmem>>, vector<5x8xf32>,
    %179 = vector.extract_strided_slice %158 {offsets = [0, 8], sizes = [5, 8], strides = [1, 1]} : vector<5x16xf32> to vector<5x8xf32>
    %cst_70 = arith.constant 0.353553385 : f32
    %180 = vector.broadcast %cst_70 : f32 to vector<5x8xf32>
    %181 = arith.mulf %179, %180 : vector<5x8xf32>
    %182 = vector.extract_strided_slice %159 {offsets = [0, 8], sizes = [5, 8], strides = [1, 1]} : vector<5x16xf32> to vector<5x8xf32>
    %183 = vector.extract_strided_slice %160 {offsets = [0, 8], sizes = [5, 8], strides = [1, 1]} : vector<5x16xf32> to vector<5x8xf32>
    %cst_71 = arith.constant dense<0.000000e+00> : vector<5x5xf32>
    %184 = tpu.matmul %181, %182, %cst_71 {dimension_numbers = #tpu.dot_dimension_numbers<[1], [1], [0], [0], [0, 0, 1, 0], [], []>} : vector<5x8xf32>, vector<5x8xf32>, vector<5x5xf32> -> vector<5x5xf32>
    %cst_72 = arith.constant dense<0xFF800000> : vector<5xf32>
    %185 = vector.multi_reduction <maximumf>, %184, %cst_72 [1] : vector<5x5xf32> to vector<5xf32>
    %186 = vector.shape_cast %185 : vector<5xf32> to vector<5x1xf32>
    %187 = vector.broadcast %186 : vector<5x1xf32> to vector<5x5xf32>
    %188 = arith.subf %184, %187 : vector<5x5xf32>
    %189 = math.exp %188 : vector<5x5xf32>
    %cst_73 = arith.constant dense<0.000000e+00> : vector<5xf32>
    %190 = vector.multi_reduction <add>, %189, %cst_73 [1] : vector<5x5xf32> to vector<5xf32>
    %191 = vector.shape_cast %190 : vector<5xf32> to vector<5x1xf32>
    %192 = tpu.reciprocal %191 {approx = true} : vector<5x1xf32> -> vector<5x1xf32>
    %193 = vector.broadcast %192 : vector<5x1xf32> to vector<5x5xf32>
    %194 = arith.mulf %189, %193 : vector<5x5xf32>
    %cst_74 = arith.constant dense<0.000000e+00> : vector<5x8xf32>
    %195 = tpu.matmul %194, %183, %cst_74 {dimension_numbers = #tpu.dot_dimension_numbers<[1], [0], [0], [1], [0, 0, 1, 1], [], []>} : vector<5x5xf32>, vector<5x8xf32>, vector<5x8xf32> -> vector<5x8xf32>
    %c5_75 = arith.constant 5 : index
    %c8_76 = arith.constant 8 : index
    %196 = vector.load %arg23[%c5_75, %c8_76] : memref<10x16xf32, #tpu.memory_space<vmem>>, vector<5x8xf32>
    tpu.vector_store %arg23[%c5_75, %c8_76], %195 {strides = array<i32>} : memref<10x16xf32, #tpu.memory_space<vmem>>, vector<5x8xf32>,
    %c0_77 = arith.constant 0 : index
    %c0_78 = arith.constant 0 : index
    %197 = vector.load %arg23[%c0_77, %c0_78] : memref<10x16xf32, #tpu.memory_space<vmem>>, vector<10x16xf32>
    %c0_79 = arith.constant 0 : index
    %c0_80 = arith.constant 0 : index
    %c0_81 = arith.constant 0 : index
    %198 = vector.load %arg9[%c0_79, %c0_80, %c0_81] : memref<2x16x16xf32, #tpu.memory_space<vmem>>, vector<1x16x16xf32>
    %199 = vector.shape_cast %198 : vector<1x16x16xf32> to vector<16x16xf32>
    %cst_82 = arith.constant dense<0.000000e+00> : vector<10x16xf32>
    %200 = tpu.matmul %197, %199, %cst_82 {dimension_numbers = #tpu.dot_dimension_numbers<[1], [0], [0], [1], [0, 0, 1, 1], [], []>} : vector<10x16xf32>, vector<16x16xf32>, vector<10x16xf32> -> vector<10x16xf32>
    %c0_83 = arith.constant 0 : index
    %c0_84 = arith.constant 0 : index
    %c0_85 = arith.constant 0 : index
    %201 = vector.load %arg10[%c0_83, %c0_84, %c0_85] : memref<2x1x16xf32, #tpu.memory_space<vmem>>, vector<1x1x16xf32>
    %202 = vector.shape_cast %201 : vector<1x1x16xf32> to vector<1x16xf32>
    %203 = vector.broadcast %202 : vector<1x16xf32> to vector<10x16xf32>
    %204 = arith.addf %200, %203 : vector<10x16xf32>
    %205 = arith.addf %85, %204 : vector<10x16xf32>
    %cst_86 = arith.constant dense<0.000000e+00> : vector<10xf32>
    %206 = vector.multi_reduction <add>, %205, %cst_86 [1] : vector<10x16xf32> to vector<10xf32>
    %207 = vector.shape_cast %206 : vector<10xf32> to vector<10x1xf32>
    %cst_87 = arith.constant 1.600000e+01 : f32
    %208 = vector.broadcast %cst_87 : f32 to vector<10x1xf32>
    %209 = arith.divf %207, %208 : vector<10x1xf32>
    %210 = vector.broadcast %209 : vector<10x1xf32> to vector<10x16xf32>
    %211 = arith.subf %205, %210 : vector<10x16xf32>
    %212 = arith.mulf %211, %211 : vector<10x16xf32>
    %cst_88 = arith.constant dense<0.000000e+00> : vector<10xf32>
    %213 = vector.multi_reduction <add>, %212, %cst_88 [1] : vector<10x16xf32> to vector<10xf32>
    %214 = vector.shape_cast %213 : vector<10xf32> to vector<10x1xf32>
    %cst_89 = arith.constant 1.600000e+01 : f32
    %215 = vector.broadcast %cst_89 : f32 to vector<10x1xf32>
    %216 = arith.divf %214, %215 : vector<10x1xf32>
    %217 = vector.broadcast %209 : vector<10x1xf32> to vector<10x16xf32>
    %218 = arith.subf %205, %217 : vector<10x16xf32>
    %cst_90 = arith.constant 9.99999974E-6 : f32
    %219 = vector.broadcast %cst_90 : f32 to vector<10x1xf32>
    %220 = arith.addf %216, %219 : vector<10x1xf32>
    %221 = math.rsqrt %220 : vector<10x1xf32>
    %222 = vector.broadcast %221 : vector<10x1xf32> to vector<10x16xf32>
    %223 = arith.mulf %218, %222 : vector<10x16xf32>
    %224 = vector.broadcast %87 : vector<1x16xf32> to vector<10x16xf32>
    %225 = arith.mulf %223, %224 : vector<10x16xf32>
    %226 = vector.broadcast %89 : vector<1x16xf32> to vector<10x16xf32>
    %227 = arith.addf %225, %226 : vector<10x16xf32>
    %c0_91 = arith.constant 0 : index
    %c0_92 = arith.constant 0 : index
    %c0_93 = arith.constant 0 : index
    %228 = vector.load %arg11[%c0_91, %c0_92, %c0_93] : memref<2x16x32xf32, #tpu.memory_space<vmem>>, vector<1x16x32xf32>
    %229 = vector.shape_cast %228 : vector<1x16x32xf32> to vector<16x32xf32>
    %cst_94 = arith.constant dense<0.000000e+00> : vector<10x32xf32>
    %230 = tpu.matmul %227, %229, %cst_94 {dimension_numbers = #tpu.dot_dimension_numbers<[1], [0], [0], [1], [0, 0, 1, 1], [], []>} : vector<10x16xf32>, vector<16x32xf32>, vector<10x32xf32> -> vector<10x32xf32>
    %c0_95 = arith.constant 0 : index
    %c0_96 = arith.constant 0 : index
    %c0_97 = arith.constant 0 : index
    %231 = vector.load %arg12[%c0_95, %c0_96, %c0_97] : memref<2x1x32xf32, #tpu.memory_space<vmem>>, vector<1x1x32xf32>
    %232 = vector.shape_cast %231 : vector<1x1x32xf32> to vector<1x32xf32>
    %233 = vector.broadcast %232 : vector<1x32xf32> to vector<10x32xf32>
    %234 = arith.addf %230, %233 : vector<10x32xf32>
    %cst_98 = arith.constant 5.000000e-01 : f32
    %235 = vector.broadcast %cst_98 : f32 to vector<10x32xf32>
    %236 = arith.mulf %235, %234 : vector<10x32xf32>
    %cst_99 = arith.constant 0.707106769 : f32
    %237 = vector.broadcast %cst_99 : f32 to vector<10x32xf32>
    %238 = arith.mulf %234, %237 : vector<10x32xf32>
    %cst_100 = arith.constant 0.000000e+00 : f32
    %239 = vector.broadcast %cst_100 : f32 to vector<10x32xf32>
    %240 = arith.cmpf oge, %238, %239 : vector<10x32xf32>
    %cst_101 = arith.constant 1.000000e+00 : f32
    %cst_102 = arith.constant -1.000000e+00 : f32
    %241 = vector.broadcast %cst_101 : f32 to vector<10x32xf32>
    %242 = vector.broadcast %cst_102 : f32 to vector<10x32xf32>
    %243 = arith.select %240, %241, %242 : vector<10x32xi1>, vector<10x32xf32>
    %244 = math.absf %238 : vector<10x32xf32>
    %cst_103 = arith.constant 0.327591091 : f32
    %245 = vector.broadcast %cst_103 : f32 to vector<10x32xf32>
    %246 = arith.mulf %245, %244 : vector<10x32xf32>
    %cst_104 = arith.constant 1.000000e+00 : f32
    %247 = vector.broadcast %cst_104 : f32 to vector<10x32xf32>
    %248 = arith.addf %247, %246 : vector<10x32xf32>
    %cst_105 = arith.constant 1.000000e+00 : f32
    %249 = vector.broadcast %cst_105 : f32 to vector<10x32xf32>
    %250 = arith.divf %249, %248 : vector<10x32xf32>
    %cst_106 = arith.constant 1.06140542 : f32
    %251 = vector.broadcast %cst_106 : f32 to vector<10x32xf32>
    %252 = arith.mulf %251, %250 : vector<10x32xf32>
    %cst_107 = arith.constant -1.45315206 : f32
    %253 = vector.broadcast %cst_107 : f32 to vector<10x32xf32>
    %254 = arith.addf %252, %253 : vector<10x32xf32>
    %255 = arith.mulf %254, %250 : vector<10x32xf32>
    %cst_108 = arith.constant 1.42141378 : f32
    %256 = vector.broadcast %cst_108 : f32 to vector<10x32xf32>
    %257 = arith.addf %255, %256 : vector<10x32xf32>
    %258 = arith.mulf %257, %250 : vector<10x32xf32>
    %cst_109 = arith.constant -0.284496725 : f32
    %259 = vector.broadcast %cst_109 : f32 to vector<10x32xf32>
    %260 = arith.addf %258, %259 : vector<10x32xf32>
    %261 = arith.mulf %260, %250 : vector<10x32xf32>
    %cst_110 = arith.constant 0.254829586 : f32
    %262 = vector.broadcast %cst_110 : f32 to vector<10x32xf32>
    %263 = arith.addf %261, %262 : vector<10x32xf32>
    %264 = arith.mulf %263, %250 : vector<10x32xf32>
    %cst_111 = arith.constant 0.000000e+00 : f32
    %265 = vector.broadcast %cst_111 : f32 to vector<10x32xf32>
    %266 = arith.subf %265, %244 : vector<10x32xf32>
    %267 = arith.mulf %266, %244 : vector<10x32xf32>
    %268 = math.exp %267 : vector<10x32xf32>
    %269 = arith.mulf %264, %268 : vector<10x32xf32>
    %cst_112 = arith.constant 1.000000e+00 : f32
    %270 = vector.broadcast %cst_112 : f32 to vector<10x32xf32>
    %271 = arith.subf %270, %269 : vector<10x32xf32>
    %272 = arith.mulf %243, %271 : vector<10x32xf32>
    %cst_113 = arith.constant 1.000000e+00 : f32
    %273 = vector.broadcast %cst_113 : f32 to vector<10x32xf32>
    %274 = arith.addf %273, %272 : vector<10x32xf32>
    %275 = arith.mulf %236, %274 : vector<10x32xf32>
    %c0_114 = arith.constant 0 : index
    %c0_115 = arith.constant 0 : index
    %c0_116 = arith.constant 0 : index
    %276 = vector.load %arg13[%c0_114, %c0_115, %c0_116] : memref<2x32x16xf32, #tpu.memory_space<vmem>>, vector<1x32x16xf32>
    %277 = vector.shape_cast %276 : vector<1x32x16xf32> to vector<32x16xf32>
    %cst_117 = arith.constant dense<0.000000e+00> : vector<10x16xf32>
    %278 = tpu.matmul %275, %277, %cst_117 {dimension_numbers = #tpu.dot_dimension_numbers<[1], [0], [0], [1], [0, 0, 1, 1], [], []>} : vector<10x32xf32>, vector<32x16xf32>, vector<10x16xf32> -> vector<10x16xf32>
    %c0_118 = arith.constant 0 : index
    %c0_119 = arith.constant 0 : index
    %c0_120 = arith.constant 0 : index
    %279 = vector.load %arg14[%c0_118, %c0_119, %c0_120] : memref<2x1x16xf32, #tpu.memory_space<vmem>>, vector<1x1x16xf32>
    %280 = vector.shape_cast %279 : vector<1x1x16xf32> to vector<1x16xf32>
    %281 = vector.broadcast %280 : vector<1x16xf32> to vector<10x16xf32>
    %282 = arith.addf %278, %281 : vector<10x16xf32>
    %283 = arith.addf %205, %282 : vector<10x16xf32>
    %c1_121 = arith.constant 1 : index
    %c0_122 = arith.constant 0 : index
    %c0_123 = arith.constant 0 : index
    %284 = vector.load %arg5[%c1_121, %c0_122, %c0_123] : memref<2x1x16xf32, #tpu.memory_space<vmem>>, vector<1x1x16xf32>
    %285 = vector.shape_cast %284 : vector<1x1x16xf32> to vector<1x16xf32>
    %c1_124 = arith.constant 1 : index
    %c0_125 = arith.constant 0 : index
    %c0_126 = arith.constant 0 : index
    %286 = vector.load %arg6[%c1_124, %c0_125, %c0_126] : memref<2x1x16xf32, #tpu.memory_space<vmem>>, vector<1x1x16xf32>
    %287 = vector.shape_cast %286 : vector<1x1x16xf32> to vector<1x16xf32>
    %cst_127 = arith.constant dense<0.000000e+00> : vector<10xf32>
    %288 = vector.multi_reduction <add>, %283, %cst_127 [1] : vector<10x16xf32> to vector<10xf32>
    %289 = vector.shape_cast %288 : vector<10xf32> to vector<10x1xf32>
    %cst_128 = arith.constant 1.600000e+01 : f32
    %290 = vector.broadcast %cst_128 : f32 to vector<10x1xf32>
    %291 = arith.divf %289, %290 : vector<10x1xf32>
    %292 = vector.broadcast %291 : vector<10x1xf32> to vector<10x16xf32>
    %293 = arith.subf %283, %292 : vector<10x16xf32>
    %294 = arith.mulf %293, %293 : vector<10x16xf32>
    %cst_129 = arith.constant dense<0.000000e+00> : vector<10xf32>
    %295 = vector.multi_reduction <add>, %294, %cst_129 [1] : vector<10x16xf32> to vector<10xf32>
    %296 = vector.shape_cast %295 : vector<10xf32> to vector<10x1xf32>
    %cst_130 = arith.constant 1.600000e+01 : f32
    %297 = vector.broadcast %cst_130 : f32 to vector<10x1xf32>
    %298 = arith.divf %296, %297 : vector<10x1xf32>
    %299 = vector.broadcast %291 : vector<10x1xf32> to vector<10x16xf32>
    %300 = arith.subf %283, %299 : vector<10x16xf32>
    %cst_131 = arith.constant 9.99999974E-6 : f32
    %301 = vector.broadcast %cst_131 : f32 to vector<10x1xf32>
    %302 = arith.addf %298, %301 : vector<10x1xf32>
    %303 = math.rsqrt %302 : vector<10x1xf32>
    %304 = vector.broadcast %303 : vector<10x1xf32> to vector<10x16xf32>
    %305 = arith.mulf %300, %304 : vector<10x16xf32>
    %306 = vector.broadcast %285 : vector<1x16xf32> to vector<10x16xf32>
    %307 = arith.mulf %305, %306 : vector<10x16xf32>
    %308 = vector.broadcast %287 : vector<1x16xf32> to vector<10x16xf32>
    %309 = arith.addf %307, %308 : vector<10x16xf32>
    %c1_132 = arith.constant 1 : index
    %c0_133 = arith.constant 0 : index
    %c0_134 = arith.constant 0 : index
    %310 = vector.load %arg7[%c1_132, %c0_133, %c0_134] : memref<2x16x48xf32, #tpu.memory_space<vmem>>, vector<1x16x48xf32>
    %311 = vector.shape_cast %310 : vector<1x16x48xf32> to vector<16x48xf32>
    %cst_135 = arith.constant dense<0.000000e+00> : vector<10x48xf32>
    %312 = tpu.matmul %309, %311, %cst_135 {dimension_numbers = #tpu.dot_dimension_numbers<[1], [0], [0], [1], [0, 0, 1, 1], [], []>} : vector<10x16xf32>, vector<16x48xf32>, vector<10x48xf32> -> vector<10x48xf32>
    %c1_136 = arith.constant 1 : index
    %c0_137 = arith.constant 0 : index
    %c0_138 = arith.constant 0 : index
    %313 = vector.load %arg8[%c1_136, %c0_137, %c0_138] : memref<2x1x48xf32, #tpu.memory_space<vmem>>, vector<1x1x48xf32>
    %314 = vector.shape_cast %313 : vector<1x1x48xf32> to vector<1x48xf32>
    %315 = vector.broadcast %314 : vector<1x48xf32> to vector<10x48xf32>
    %316 = arith.addf %312, %315 : vector<10x48xf32>
    %317 = vector.extract_strided_slice %316 {offsets = [0, 0], sizes = [5, 16], strides = [1, 1]} : vector<10x48xf32> to vector<5x16xf32>
    %318 = vector.extract_strided_slice %316 {offsets = [0, 16], sizes = [5, 16], strides = [1, 1]} : vector<10x48xf32> to vector<5x16xf32>
    %319 = vector.extract_strided_slice %316 {offsets = [0, 32], sizes = [5, 16], strides = [1, 1]} : vector<10x48xf32> to vector<5x16xf32>
    %320 = vector.extract_strided_slice %317 {offsets = [0, 0], sizes = [5, 8], strides = [1, 1]} : vector<5x16xf32> to vector<5x8xf32>
    %cst_139 = arith.constant 0.353553385 : f32
    %321 = vector.broadcast %cst_139 : f32 to vector<5x8xf32>
    %322 = arith.mulf %320, %321 : vector<5x8xf32>
    %323 = vector.extract_strided_slice %318 {offsets = [0, 0], sizes = [5, 8], strides = [1, 1]} : vector<5x16xf32> to vector<5x8xf32>
    %324 = vector.extract_strided_slice %319 {offsets = [0, 0], sizes = [5, 8], strides = [1, 1]} : vector<5x16xf32> to vector<5x8xf32>
    %cst_140 = arith.constant dense<0.000000e+00> : vector<5x5xf32>
    %325 = tpu.matmul %322, %323, %cst_140 {dimension_numbers = #tpu.dot_dimension_numbers<[1], [1], [0], [0], [0, 0, 1, 0], [], []>} : vector<5x8xf32>, vector<5x8xf32>, vector<5x5xf32> -> vector<5x5xf32>
    %cst_141 = arith.constant dense<0xFF800000> : vector<5xf32>
    %326 = vector.multi_reduction <maximumf>, %325, %cst_141 [1] : vector<5x5xf32> to vector<5xf32>
    %327 = vector.shape_cast %326 : vector<5xf32> to vector<5x1xf32>
    %328 = vector.broadcast %327 : vector<5x1xf32> to vector<5x5xf32>
    %329 = arith.subf %325, %328 : vector<5x5xf32>
    %330 = math.exp %329 : vector<5x5xf32>
    %cst_142 = arith.constant dense<0.000000e+00> : vector<5xf32>
    %331 = vector.multi_reduction <add>, %330, %cst_142 [1] : vector<5x5xf32> to vector<5xf32>
    %332 = vector.shape_cast %331 : vector<5xf32> to vector<5x1xf32>
    %333 = tpu.reciprocal %332 {approx = true} : vector<5x1xf32> -> vector<5x1xf32>
    %334 = vector.broadcast %333 : vector<5x1xf32> to vector<5x5xf32>
    %335 = arith.mulf %330, %334 : vector<5x5xf32>
    %cst_143 = arith.constant dense<0.000000e+00> : vector<5x8xf32>
    %336 = tpu.matmul %335, %324, %cst_143 {dimension_numbers = #tpu.dot_dimension_numbers<[1], [0], [0], [1], [0, 0, 1, 1], [], []>} : vector<5x5xf32>, vector<5x8xf32>, vector<5x8xf32> -> vector<5x8xf32>
    %c0_144 = arith.constant 0 : index
    %c0_145 = arith.constant 0 : index
    %337 = vector.load %arg23[%c0_144, %c0_145] : memref<10x16xf32, #tpu.memory_space<vmem>>, vector<5x8xf32>
    tpu.vector_store %arg23[%c0_144, %c0_145], %336 {strides = array<i32>} : memref<10x16xf32, #tpu.memory_space<vmem>>, vector<5x8xf32>,
    %338 = vector.extract_strided_slice %317 {offsets = [0, 8], sizes = [5, 8], strides = [1, 1]} : vector<5x16xf32> to vector<5x8xf32>
    %cst_146 = arith.constant 0.353553385 : f32
    %339 = vector.broadcast %cst_146 : f32 to vector<5x8xf32>
    %340 = arith.mulf %338, %339 : vector<5x8xf32>
    %341 = vector.extract_strided_slice %318 {offsets = [0, 8], sizes = [5, 8], strides = [1, 1]} : vector<5x16xf32> to vector<5x8xf32>
    %342 = vector.extract_strided_slice %319 {offsets = [0, 8], sizes = [5, 8], strides = [1, 1]} : vector<5x16xf32> to vector<5x8xf32>
    %cst_147 = arith.constant dense<0.000000e+00> : vector<5x5xf32>
    %343 = tpu.matmul %340, %341, %cst_147 {dimension_numbers = #tpu.dot_dimension_numbers<[1], [1], [0], [0], [0, 0, 1, 0], [], []>} : vector<5x8xf32>, vector<5x8xf32>, vector<5x5xf32> -> vector<5x5xf32>
    %cst_148 = arith.constant dense<0xFF800000> : vector<5xf32>
    %344 = vector.multi_reduction <maximumf>, %343, %cst_148 [1] : vector<5x5xf32> to vector<5xf32>
    %345 = vector.shape_cast %344 : vector<5xf32> to vector<5x1xf32>
    %346 = vector.broadcast %345 : vector<5x1xf32> to vector<5x5xf32>
    %347 = arith.subf %343, %346 : vector<5x5xf32>
    %348 = math.exp %347 : vector<5x5xf32>
    %cst_149 = arith.constant dense<0.000000e+00> : vector<5xf32>
    %349 = vector.multi_reduction <add>, %348, %cst_149 [1] : vector<5x5xf32> to vector<5xf32>
    %350 = vector.shape_cast %349 : vector<5xf32> to vector<5x1xf32>
    %351 = tpu.reciprocal %350 {approx = true} : vector<5x1xf32> -> vector<5x1xf32>
    %352 = vector.broadcast %351 : vector<5x1xf32> to vector<5x5xf32>
    %353 = arith.mulf %348, %352 : vector<5x5xf32>
    %cst_150 = arith.constant dense<0.000000e+00> : vector<5x8xf32>
    %354 = tpu.matmul %353, %342, %cst_150 {dimension_numbers = #tpu.dot_dimension_numbers<[1], [0], [0], [1], [0, 0, 1, 1], [], []>} : vector<5x5xf32>, vector<5x8xf32>, vector<5x8xf32> -> vector<5x8xf32>
    %c0_151 = arith.constant 0 : index
    %c8_152 = arith.constant 8 : index
    %355 = vector.load %arg23[%c0_151, %c8_152] : memref<10x16xf32, #tpu.memory_space<vmem>>, vector<5x8xf32>
    tpu.vector_store %arg23[%c0_151, %c8_152], %354 {strides = array<i32>} : memref<10x16xf32, #tpu.memory_space<vmem>>, vector<5x8xf32>,
    %356 = vector.extract_strided_slice %316 {offsets = [5, 0], sizes = [5, 16], strides = [1, 1]} : vector<10x48xf32> to vector<5x16xf32>
    %357 = vector.extract_strided_slice %316 {offsets = [5, 16], sizes = [5, 16], strides = [1, 1]} : vector<10x48xf32> to vector<5x16xf32>
    %358 = vector.extract_strided_slice %316 {offsets = [5, 32], sizes = [5, 16], strides = [1, 1]} : vector<10x48xf32> to vector<5x16xf32>
    %359 = vector.extract_strided_slice %356 {offsets = [0, 0], sizes = [5, 8], strides = [1, 1]} : vector<5x16xf32> to vector<5x8xf32>
    %cst_153 = arith.constant 0.353553385 : f32
    %360 = vector.broadcast %cst_153 : f32 to vector<5x8xf32>
    %361 = arith.mulf %359, %360 : vector<5x8xf32>
    %362 = vector.extract_strided_slice %357 {offsets = [0, 0], sizes = [5, 8], strides = [1, 1]} : vector<5x16xf32> to vector<5x8xf32>
    %363 = vector.extract_strided_slice %358 {offsets = [0, 0], sizes = [5, 8], strides = [1, 1]} : vector<5x16xf32> to vector<5x8xf32>
    %cst_154 = arith.constant dense<0.000000e+00> : vector<5x5xf32>
    %364 = tpu.matmul %361, %362, %cst_154 {dimension_numbers = #tpu.dot_dimension_numbers<[1], [1], [0], [0], [0, 0, 1, 0], [], []>} : vector<5x8xf32>, vector<5x8xf32>, vector<5x5xf32> -> vector<5x5xf32>
    %cst_155 = arith.constant dense<0xFF800000> : vector<5xf32>
    %365 = vector.multi_reduction <maximumf>, %364, %cst_155 [1] : vector<5x5xf32> to vector<5xf32>
    %366 = vector.shape_cast %365 : vector<5xf32> to vector<5x1xf32>
    %367 = vector.broadcast %366 : vector<5x1xf32> to vector<5x5xf32>
    %368 = arith.subf %364, %367 : vector<5x5xf32>
    %369 = math.exp %368 : vector<5x5xf32>
    %cst_156 = arith.constant dense<0.000000e+00> : vector<5xf32>
    %370 = vector.multi_reduction <add>, %369, %cst_156 [1] : vector<5x5xf32> to vector<5xf32>
    %371 = vector.shape_cast %370 : vector<5xf32> to vector<5x1xf32>
    %372 = tpu.reciprocal %371 {approx = true} : vector<5x1xf32> -> vector<5x1xf32>
    %373 = vector.broadcast %372 : vector<5x1xf32> to vector<5x5xf32>
    %374 = arith.mulf %369, %373 : vector<5x5xf32>
    %cst_157 = arith.constant dense<0.000000e+00> : vector<5x8xf32>
    %375 = tpu.matmul %374, %363, %cst_157 {dimension_numbers = #tpu.dot_dimension_numbers<[1], [0], [0], [1], [0, 0, 1, 1], [], []>} : vector<5x5xf32>, vector<5x8xf32>, vector<5x8xf32> -> vector<5x8xf32>
    %c5_158 = arith.constant 5 : index
    %c0_159 = arith.constant 0 : index
    %376 = vector.load %arg23[%c5_158, %c0_159] : memref<10x16xf32, #tpu.memory_space<vmem>>, vector<5x8xf32>
    tpu.vector_store %arg23[%c5_158, %c0_159], %375 {strides = array<i32>} : memref<10x16xf32, #tpu.memory_space<vmem>>, vector<5x8xf32>,
    %377 = vector.extract_strided_slice %356 {offsets = [0, 8], sizes = [5, 8], strides = [1, 1]} : vector<5x16xf32> to vector<5x8xf32>
    %cst_160 = arith.constant 0.353553385 : f32
    %378 = vector.broadcast %cst_160 : f32 to vector<5x8xf32>
    %379 = arith.mulf %377, %378 : vector<5x8xf32>
    %380 = vector.extract_strided_slice %357 {offsets = [0, 8], sizes = [5, 8], strides = [1, 1]} : vector<5x16xf32> to vector<5x8xf32>
    %381 = vector.extract_strided_slice %358 {offsets = [0, 8], sizes = [5, 8], strides = [1, 1]} : vector<5x16xf32> to vector<5x8xf32>
    %cst_161 = arith.constant dense<0.000000e+00> : vector<5x5xf32>
    %382 = tpu.matmul %379, %380, %cst_161 {dimension_numbers = #tpu.dot_dimension_numbers<[1], [1], [0], [0], [0, 0, 1, 0], [], []>} : vector<5x8xf32>, vector<5x8xf32>, vector<5x5xf32> -> vector<5x5xf32>
    %cst_162 = arith.constant dense<0xFF800000> : vector<5xf32>
    %383 = vector.multi_reduction <maximumf>, %382, %cst_162 [1] : vector<5x5xf32> to vector<5xf32>
    %384 = vector.shape_cast %383 : vector<5xf32> to vector<5x1xf32>
    %385 = vector.broadcast %384 : vector<5x1xf32> to vector<5x5xf32>
    %386 = arith.subf %382, %385 : vector<5x5xf32>
    %387 = math.exp %386 : vector<5x5xf32>
    %cst_163 = arith.constant dense<0.000000e+00> : vector<5xf32>
    %388 = vector.multi_reduction <add>, %387, %cst_163 [1] : vector<5x5xf32> to vector<5xf32>
    %389 = vector.shape_cast %388 : vector<5xf32> to vector<5x1xf32>
    %390 = tpu.reciprocal %389 {approx = true} : vector<5x1xf32> -> vector<5x1xf32>
    %391 = vector.broadcast %390 : vector<5x1xf32> to vector<5x5xf32>
    %392 = arith.mulf %387, %391 : vector<5x5xf32>
    %cst_164 = arith.constant dense<0.000000e+00> : vector<5x8xf32>
    %393 = tpu.matmul %392, %381, %cst_164 {dimension_numbers = #tpu.dot_dimension_numbers<[1], [0], [0], [1], [0, 0, 1, 1], [], []>} : vector<5x5xf32>, vector<5x8xf32>, vector<5x8xf32> -> vector<5x8xf32>
    %c5_165 = arith.constant 5 : index
    %c8_166 = arith.constant 8 : index
    %394 = vector.load %arg23[%c5_165, %c8_166] : memref<10x16xf32, #tpu.memory_space<vmem>>, vector<5x8xf32>
    tpu.vector_store %arg23[%c5_165, %c8_166], %393 {strides = array<i32>} : memref<10x16xf32, #tpu.memory_space<vmem>>, vector<5x8xf32>,
    %c0_167 = arith.constant 0 : index
    %c0_168 = arith.constant 0 : index
    %395 = vector.load %arg23[%c0_167, %c0_168] : memref<10x16xf32, #tpu.memory_space<vmem>>, vector<10x16xf32>
    %c1_169 = arith.constant 1 : index
    %c0_170 = arith.constant 0 : index
    %c0_171 = arith.constant 0 : index
    %396 = vector.load %arg9[%c1_169, %c0_170, %c0_171] : memref<2x16x16xf32, #tpu.memory_space<vmem>>, vector<1x16x16xf32>
    %397 = vector.shape_cast %396 : vector<1x16x16xf32> to vector<16x16xf32>
    %cst_172 = arith.constant dense<0.000000e+00> : vector<10x16xf32>
    %398 = tpu.matmul %395, %397, %cst_172 {dimension_numbers = #tpu.dot_dimension_numbers<[1], [0], [0], [1], [0, 0, 1, 1], [], []>} : vector<10x16xf32>, vector<16x16xf32>, vector<10x16xf32> -> vector<10x16xf32>
    %c1_173 = arith.constant 1 : index
    %c0_174 = arith.constant 0 : index
    %c0_175 = arith.constant 0 : index
    %399 = vector.load %arg10[%c1_173, %c0_174, %c0_175] : memref<2x1x16xf32, #tpu.memory_space<vmem>>, vector<1x1x16xf32>
    %400 = vector.shape_cast %399 : vector<1x1x16xf32> to vector<1x16xf32>
    %401 = vector.broadcast %400 : vector<1x16xf32> to vector<10x16xf32>
    %402 = arith.addf %398, %401 : vector<10x16xf32>
    %403 = arith.addf %283, %402 : vector<10x16xf32>
    %cst_176 = arith.constant dense<0.000000e+00> : vector<10xf32>
    %404 = vector.multi_reduction <add>, %403, %cst_176 [1] : vector<10x16xf32> to vector<10xf32>
    %405 = vector.shape_cast %404 : vector<10xf32> to vector<10x1xf32>
    %cst_177 = arith.constant 1.600000e+01 : f32
    %406 = vector.broadcast %cst_177 : f32 to vector<10x1xf32>
    %407 = arith.divf %405, %406 : vector<10x1xf32>
    %408 = vector.broadcast %407 : vector<10x1xf32> to vector<10x16xf32>
    %409 = arith.subf %403, %408 : vector<10x16xf32>
    %410 = arith.mulf %409, %409 : vector<10x16xf32>
    %cst_178 = arith.constant dense<0.000000e+00> : vector<10xf32>
    %411 = vector.multi_reduction <add>, %410, %cst_178 [1] : vector<10x16xf32> to vector<10xf32>
    %412 = vector.shape_cast %411 : vector<10xf32> to vector<10x1xf32>
    %cst_179 = arith.constant 1.600000e+01 : f32
    %413 = vector.broadcast %cst_179 : f32 to vector<10x1xf32>
    %414 = arith.divf %412, %413 : vector<10x1xf32>
    %415 = vector.broadcast %407 : vector<10x1xf32> to vector<10x16xf32>
    %416 = arith.subf %403, %415 : vector<10x16xf32>
    %cst_180 = arith.constant 9.99999974E-6 : f32
    %417 = vector.broadcast %cst_180 : f32 to vector<10x1xf32>
    %418 = arith.addf %414, %417 : vector<10x1xf32>
    %419 = math.rsqrt %418 : vector<10x1xf32>
    %420 = vector.broadcast %419 : vector<10x1xf32> to vector<10x16xf32>
    %421 = arith.mulf %416, %420 : vector<10x16xf32>
    %422 = vector.broadcast %285 : vector<1x16xf32> to vector<10x16xf32>
    %423 = arith.mulf %421, %422 : vector<10x16xf32>
    %424 = vector.broadcast %287 : vector<1x16xf32> to vector<10x16xf32>
    %425 = arith.addf %423, %424 : vector<10x16xf32>
    %c1_181 = arith.constant 1 : index
    %c0_182 = arith.constant 0 : index
    %c0_183 = arith.constant 0 : index
    %426 = vector.load %arg11[%c1_181, %c0_182, %c0_183] : memref<2x16x32xf32, #tpu.memory_space<vmem>>, vector<1x16x32xf32>
    %427 = vector.shape_cast %426 : vector<1x16x32xf32> to vector<16x32xf32>
    %cst_184 = arith.constant dense<0.000000e+00> : vector<10x32xf32>
    %428 = tpu.matmul %425, %427, %cst_184 {dimension_numbers = #tpu.dot_dimension_numbers<[1], [0], [0], [1], [0, 0, 1, 1], [], []>} : vector<10x16xf32>, vector<16x32xf32>, vector<10x32xf32> -> vector<10x32xf32>
    %c1_185 = arith.constant 1 : index
    %c0_186 = arith.constant 0 : index
    %c0_187 = arith.constant 0 : index
    %429 = vector.load %arg12[%c1_185, %c0_186, %c0_187] : memref<2x1x32xf32, #tpu.memory_space<vmem>>, vector<1x1x32xf32>
    %430 = vector.shape_cast %429 : vector<1x1x32xf32> to vector<1x32xf32>
    %431 = vector.broadcast %430 : vector<1x32xf32> to vector<10x32xf32>
    %432 = arith.addf %428, %431 : vector<10x32xf32>
    %cst_188 = arith.constant 5.000000e-01 : f32
    %433 = vector.broadcast %cst_188 : f32 to vector<10x32xf32>
    %434 = arith.mulf %433, %432 : vector<10x32xf32>
    %cst_189 = arith.constant 0.707106769 : f32
    %435 = vector.broadcast %cst_189 : f32 to vector<10x32xf32>
    %436 = arith.mulf %432, %435 : vector<10x32xf32>
    %cst_190 = arith.constant 0.000000e+00 : f32
    %437 = vector.broadcast %cst_190 : f32 to vector<10x32xf32>
    %438 = arith.cmpf oge, %436, %437 : vector<10x32xf32>
    %cst_191 = arith.constant 1.000000e+00 : f32
    %cst_192 = arith.constant -1.000000e+00 : f32
    %439 = vector.broadcast %cst_191 : f32 to vector<10x32xf32>
    %440 = vector.broadcast %cst_192 : f32 to vector<10x32xf32>
    %441 = arith.select %438, %439, %440 : vector<10x32xi1>, vector<10x32xf32>
    %442 = math.absf %436 : vector<10x32xf32>
    %cst_193 = arith.constant 0.327591091 : f32
    %443 = vector.broadcast %cst_193 : f32 to vector<10x32xf32>
    %444 = arith.mulf %443, %442 : vector<10x32xf32>
    %cst_194 = arith.constant 1.000000e+00 : f32
    %445 = vector.broadcast %cst_194 : f32 to vector<10x32xf32>
    %446 = arith.addf %445, %444 : vector<10x32xf32>
    %cst_195 = arith.constant 1.000000e+00 : f32
    %447 = vector.broadcast %cst_195 : f32 to vector<10x32xf32>
    %448 = arith.divf %447, %446 : vector<10x32xf32>
    %cst_196 = arith.constant 1.06140542 : f32
    %449 = vector.broadcast %cst_196 : f32 to vector<10x32xf32>
    %450 = arith.mulf %449, %448 : vector<10x32xf32>
    %cst_197 = arith.constant -1.45315206 : f32
    %451 = vector.broadcast %cst_197 : f32 to vector<10x32xf32>
    %452 = arith.addf %450, %451 : vector<10x32xf32>
    %453 = arith.mulf %452, %448 : vector<10x32xf32>
    %cst_198 = arith.constant 1.42141378 : f32
    %454 = vector.broadcast %cst_198 : f32 to vector<10x32xf32>
    %455 = arith.addf %453, %454 : vector<10x32xf32>
    %456 = arith.mulf %455, %448 : vector<10x32xf32>
    %cst_199 = arith.constant -0.284496725 : f32
    %457 = vector.broadcast %cst_199 : f32 to vector<10x32xf32>
    %458 = arith.addf %456, %457 : vector<10x32xf32>
    %459 = arith.mulf %458, %448 : vector<10x32xf32>
    %cst_200 = arith.constant 0.254829586 : f32
    %460 = vector.broadcast %cst_200 : f32 to vector<10x32xf32>
    %461 = arith.addf %459, %460 : vector<10x32xf32>
    %462 = arith.mulf %461, %448 : vector<10x32xf32>
    %cst_201 = arith.constant 0.000000e+00 : f32
    %463 = vector.broadcast %cst_201 : f32 to vector<10x32xf32>
    %464 = arith.subf %463, %442 : vector<10x32xf32>
    %465 = arith.mulf %464, %442 : vector<10x32xf32>
    %466 = math.exp %465 : vector<10x32xf32>
    %467 = arith.mulf %462, %466 : vector<10x32xf32>
    %cst_202 = arith.constant 1.000000e+00 : f32
    %468 = vector.broadcast %cst_202 : f32 to vector<10x32xf32>
    %469 = arith.subf %468, %467 : vector<10x32xf32>
    %470 = arith.mulf %441, %469 : vector<10x32xf32>
    %cst_203 = arith.constant 1.000000e+00 : f32
    %471 = vector.broadcast %cst_203 : f32 to vector<10x32xf32>
    %472 = arith.addf %471, %470 : vector<10x32xf32>
    %473 = arith.mulf %434, %472 : vector<10x32xf32>
    %c1_204 = arith.constant 1 : index
    %c0_205 = arith.constant 0 : index
    %c0_206 = arith.constant 0 : index
    %474 = vector.load %arg13[%c1_204, %c0_205, %c0_206] : memref<2x32x16xf32, #tpu.memory_space<vmem>>, vector<1x32x16xf32>
    %475 = vector.shape_cast %474 : vector<1x32x16xf32> to vector<32x16xf32>
    %cst_207 = arith.constant dense<0.000000e+00> : vector<10x16xf32>
    %476 = tpu.matmul %473, %475, %cst_207 {dimension_numbers = #tpu.dot_dimension_numbers<[1], [0], [0], [1], [0, 0, 1, 1], [], []>} : vector<10x32xf32>, vector<32x16xf32>, vector<10x16xf32> -> vector<10x16xf32>
    %c1_208 = arith.constant 1 : index
    %c0_209 = arith.constant 0 : index
    %c0_210 = arith.constant 0 : index
    %477 = vector.load %arg14[%c1_208, %c0_209, %c0_210] : memref<2x1x16xf32, #tpu.memory_space<vmem>>, vector<1x1x16xf32>
    %478 = vector.shape_cast %477 : vector<1x1x16xf32> to vector<1x16xf32>
    %479 = vector.broadcast %478 : vector<1x16xf32> to vector<10x16xf32>
    %480 = arith.addf %476, %479 : vector<10x16xf32>
    %481 = arith.addf %403, %480 : vector<10x16xf32>
    %c0_211 = arith.constant 0 : index
    %c0_212 = arith.constant 0 : index
    %482 = vector.load %arg15[%c0_211, %c0_212] : memref<16x16xf32, #tpu.memory_space<vmem>>, vector<16x16xf32>
    %cst_213 = arith.constant dense<0.000000e+00> : vector<10x16xf32>
    %483 = tpu.matmul %481, %482, %cst_213 {dimension_numbers = #tpu.dot_dimension_numbers<[1], [0], [0], [1], [0, 0, 1, 1], [], []>} : vector<10x16xf32>, vector<16x16xf32>, vector<10x16xf32> -> vector<10x16xf32>
    %c0_214 = arith.constant 0 : index
    %c0_215 = arith.constant 0 : index
    %484 = vector.load %arg16[%c0_214, %c0_215] : memref<1x16xf32, #tpu.memory_space<vmem>>, vector<1x16xf32>
    %485 = vector.broadcast %484 : vector<1x16xf32> to vector<10x16xf32>
    %486 = arith.addf %483, %485 : vector<10x16xf32>
    %cst_216 = arith.constant 0.000000e+00 : f32
    %487 = vector.broadcast %cst_216 : f32 to vector<10x16xf32>
    %488 = arith.cmpf ogt, %486, %487 : vector<10x16xf32>
    %cst_217 = arith.constant 0.000000e+00 : f32
    %489 = vector.broadcast %cst_217 : f32 to vector<10x16xf32>
    %490 = arith.minimumf %486, %489 : vector<10x16xf32>
    %491 = math.exp %490 : vector<10x16xf32>
    %cst_218 = arith.constant 1.000000e+00 : f32
    %492 = vector.broadcast %cst_218 : f32 to vector<10x16xf32>
    %493 = arith.subf %491, %492 : vector<10x16xf32>
    %494 = arith.select %488, %486, %493 : vector<10x16xi1>, vector<10x16xf32>
    %c0_219 = arith.constant 0 : index
    %c0_220 = arith.constant 0 : index
    %495 = vector.load %arg17[%c0_219, %c0_220] : memref<1x16xf32, #tpu.memory_space<vmem>>, vector<1x16xf32>
    %496 = vector.broadcast %495 : vector<1x16xf32> to vector<10x16xf32>
    %497 = arith.mulf %494, %496 : vector<10x16xf32>
    %c0_221 = arith.constant 0 : index
    %c0_222 = arith.constant 0 : index
    %498 = vector.load %arg18[%c0_221, %c0_222] : memref<1x16xf32, #tpu.memory_space<vmem>>, vector<1x16xf32>
    %499 = vector.broadcast %498 : vector<1x16xf32> to vector<10x16xf32>
    %500 = arith.addf %497, %499 : vector<10x16xf32>
    %501 = vector.extract_strided_slice %500 {offsets = [0, 0], sizes = [1, 16], strides = [1, 1]} : vector<10x16xf32> to vector<1x16xf32>
    %c0_223 = arith.constant 0 : index
    %c0_224 = arith.constant 0 : index
    %502 = vector.load %arg24[%c0_223, %c0_224] : memref<2x80xf32, #tpu.memory_space<vmem>>, vector<1x16xf32>
    tpu.vector_store %arg24[%c0_223, %c0_224], %501 {strides = array<i32>} : memref<2x80xf32, #tpu.memory_space<vmem>>, vector<1x16xf32>,
    %503 = vector.extract_strided_slice %500 {offsets = [1, 0], sizes = [1, 16], strides = [1, 1]} : vector<10x16xf32> to vector<1x16xf32>
    %c0_225 = arith.constant 0 : index
    %c16 = arith.constant 16 : index
    %504 = vector.load %arg24[%c0_225, %c16] : memref<2x80xf32, #tpu.memory_space<vmem>>, vector<1x16xf32>
    tpu.vector_store %arg24[%c0_225, %c16], %503 {strides = array<i32>} : memref<2x80xf32, #tpu.memory_space<vmem>>, vector<1x16xf32>,
    %505 = vector.extract_strided_slice %500 {offsets = [2, 0], sizes = [1, 16], strides = [1, 1]} : vector<10x16xf32> to vector<1x16xf32>
    %c0_226 = arith.constant 0 : index
    %c32 = arith.constant 32 : index
    %506 = vector.load %arg24[%c0_226, %c32] : memref<2x80xf32, #tpu.memory_space<vmem>>, vector<1x16xf32>
    tpu.vector_store %arg24[%c0_226, %c32], %505 {strides = array<i32>} : memref<2x80xf32, #tpu.memory_space<vmem>>, vector<1x16xf32>,
    %507 = vector.extract_strided_slice %500 {offsets = [3, 0], sizes = [1, 16], strides = [1, 1]} : vector<10x16xf32> to vector<1x16xf32>
    %c0_227 = arith.constant 0 : index
    %c48 = arith.constant 48 : index
    %508 = vector.load %arg24[%c0_227, %c48] : memref<2x80xf32, #tpu.memory_space<vmem>>, vector<1x16xf32>
    tpu.vector_store %arg24[%c0_227, %c48], %507 {strides = array<i32>} : memref<2x80xf32, #tpu.memory_space<vmem>>, vector<1x16xf32>,
    %509 = vector.extract_strided_slice %500 {offsets = [4, 0], sizes = [1, 16], strides = [1, 1]} : vector<10x16xf32> to vector<1x16xf32>
    %c0_228 = arith.constant 0 : index
    %c64 = arith.constant 64 : index
    %510 = vector.load %arg24[%c0_228, %c64] : memref<2x80xf32, #tpu.memory_space<vmem>>, vector<1x16xf32>
    tpu.vector_store %arg24[%c0_228, %c64], %509 {strides = array<i32>} : memref<2x80xf32, #tpu.memory_space<vmem>>, vector<1x16xf32>,
    %511 = vector.extract_strided_slice %500 {offsets = [5, 0], sizes = [1, 16], strides = [1, 1]} : vector<10x16xf32> to vector<1x16xf32>
    %c1_229 = arith.constant 1 : index
    %c0_230 = arith.constant 0 : index
    %512 = vector.load %arg24[%c1_229, %c0_230] : memref<2x80xf32, #tpu.memory_space<vmem>>, vector<1x16xf32>
    tpu.vector_store %arg24[%c1_229, %c0_230], %511 {strides = array<i32>} : memref<2x80xf32, #tpu.memory_space<vmem>>, vector<1x16xf32>,
    %513 = vector.extract_strided_slice %500 {offsets = [6, 0], sizes = [1, 16], strides = [1, 1]} : vector<10x16xf32> to vector<1x16xf32>
    %c1_231 = arith.constant 1 : index
    %c16_232 = arith.constant 16 : index
    %514 = vector.load %arg24[%c1_231, %c16_232] : memref<2x80xf32, #tpu.memory_space<vmem>>, vector<1x16xf32>
    tpu.vector_store %arg24[%c1_231, %c16_232], %513 {strides = array<i32>} : memref<2x80xf32, #tpu.memory_space<vmem>>, vector<1x16xf32>,
    %515 = vector.extract_strided_slice %500 {offsets = [7, 0], sizes = [1, 16], strides = [1, 1]} : vector<10x16xf32> to vector<1x16xf32>
    %c1_233 = arith.constant 1 : index
    %c32_234 = arith.constant 32 : index
    %516 = vector.load %arg24[%c1_233, %c32_234] : memref<2x80xf32, #tpu.memory_space<vmem>>, vector<1x16xf32>
    tpu.vector_store %arg24[%c1_233, %c32_234], %515 {strides = array<i32>} : memref<2x80xf32, #tpu.memory_space<vmem>>, vector<1x16xf32>,
    %517 = vector.extract_strided_slice %500 {offsets = [8, 0], sizes = [1, 16], strides = [1, 1]} : vector<10x16xf32> to vector<1x16xf32>
    %c1_235 = arith.constant 1 : index
    %c48_236 = arith.constant 48 : index
    %518 = vector.load %arg24[%c1_235, %c48_236] : memref<2x80xf32, #tpu.memory_space<vmem>>, vector<1x16xf32>
    tpu.vector_store %arg24[%c1_235, %c48_236], %517 {strides = array<i32>} : memref<2x80xf32, #tpu.memory_space<vmem>>, vector<1x16xf32>,
    %519 = vector.extract_strided_slice %500 {offsets = [9, 0], sizes = [1, 16], strides = [1, 1]} : vector<10x16xf32> to vector<1x16xf32>
    %c1_237 = arith.constant 1 : index
    %c64_238 = arith.constant 64 : index
    %520 = vector.load %arg24[%c1_237, %c64_238] : memref<2x80xf32, #tpu.memory_space<vmem>>, vector<1x16xf32>
    tpu.vector_store %arg24[%c1_237, %c64_238], %519 {strides = array<i32>} : memref<2x80xf32, #tpu.memory_space<vmem>>, vector<1x16xf32>,
    %c0_239 = arith.constant 0 : index
    %c0_240 = arith.constant 0 : index
    %521 = vector.load %arg24[%c0_239, %c0_240] : memref<2x80xf32, #tpu.memory_space<vmem>>, vector<2x80xf32>
    %c0_241 = arith.constant 0 : index
    %c0_242 = arith.constant 0 : index
    %522 = vector.load %arg19[%c0_241, %c0_242] : memref<80x432xf32, #tpu.memory_space<vmem>>, vector<80x432xf32>
    %cst_243 = arith.constant dense<0.000000e+00> : vector<2x432xf32>
    %523 = tpu.matmul %521, %522, %cst_243 {dimension_numbers = #tpu.dot_dimension_numbers<[1], [0], [0], [1], [0, 0, 1, 1], [], []>} : vector<2x80xf32>, vector<80x432xf32>, vector<2x432xf32> -> vector<2x432xf32>
    %c0_244 = arith.constant 0 : index
    %c0_245 = arith.constant 0 : index
    %524 = vector.load %arg20[%c0_244, %c0_245] : memref<1x432xf32, #tpu.memory_space<vmem>>, vector<1x432xf32>
    %525 = vector.broadcast %524 : vector<1x432xf32> to vector<2x432xf32>
    %526 = arith.addf %523, %525 : vector<2x432xf32>
    %c0_246 = arith.constant 0 : index
    %c0_247 = arith.constant 0 : index
    %527 = vector.load %arg21[%c0_246, %c0_247] : memref<2x432xf32, #tpu.memory_space<vmem>>, vector<2x432xf32>
    tpu.vector_store %arg21[%c0_246, %c0_247], %526 {strides = array<i32>} : memref<2x432xf32, #tpu.memory_space<vmem>>, vector<2x432xf32>,
    return
  }
}

</mosaic_0001>

<llo_original>
// kernel: forward.1
$region0: #{forward.1}
  #allocation0 [shape = 'u32[]', space=smem, size = 0x4, offset = 0x4, fixed_abs, tag = 'smem constant byte address 0x4 - core index']
  #allocation1 [shape = 'u32[144,128]{1,0:T(1,128)}', space=vmem, size = 0x12000, scoped, tag = 'internal scratch']
  #allocation2 [shape = 'f32[10,16]{1,0:T(8,128)}', space=vmem, size = 0x2000, scoped, tag = 'scratch operand']
  #allocation3 [shape = 'f32[10,16]{1,0:T(8,128)}', space=vmem, size = 0x2000, scoped, tag = 'scratch operand']
  #allocation4 [shape = 'f32[2,80]{1,0:T(2,128)}', space=vmem, size = 0x400, scoped, tag = 'scratch operand']
  %s0 = inlined_call_operand.vmem [shape: f32[2,64], index: 0, kind: input, shape index: {}]
  %s1 = inlined_call_operand.hbm [shape: f32[64,192], index: 1, kind: input, shape index: {}]
  %s2 = inlined_call_operand.hbm [shape: f32[1,192], index: 2, kind: input, shape index: {}]
  %s3 = inlined_call_operand.hbm [shape: f32[16,16], index: 3, kind: input, shape index: {}]
  %s4 = inlined_call_operand.hbm [shape: f32[1,16], index: 4, kind: input, shape index: {}]
  %s5 = inlined_call_operand.vmem [shape: f32[2,1,16], index: 5, kind: input, shape index: {}]
  %s6 = inlined_call_operand.vmem [shape: f32[2,1,16], index: 6, kind: input, shape index: {}]
  %s7 = inlined_call_operand.hbm [shape: f32[2,16,48], index: 7, kind: input, shape index: {}]
  %s8 = inlined_call_operand.hbm [shape: f32[2,1,48], index: 8, kind: input, shape index: {}]
  %s9 = inlined_call_operand.hbm [shape: f32[2,16,16], index: 9, kind: input, shape index: {}]
  %s10 = inlined_call_operand.hbm [shape: f32[2,1,16], index: 10, kind: input, shape index: {}]
  %s11 = inlined_call_operand.hbm [shape: f32[2,16,32], index: 11, kind: input, shape index: {}]
  %s12 = inlined_call_operand.hbm [shape: f32[2,1,32], index: 12, kind: input, shape index: {}]
  %s13 = inlined_call_operand.vmem [shape: f32[2,32,16], index: 13, kind: input, shape index: {}]
  %s14 = inlined_call_operand.hbm [shape: f32[2,1,16], index: 14, kind: input, shape index: {}]
  %s15 = inlined_call_operand.vmem [shape: f32[16,16], index: 15, kind: input, shape index: {}]
  %s16 = inlined_call_operand.vmem [shape: f32[1,16], index: 16, kind: input, shape index: {}]
  %s17 = inlined_call_operand.vmem [shape: f32[1,16], index: 17, kind: input, shape index: {}]
  %s18 = inlined_call_operand.vmem [shape: f32[1,16], index: 18, kind: input, shape index: {}]
  %s19 = inlined_call_operand.hbm [shape: f32[80,432], index: 19, kind: input, shape index: {}]
  %s20 = inlined_call_operand.vmem [shape: f32[1,432], index: 20, kind: input, shape index: {}]
  %s21 = inlined_call_operand.vmem [shape: f32[2,432], index: 21, kind: output, shape index: {}]
  %s22 = sld [smem:[#allocation0]]
  $region142: #{forward.1} parent=0
    _
  %s24 = ssub.s32 1, %s22
  %s25 = scalar_select 0, %s24, %s22
  $region1: #{forward.1} parent=0
    #allocation5 [shape = 'u8[65536]{0}', space=vmem, size = 0x10000, scoped, tag = 'input window, operand 1, single buffered']
    #allocation6 [shape = 's32[1]{0}', space=sflag, size = 0x4, scoped, tag = 'scoped memory for forward.1']
    #allocation7 [shape = 'u8[1024]{0}', space=vmem, size = 0x400, scoped, tag = 'input window, operand 2, single buffered']
    #allocation8 [shape = 's32[1]{0}', space=sflag, size = 0x4, scoped, tag = 'scoped memory for forward.1']
    #allocation9 [shape = 'u8[8192]{0}', space=vmem, size = 0x2000, scoped, tag = 'input window, operand 3, single buffered']
    #allocation10 [shape = 'u8[512]{0}', space=vmem, size = 0x400, scoped, tag = 'input window, operand 4, single buffered']
    #allocation11 [shape = 's32[1]{0}', space=sflag, size = 0x4, scoped, tag = 'scoped memory for forward.1']
    #allocation12 [shape = 'u8[16384]{0}', space=vmem, size = 0x4000, scoped, tag = 'input window, operand 7, single buffered']
    #allocation13 [shape = 'u8[1024]{0}', space=vmem, size = 0x400, scoped, tag = 'input window, operand 8, single buffered']
    #allocation14 [shape = 's32[1]{0}', space=sflag, size = 0x4, scoped, tag = 'scoped memory for forward.1']
    #allocation15 [shape = 'u8[16384]{0}', space=vmem, size = 0x4000, scoped, tag = 'input window, operand 9, single buffered']
    #allocation16 [shape = 'u8[1024]{0}', space=vmem, size = 0x400, scoped, tag = 'input window, operand 10, single buffered']
    #allocation17 [shape = 's32[1]{0}', space=sflag, size = 0x4, scoped, tag = 'scoped memory for forward.1']
    #allocation18 [shape = 'u8[16384]{0}', space=vmem, size = 0x4000, scoped, tag = 'input window, operand 11, single buffered']
    #allocation19 [shape = 'u8[1024]{0}', space=vmem, size = 0x400, scoped, tag = 'input window, operand 12, single buffered']
    #allocation20 [shape = 's32[1]{0}', space=sflag, size = 0x4, scoped, tag = 'scoped memory for forward.1']
    #allocation21 [shape = 'u8[1024]{0}', space=vmem, size = 0x400, scoped, tag = 'input window, operand 14, single buffered']
    #allocation22 [shape = 'u8[163840]{0}', space=vmem, size = 0x28000, scoped, tag = 'input window, operand 19, single buffered']
    #allocation23 [shape = 's32[1]{0}', space=sflag, size = 0x4, scoped, tag = 'scoped memory for forward.1']
    %26 = vsyncpa [#allocation6], 0
    %27 = vsyncpa [#allocation8], 0
    %28 = vsyncpa [#allocation11], 0
    %29 = vsyncpa [#allocation14], 0
    %30 = vsyncpa [#allocation17], 0
    %31 = vsyncpa [#allocation20], 0
    %32 = vsyncpa [#allocation23], 0
    // Predicated region
    $region2: #{forward.1} parent=1 // pred_check
      _
    $region3: #{forward.1} parent=1 // pred_check_branch
      %34 = sbr.rel (0) target = $region5
    $region4: #{forward.1} parent=1 // pred_region
      _
    $region5: #{forward.1} parent=1 // pred_fallthru
      _
    // Predicated region
    $region6: #{forward.1} parent=1 // pred_check
      _
    $region7: #{forward.1} parent=1 // pred_check_branch
      %36 = sbr.rel (0) target = $region9
    $region8: #{forward.1} parent=1 // pred_region
      %s38 = ssub.s32 2048, 2048
      %39 = vsyncadd [#allocation6], %s38
      %s40 = sshll.u32 [#allocation5], 4
      %s41 = int_to_ptr.vmem [resolvable:$true] %s40
      %46 = dma.hbm_to_vmem [thread:$0]  %s1, 2048, %s41, [#allocation6], 256, 256, 16
    $region9: #{forward.1} parent=1 // pred_fallthru
      _
    // Predicated region
    $region10: #{forward.1} parent=1 // pred_check
      _
    $region11: #{forward.1} parent=1 // pred_check_branch
      %48 = sbr.rel (0) target = $region13
    $region12: #{forward.1} parent=1 // pred_region
      %s50 = ssub.s32 32, 32
      %51 = vsyncadd [#allocation8], %s50
      %s53 = sshll.u32 [#allocation7], 4
      %s54 = int_to_ptr.vmem [resolvable:$true] %s53
      %56 = dma.hbm_to_vmem [thread:$0]  %s2, 32, %s54, [#allocation8]
    $region13: #{forward.1} parent=1 // pred_fallthru
      _
    // Predicated region
    $region14: #{forward.1} parent=1 // pred_check
      _
    $region15: #{forward.1} parent=1 // pred_check_branch
      %58 = sbr.rel (0) target = $region17
    $region16: #{forward.1} parent=1 // pred_region
      %s60 = ssub.s32 256, 256
      %61 = vsyncadd [#allocation8], %s60
      %s62 = sshll.u32 [#allocation9], 4
      %s63 = int_to_ptr.vmem [resolvable:$true] %s62
      %68 = dma.hbm_to_vmem [thread:$0]  %s3, 256, %s63, [#allocation8], 128, 128, 8
    $region17: #{forward.1} parent=1 // pred_fallthru
      _
    // Predicated region
    $region18: #{forward.1} parent=1 // pred_check
      _
    $region19: #{forward.1} parent=1 // pred_check_branch
      %70 = sbr.rel (0) target = $region21
    $region20: #{forward.1} parent=1 // pred_region
      %s72 = ssub.s32 16, 16
      %73 = vsyncadd [#allocation11], %s72
      %s75 = sshll.u32 [#allocation10], 4
      %s76 = int_to_ptr.vmem [resolvable:$true] %s75
      %78 = dma.hbm_to_vmem [thread:$0]  %s4, 16, %s76, [#allocation11]
    $region21: #{forward.1} parent=1 // pred_fallthru
      _
    // Predicated region
    $region22: #{forward.1} parent=1 // pred_check
      _
    $region23: #{forward.1} parent=1 // pred_check_branch
      %80 = sbr.rel (0) target = $region25
    $region24: #{forward.1} parent=1 // pred_region
      _
    $region25: #{forward.1} parent=1 // pred_fallthru
      _
    // Predicated region
    $region26: #{forward.1} parent=1 // pred_check
      _
    $region27: #{forward.1} parent=1 // pred_check_branch
      %82 = sbr.rel (0) target = $region29
    $region28: #{forward.1} parent=1 // pred_region
      _
    $region29: #{forward.1} parent=1 // pred_fallthru
      _
    // Predicated region
    $region30: #{forward.1} parent=1 // pred_check
      _
    $region31: #{forward.1} parent=1 // pred_check_branch
      %84 = sbr.rel (0) target = $region33
    $region32: #{forward.1} parent=1 // pred_region
      %s86 = ssub.s32 512, 512
      %87 = vsyncadd [#allocation11], %s86
      %s88 = sshll.u32 [#allocation12], 4
      %s89 = int_to_ptr.vmem [resolvable:$true] %s88
      %94 = dma.hbm_to_vmem [thread:$0]  %s7, 512, %s89, [#allocation11], 128, 128, 8
    $region33: #{forward.1} parent=1 // pred_fallthru
      _
    // Predicated region
    $region34: #{forward.1} parent=1 // pred_check
      _
    $region35: #{forward.1} parent=1 // pred_check_branch
      %96 = sbr.rel (0) target = $region37
    $region36: #{forward.1} parent=1 // pred_region
      %s98 = ssub.s32 32, 32
      %99 = vsyncadd [#allocation14], %s98
      %s100 = sshll.u32 [#allocation13], 4
      %s101 = int_to_ptr.vmem [resolvable:$true] %s100
      %106 = dma.hbm_to_vmem [thread:$0]  %s8, 32, %s101, [#allocation14], 16, 16, 1
    $region37: #{forward.1} parent=1 // pred_fallthru
      _
    // Predicated region
    $region38: #{forward.1} parent=1 // pred_check
      _
    $region39: #{forward.1} parent=1 // pred_check_branch
      %108 = sbr.rel (0) target = $region41
    $region40: #{forward.1} parent=1 // pred_region
      %s110 = ssub.s32 512, 512
      %111 = vsyncadd [#allocation14], %s110
      %s112 = sshll.u32 [#allocation15], 4
      %s113 = int_to_ptr.vmem [resolvable:$true] %s112
      %118 = dma.hbm_to_vmem [thread:$0]  %s9, 512, %s113, [#allocation14], 128, 128, 8
    $region41: #{forward.1} parent=1 // pred_fallthru
      _
    // Predicated region
    $region42: #{forward.1} parent=1 // pred_check
      _
    $region43: #{forward.1} parent=1 // pred_check_branch
      %120 = sbr.rel (0) target = $region45
    $region44: #{forward.1} parent=1 // pred_region
      %s122 = ssub.s32 32, 32
      %123 = vsyncadd [#allocation17], %s122
      %s124 = sshll.u32 [#allocation16], 4
      %s125 = int_to_ptr.vmem [resolvable:$true] %s124
      %130 = dma.hbm_to_vmem [thread:$0]  %s10, 32, %s125, [#allocation17], 16, 16, 1
    $region45: #{forward.1} parent=1 // pred_fallthru
      _
    // Predicated region
    $region46: #{forward.1} parent=1 // pred_check
      _
    $region47: #{forward.1} parent=1 // pred_check_branch
      %132 = sbr.rel (0) target = $region49
    $region48: #{forward.1} parent=1 // pred_region
      %s134 = ssub.s32 512, 512
      %135 = vsyncadd [#allocation17], %s134
      %s136 = sshll.u32 [#allocation18], 4
      %s137 = int_to_ptr.vmem [resolvable:$true] %s136
      %142 = dma.hbm_to_vmem [thread:$0]  %s11, 512, %s137, [#allocation17], 128, 128, 8
    $region49: #{forward.1} parent=1 // pred_fallthru
      _
    // Predicated region
    $region50: #{forward.1} parent=1 // pred_check
      _
    $region51: #{forward.1} parent=1 // pred_check_branch
      %144 = sbr.rel (0) target = $region53
    $region52: #{forward.1} parent=1 // pred_region
      %s146 = ssub.s32 32, 32
      %147 = vsyncadd [#allocation20], %s146
      %s148 = sshll.u32 [#allocation19], 4
      %s149 = int_to_ptr.vmem [resolvable:$true] %s148
      %154 = dma.hbm_to_vmem [thread:$0]  %s12, 32, %s149, [#allocation20], 16, 16, 1
    $region53: #{forward.1} parent=1 // pred_fallthru
      _
    // Predicated region
    $region54: #{forward.1} parent=1 // pred_check
      _
    $region55: #{forward.1} parent=1 // pred_check_branch
      %156 = sbr.rel (0) target = $region57
    $region56: #{forward.1} parent=1 // pred_region
      _
    $region57: #{forward.1} parent=1 // pred_fallthru
      _
    // Predicated region
    $region58: #{forward.1} parent=1 // pred_check
      _
    $region59: #{forward.1} parent=1 // pred_check_branch
      %158 = sbr.rel (0) target = $region61
    $region60: #{forward.1} parent=1 // pred_region
      %s160 = ssub.s32 32, 32
      %161 = vsyncadd [#allocation20], %s160
      %s162 = sshll.u32 [#allocation21], 4
      %s163 = int_to_ptr.vmem [resolvable:$true] %s162
      %168 = dma.hbm_to_vmem [thread:$0]  %s14, 32, %s163, [#allocation20], 16, 16, 1
    $region61: #{forward.1} parent=1 // pred_fallthru
      _
    // Predicated region
    $region62: #{forward.1} parent=1 // pred_check
      _
    $region63: #{forward.1} parent=1 // pred_check_branch
      %170 = sbr.rel (0) target = $region65
    $region64: #{forward.1} parent=1 // pred_region
      _
    $region65: #{forward.1} parent=1 // pred_fallthru
      _
    // Predicated region
    $region66: #{forward.1} parent=1 // pred_check
      _
    $region67: #{forward.1} parent=1 // pred_check_branch
      %172 = sbr.rel (0) target = $region69
    $region68: #{forward.1} parent=1 // pred_region
      _
    $region69: #{forward.1} parent=1 // pred_fallthru
      _
    // Predicated region
    $region70: #{forward.1} parent=1 // pred_check
      _
    $region71: #{forward.1} parent=1 // pred_check_branch
      %174 = sbr.rel (0) target = $region73
    $region72: #{forward.1} parent=1 // pred_region
      _
    $region73: #{forward.1} parent=1 // pred_fallthru
      _
    // Predicated region
    $region74: #{forward.1} parent=1 // pred_check
      _
    $region75: #{forward.1} parent=1 // pred_check_branch
      %176 = sbr.rel (0) target = $region77
    $region76: #{forward.1} parent=1 // pred_region
      _
    $region77: #{forward.1} parent=1 // pred_fallthru
      _
    // Predicated region
    $region78: #{forward.1} parent=1 // pred_check
      _
    $region79: #{forward.1} parent=1 // pred_check_branch
      %178 = sbr.rel (0) target = $region81
    $region80: #{forward.1} parent=1 // pred_region
      %s180 = ssub.s32 5120, 5120
      %181 = vsyncadd [#allocation23], %s180
      %s182 = sshll.u32 [#allocation22], 4
      %s183 = int_to_ptr.vmem [resolvable:$true] %s182
      %188 = dma.hbm_to_vmem [thread:$0]  %s19, 5120, %s183, [#allocation23], 512, 512, 32
    $region81: #{forward.1} parent=1 // pred_fallthru
      _
    // Predicated region
    $region82: #{forward.1} parent=1 // pred_check
      _
    $region83: #{forward.1} parent=1 // pred_check_branch
      %190 = sbr.rel (0) target = $region85
    $region84: #{forward.1} parent=1 // pred_region
      _
    $region85: #{forward.1} parent=1 // pred_fallthru
      _
    // Predicated region
    $region86: #{forward.1} parent=1 // pred_check
      _
    $region87: #{forward.1} parent=1 // pred_check_branch
      %192 = sbr.rel (0) target = $region89
    $region88: #{forward.1} parent=1 // pred_region
      %193 = dma.done [#allocation6], 2048
    $region89: #{forward.1} parent=1 // pred_fallthru
      _
    // Predicated region
    $region90: #{forward.1} parent=1 // pred_check
      _
    $region91: #{forward.1} parent=1 // pred_check_branch
      %195 = sbr.rel (0) target = $region93
    $region92: #{forward.1} parent=1 // pred_region
      %196 = dma.done [#allocation8], 32
    $region93: #{forward.1} parent=1 // pred_fallthru
      _
    // Predicated region
    $region94: #{forward.1} parent=1 // pred_check
      _
    $region95: #{forward.1} parent=1 // pred_check_branch
      %198 = sbr.rel (0) target = $region97
    $region96: #{forward.1} parent=1 // pred_region
      %199 = dma.done [#allocation8], 256
    $region97: #{forward.1} parent=1 // pred_fallthru
      _
    // Predicated region
    $region98: #{forward.1} parent=1 // pred_check
      _
    $region99: #{forward.1} parent=1 // pred_check_branch
      %201 = sbr.rel (0) target = $region101
    $region100: #{forward.1} parent=1 // pred_region
      %202 = dma.done [#allocation11], 16
    $region101: #{forward.1} parent=1 // pred_fallthru
      _
    // Predicated region
    $region102: #{forward.1} parent=1 // pred_check
      _
    $region103: #{forward.1} parent=1 // pred_check_branch
      %204 = sbr.rel (0) target = $region105
    $region104: #{forward.1} parent=1 // pred_region
      %205 = dma.done [#allocation11], 512
    $region105: #{forward.1} parent=1 // pred_fallthru
      _
    // Predicated region
    $region106: #{forward.1} parent=1 // pred_check
      _
    $region107: #{forward.1} parent=1 // pred_check_branch
      %207 = sbr.rel (0) target = $region109
    $region108: #{forward.1} parent=1 // pred_region
      %208 = dma.done [#allocation14], 32
    $region109: #{forward.1} parent=1 // pred_fallthru
      _
    // Predicated region
    $region110: #{forward.1} parent=1 // pred_check
      _
    $region111: #{forward.1} parent=1 // pred_check_branch
      %210 = sbr.rel (0) target = $region113
    $region112: #{forward.1} parent=1 // pred_region
      %211 = dma.done [#allocation14], 512
    $region113: #{forward.1} parent=1 // pred_fallthru
      _
    // Predicated region
    $region114: #{forward.1} parent=1 // pred_check
      _
    $region115: #{forward.1} parent=1 // pred_check_branch
      %213 = sbr.rel (0) target = $region117
    $region116: #{forward.1} parent=1 // pred_region
      %214 = dma.done [#allocation17], 32
    $region117: #{forward.1} parent=1 // pred_fallthru
      _
    // Predicated region
    $region118: #{forward.1} parent=1 // pred_check
      _
    $region119: #{forward.1} parent=1 // pred_check_branch
      %216 = sbr.rel (0) target = $region121
    $region120: #{forward.1} parent=1 // pred_region
      %217 = dma.done [#allocation17], 512
    $region121: #{forward.1} parent=1 // pred_fallthru
      _
    // Predicated region
    $region122: #{forward.1} parent=1 // pred_check
      _
    $region123: #{forward.1} parent=1 // pred_check_branch
      %219 = sbr.rel (0) target = $region125
    $region124: #{forward.1} parent=1 // pred_region
      %220 = dma.done [#allocation20], 32
    $region125: #{forward.1} parent=1 // pred_fallthru
      _
    // Predicated region
    $region126: #{forward.1} parent=1 // pred_check
      _
    $region127: #{forward.1} parent=1 // pred_check_branch
      %222 = sbr.rel (0) target = $region129
    $region128: #{forward.1} parent=1 // pred_region
      %223 = dma.done [#allocation20], 32
    $region129: #{forward.1} parent=1 // pred_fallthru
      _
    // Predicated region
    $region130: #{forward.1} parent=1 // pred_check
      _
    $region131: #{forward.1} parent=1 // pred_check_branch
      %225 = sbr.rel (0) target = $region133
    $region132: #{forward.1} parent=1 // pred_region
      %226 = dma.done [#allocation23], 5120
    $region133: #{forward.1} parent=1 // pred_fallthru
      _
    %v227 = vld [vmem:[%s0] sm:$0x3]
    %v228 = vld [vmem:[#allocation5] sm:$0xff]
    %v229 = vld [vmem:[#allocation5 + $0x8] sm:$0xff]
    %v230 = vld [vmem:[#allocation5 + $0x10] sm:$0xff]
    %v231 = vld [vmem:[#allocation5 + $0x18] sm:$0xff]
    %v232 = vld [vmem:[#allocation5 + $0x20] sm:$0xff]
    %v233 = vld [vmem:[#allocation5 + $0x28] sm:$0xff]
    %v234 = vld [vmem:[#allocation5 + $0x30] sm:$0xff]
    %v235 = vld [vmem:[#allocation5 + $0x38] sm:$0xff]
    %v236 = vld [vmem:[#allocation5 + $0x40] sm:$0xff]
    %v237 = vld [vmem:[#allocation5 + $0x48] sm:$0xff]
    %v238 = vld [vmem:[#allocation5 + $0x50] sm:$0xff]
    %v239 = vld [vmem:[#allocation5 + $0x58] sm:$0xff]
    %v240 = vld [vmem:[#allocation5 + $0x60] sm:$0xff]
    %v241 = vld [vmem:[#allocation5 + $0x68] sm:$0xff]
    %v242 = vld [vmem:[#allocation5 + $0x70] sm:$0xff]
    %v243 = vld [vmem:[#allocation5 + $0x78] sm:$0xff]
    %v244 = vld [vmem:[#allocation7] sm:$0x3]
    %v246 = vlaneseq
    %v247 = vshrl.u32 %v246, 7
    %v248 = vsub.s32 0, %v247
    %v249 = vrot.slane %v244, %v248
    %v250 = vlaneseq
    %v251 = vshrl.u32 %v250, 7
    %v252 = vsub.s32 1, %v251
    %v253 = vrot.slane %v244, %v252
    %vm256 = vcmask 523264
    %v258 = vsel %vm256, %v227, 0
    %260 = vmatprep.subr.mxu0 %v229
    %261 = vmatpush1.msra.mxu0 %v228
    %262 = vmatprep.subr.mxu0 %v231
    %263 = vmatpush1.msra.mxu0 %v230
    %264 = vmatprep.subr.mxu0 %v233
    %265 = vmatpush1.msra.mxu0 %v232
    %266 = vmatprep.subr.mxu0 %v235
    %267 = vmatpush1.msra.mxu0 %v234
    %268 = vmatprep.subr.mxu0 %v237
    %269 = vmatpush1.msra.mxu0 %v236
    %270 = vmatprep.subr.mxu0 %v239
    %271 = vmatpush1.msra.mxu0 %v238
    %272 = vmatprep.subr.mxu0 %v241
    %273 = vmatpush1.msra.mxu0 %v240
    %274 = vmatprep.subr.mxu0 %v243
    %275 = vmatpush1.msra.mxu0 %v242
    %276 = vmatprep.subr.mxu0 0.0
    %277 = vmatpush1.msra.mxu0 0.0
    %278 = vmatprep.subr.mxu0 0.0
    %279 = vmatpush1.msra.mxu0 0.0
    %280 = vmatprep.subr.mxu0 0.0
    %281 = vmatpush1.msra.mxu0 0.0
    %282 = vmatprep.subr.mxu0 0.0
    %283 = vmatpush1.msra.mxu0 0.0
    %284 = vmatprep.subr.mxu0 0.0
    %285 = vmatpush1.msra.mxu0 0.0
    %286 = vmatprep.subr.mxu0 0.0
    %287 = vmatpush1.msra.mxu0 0.0
    %288 = vmatprep.subr.mxu0 0.0
    %289 = vmatpush1.msra.mxu0 0.0
    %290 = vmatprep.subr.mxu0 0.0
    %291 = vmatpush1.msra.mxu0 0.0
    %292 = vmatprep.subr.mxu0 0.0
    %293 = vmatpush1.msra.mxu0 0.0
    %294 = vmatprep.subr.mxu0 0.0
    %295 = vmatpush1.msra.mxu0 0.0
    %296 = vmatprep.subr.mxu0 0.0
    %297 = vmatpush1.msra.mxu0 0.0
    %298 = vmatprep.subr.mxu0 0.0
    %299 = vmatpush1.msra.mxu0 0.0
    %300 = vmatprep.subr.mxu0 0.0
    %301 = vmatpush1.msra.mxu0 0.0
    %302 = vmatprep.subr.mxu0 0.0
    %303 = vmatpush1.msra.mxu0 0.0
    %304 = vmatprep.subr.mxu0 0.0
    %305 = vmatpush1.msra.mxu0 0.0
    %306 = vmatprep.subr.mxu0 0.0
    %307 = vmatpush1.msra.mxu0 0.0
    %308 = vmatprep.subr.mxu0 0.0
    %309 = vmatpush1.msra.mxu0 0.0
    %310 = vmatprep.subr.mxu0 0.0
    %311 = vmatpush1.msra.mxu0 0.0
    %312 = vmatprep.subr.mxu0 0.0
    %313 = vmatpush1.msra.mxu0 0.0
    %314 = vmatprep.subr.mxu0 0.0
    %315 = vmatpush1.msra.mxu0 0.0
    %316 = vmatprep.subr.mxu0 0.0
    %317 = vmatpush1.msra.mxu0 0.0
    %318 = vmatprep.subr.mxu0 0.0
    %319 = vmatpush1.msra.mxu0 0.0
    %320 = vmatprep.subr.mxu0 0.0
    %321 = vmatpush1.msra.mxu0 0.0
    %322 = vmatprep.subr.mxu0 0.0
    %323 = vmatpush1.msra.mxu0 0.0
    %324 = vmatprep.mubr.f32.mxu0 0.0
    %325 = vmatmul.mubr.f32.gmra.mrb[0].mxu0 %v258
    %v326 = vpop.f32.mrb[0].mxu0
    %v327 = vadd.f32 %v249, %v326
    %v328 = vpop.f32.mrb[0].mxu0
    %v329 = vadd.f32 %v253, %v328
    %330 = vdwg.mxu0
    %vm331 = vcmp.gt.f32.partialorder %v327, 0.0
    %vm332 = vcmp.gt.f32.partialorder %v329, 0.0
    %v333 = vmin.f32 %v327, 0.0
    %v334 = vmin.f32 %v329, 0.0
    %v335 = vmul.f32 %v333, 1.442695
    %v336 = vpow.pop %v335
    %v337 = vmul.f32 %v334, 1.442695
    %v338 = vpow.pop %v337
    %v339 = vsub.f32 %v336, 1.0
    %v340 = vsub.f32 %v338, 1.0
    %v341 = vsel %vm331, %v327, %v339
    %v342 = vsel %vm332, %v329, %v340
    %344 = vrot.lane.b32.xlu0 %v341, 112
    %v345 = vpop.permute.xlu0 %344
    %v347 = vadd.f32 %v341, %v345
    %348 = vrot.lane.b32.xlu0 %v341, 96
    %v349 = vpop.permute.xlu0 %348
    %v351 = vadd.f32 %v347, %v349
    %352 = vrot.lane.b32.xlu0 %v341, 80
    %v353 = vpop.permute.xlu0 %352
    %v355 = vadd.f32 %v351, %v353
    %v356 = vmul.f32 %v355, 0.25
    %358 = vrot.lane.b32.xlu0 %v342, 96
    %v359 = vpop.permute.xlu0 %358
    %v361 = vadd.f32 %v347, %v359
    %362 = vrot.lane.b32.xlu0 %v342, 80
    %v363 = vpop.permute.xlu0 %362
    %v365 = vadd.f32 %v361, %v363
    %v366 = vmul.f32 %v365, 0.25
    %367 = vrot.lane.b32.xlu0 %v342, 112
    %v368 = vpop.permute.xlu0 %367
    %v370 = vadd.f32 %v342, %v368
    %v371 = vadd.f32 %v370, %v359
    %v372 = vadd.f32 %v371, %v363
    %v373 = vmul.f32 %v372, 0.25
    %375 = vrot.lane.b32.xlu0 %v356, 112
    %v376 = vpop.permute.xlu0 %375
    %378 = vrot.lane.b32.xlu0 %v356, 96
    %v379 = vpop.permute.xlu0 %378
    %382 = vrot.lane.b32.xlu0 %v366, 80
    %v383 = vpop.permute.xlu0 %382
    %386 = vrot.lane.b32.xlu0 %v373, 64
    %v387 = vpop.permute.xlu0 %386
    %vm389 = vcmask 130048
    %v390 = vsel %vm389, %v356, %v376
    %vm391 = vcmask 261120
    %v392 = vsel %vm391, %v390, %v379
    %vm393 = vcmask 392192
    %v394 = vsel %vm393, %v392, %v383
    %v395 = vsel %vm256, %v394, %v387
    %vm396 = vcmask 122880
    %397 = vst.msk [vmem:[#allocation2] sm:$0x1] %vm396, %v395
    %399 = vrot.lane.b32.xlu0 %v395, 112
    %v400 = vpop.permute.xlu0 %399
    %402 = vst.msk [vmem:[#allocation2 + $0x1] sm:$0x1] %vm396, %v400
    %403 = vrot.lane.b32.xlu0 %v395, 96
    %v404 = vpop.permute.xlu0 %403
    %406 = vst.msk [vmem:[#allocation2 + $0x2] sm:$0x1] %vm396, %v404
    %407 = vrot.lane.b32.xlu0 %v395, 80
    %v408 = vpop.permute.xlu0 %407
    %410 = vst.msk [vmem:[#allocation2 + $0x3] sm:$0x1] %vm396, %v408
    %411 = vrot.lane.b32.xlu0 %v395, 64
    %v412 = vpop.permute.xlu0 %411
    %414 = vst.msk [vmem:[#allocation2 + $0x4] sm:$0x1] %vm396, %v412
    %vm415 = vcmask 123905
    %416 = vst.msk [vmem:[#allocation2 + $0x4] sm:$0x2] %vm415, %v395
    %417 = vst.msk [vmem:[#allocation2 + $0x5] sm:$0x2] %vm415, %v400
    %418 = vst.msk [vmem:[#allocation2 + $0x6] sm:$0x2] %vm415, %v404
    %419 = vst.msk [vmem:[#allocation2 + $0x7] sm:$0x2] %vm415, %v408
    %420 = vst.msk [vmem:[#allocation2 + $0x8] sm:$0x2] %vm415, %v412
    %v421 = vld [vmem:[#allocation2] sm:$0xff]
    %v422 = vld [vmem:[#allocation2 + $0x8] sm:$0x3]
    %v423 = vld [vmem:[#allocation9] sm:$0xff]
    %v424 = vld [vmem:[#allocation9 + $0x8] sm:$0xff]
    %v425 = vld [vmem:[#allocation10] sm:$0x1]
    %v427 = vlaneseq
    %v428 = vshrl.u32 %v427, 7
    %v429 = vsub.s32 0, %v428
    %v430 = vrot.slane %v425, %v429
    %v433 = vsel %vm389, %v421, 0
    %v436 = vsel %vm389, %v422, 0
    %438 = vmatprep.subr.mxu0 0.0
    %439 = vmatpush1.msra.mxu0 %v423
    %440 = vmatprep.subr.mxu0 0.0
    %441 = vmatpush1.msra.mxu0 %v424
    %442 = vmatprep.subr.mxu0 0.0
    %443 = vmatpush1.msra.mxu0 0.0
    %444 = vmatprep.subr.mxu0 0.0
    %445 = vmatpush1.msra.mxu0 0.0
    %446 = vmatprep.subr.mxu0 0.0
    %447 = vmatpush1.msra.mxu0 0.0
    %448 = vmatprep.subr.mxu0 0.0
    %449 = vmatpush1.msra.mxu0 0.0
    %450 = vmatprep.subr.mxu0 0.0
    %451 = vmatpush1.msra.mxu0 0.0
    %452 = vmatprep.subr.mxu0 0.0
    %453 = vmatpush1.msra.mxu0 0.0
    %454 = vmatprep.subr.mxu0 0.0
    %455 = vmatpush1.msra.mxu0 0.0
    %456 = vmatprep.subr.mxu0 0.0
    %457 = vmatpush1.msra.mxu0 0.0
    %458 = vmatprep.subr.mxu0 0.0
    %459 = vmatpush1.msra.mxu0 0.0
    %460 = vmatprep.subr.mxu0 0.0
    %461 = vmatpush1.msra.mxu0 0.0
    %462 = vmatprep.subr.mxu0 0.0
    %463 = vmatpush1.msra.mxu0 0.0
    %464 = vmatprep.subr.mxu0 0.0
    %465 = vmatpush1.msra.mxu0 0.0
    %466 = vmatprep.subr.mxu0 0.0
    %467 = vmatpush1.msra.mxu0 0.0
    %468 = vmatprep.subr.mxu0 0.0
    %469 = vmatpush1.msra.mxu0 0.0
    %470 = vmatprep.subr.mxu0 0.0
    %471 = vmatpush1.msra.mxu0 0.0
    %472 = vmatprep.subr.mxu0 0.0
    %473 = vmatpush1.msra.mxu0 0.0
    %474 = vmatprep.subr.mxu0 0.0
    %475 = vmatpush1.msra.mxu0 0.0
    %476 = vmatprep.subr.mxu0 0.0
    %477 = vmatpush1.msra.mxu0 0.0
    %478 = vmatprep.subr.mxu0 0.0
    %479 = vmatpush1.msra.mxu0 0.0
    %480 = vmatprep.subr.mxu0 0.0
    %481 = vmatpush1.msra.mxu0 0.0
    %482 = vmatprep.subr.mxu0 0.0
    %483 = vmatpush1.msra.mxu0 0.0
    %484 = vmatprep.subr.mxu0 0.0
    %485 = vmatpush1.msra.mxu0 0.0
    %486 = vmatprep.subr.mxu0 0.0
    %487 = vmatpush1.msra.mxu0 0.0
    %488 = vmatprep.subr.mxu0 0.0
    %489 = vmatpush1.msra.mxu0 0.0
    %490 = vmatprep.subr.mxu0 0.0
    %491 = vmatpush1.msra.mxu0 0.0
    %492 = vmatprep.subr.mxu0 0.0
    %493 = vmatpush1.msra.mxu0 0.0
    %494 = vmatprep.subr.mxu0 0.0
    %495 = vmatpush1.msra.mxu0 0.0
    %496 = vmatprep.subr.mxu0 0.0
    %497 = vmatpush1.msra.mxu0 0.0
    %498 = vmatprep.subr.mxu0 0.0
    %499 = vmatpush1.msra.mxu0 0.0
    %500 = vmatprep.subr.mxu0 0.0
    %501 = vmatpush1.msra.mxu0 0.0
    %502 = vmatprep.mubr.f32.mxu0 0.0
    %503 = vmatmul.mubr.f32.gmra.mrb[0].mxu0 %v433
    %v504 = vpop.f32.mrb[0].mxu0
    %v505 = vadd.f32 %v430, %v504
    %v506 = vpop.f32.mrb[0].mxu0
    %507 = vmatprep.mubr.f32.mxu0 0.0
    %508 = vmatmul.mubr.f32.gmra.mrb[0].mxu0 %v436
    %v509 = vpop.f32.mrb[0].mxu0
    %v510 = vadd.f32 %v430, %v509
    %v511 = vpop.f32.mrb[0].mxu0
    %512 = vdwg.mxu0
    %v513 = vld [vmem:[%s5] sm:$0x1]
    %v514 = vld [vmem:[%s6] sm:$0x1]
    %v515 = vsel %vm389, %v505, 0.0
    %516 = vadd.xlane.f32.xlu0 %v515
    %v517 = vpop.xlane.xlu0 %516
    %vm518 = vcmask 123904
    %v519 = vsel %vm518, %v510, 0.0
    %520 = vadd.xlane.f32.xlu0 %v519
    %v521 = vpop.xlane.xlu0 %520
    %v522 = vrcp.pop 16.0
    %v523 = vmul.f32 %v517, %v522
    %v524 = vmul.f32 %v521, %v522
    %v525 = vsub.f32 %v505, %v523
    %v526 = vsub.f32 %v510, %v524
    %v527 = vmul.f32 %v525, %v525
    %v528 = vmul.f32 %v526, %v526
    %v529 = vsel %vm389, %v527, 0.0
    %530 = vadd.xlane.f32.xlu0 %v529
    %v531 = vpop.xlane.xlu0 %530
    %v532 = vsel %vm518, %v528, 0.0
    %533 = vadd.xlane.f32.xlu0 %v532
    %v534 = vpop.xlane.xlu0 %533
    %v535 = vmul.f32 %v531, %v522
    %v536 = vmul.f32 %v534, %v522
    %v537 = vadd.f32 %v535, 1e-05
    %v538 = vadd.f32 %v536, 1e-05
    %v539 = vrsqrt.pop %v537
    %v540 = vrsqrt.pop %v538
    %v541 = vmul.f32 %v525, %v539
    %v542 = vmul.f32 %v526, %v540
    %v544 = vlaneseq
    %v545 = vshrl.u32 %v544, 7
    %v546 = vsub.s32 0, %v545
    %v547 = vrot.slane %v513, %v546
    %v549 = vmul.f32 %v541, %v547
    %v550 = vmul.f32 %v542, %v547
    %v552 = vlaneseq
    %v553 = vshrl.u32 %v552, 7
    %v554 = vsub.s32 0, %v553
    %v555 = vrot.slane %v514, %v554
    %v557 = vadd.f32 %v549, %v555
    %v558 = vadd.f32 %v550, %v555
    %v559 = vld [vmem:[#allocation12] sm:$0xff]
    %v560 = vld [vmem:[#allocation12 + $0x8] sm:$0xff]
    %v561 = vld [vmem:[#allocation13] sm:$0x1]
    %v563 = vlaneseq
    %v564 = vshrl.u32 %v563, 7
    %v565 = vsub.s32 0, %v564
    %v566 = vrot.slane %v561, %v565
    %v569 = vsel %vm389, %v557, 0
    %v572 = vsel %vm389, %v558, 0
    %574 = vmatprep.subr.mxu0 0.0
    %575 = vmatpush1.msra.mxu0 %v559
    %576 = vmatprep.subr.mxu0 0.0
    %577 = vmatpush1.msra.mxu0 %v560
    %578 = vmatprep.subr.mxu0 0.0
    %579 = vmatpush1.msra.mxu0 0.0
    %580 = vmatprep.subr.mxu0 0.0
    %581 = vmatpush1.msra.mxu0 0.0
    %582 = vmatprep.subr.mxu0 0.0
    %583 = vmatpush1.msra.mxu0 0.0
    %584 = vmatprep.subr.mxu0 0.0
    %585 = vmatpush1.msra.mxu0 0.0
    %586 = vmatprep.subr.mxu0 0.0
    %587 = vmatpush1.msra.mxu0 0.0
    %588 = vmatprep.subr.mxu0 0.0
    %589 = vmatpush1.msra.mxu0 0.0
    %590 = vmatprep.subr.mxu0 0.0
    %591 = vmatpush1.msra.mxu0 0.0
    %592 = vmatprep.subr.mxu0 0.0
    %593 = vmatpush1.msra.mxu0 0.0
    %594 = vmatprep.subr.mxu0 0.0
    %595 = vmatpush1.msra.mxu0 0.0
    %596 = vmatprep.subr.mxu0 0.0
    %597 = vmatpush1.msra.mxu0 0.0
    %598 = vmatprep.subr.mxu0 0.0
    %599 = vmatpush1.msra.mxu0 0.0
    %600 = vmatprep.subr.mxu0 0.0
    %601 = vmatpush1.msra.mxu0 0.0
    %602 = vmatprep.subr.mxu0 0.0
    %603 = vmatpush1.msra.mxu0 0.0
    %604 = vmatprep.subr.mxu0 0.0
    %605 = vmatpush1.msra.mxu0 0.0
    %606 = vmatprep.subr.mxu0 0.0
    %607 = vmatpush1.msra.mxu0 0.0
    %608 = vmatprep.subr.mxu0 0.0
    %609 = vmatpush1.msra.mxu0 0.0
    %610 = vmatprep.subr.mxu0 0.0
    %611 = vmatpush1.msra.mxu0 0.0
    %612 = vmatprep.subr.mxu0 0.0
    %613 = vmatpush1.msra.mxu0 0.0
    %614 = vmatprep.subr.mxu0 0.0
    %615 = vmatpush1.msra.mxu0 0.0
    %616 = vmatprep.subr.mxu0 0.0
    %617 = vmatpush1.msra.mxu0 0.0
    %618 = vmatprep.subr.mxu0 0.0
    %619 = vmatpush1.msra.mxu0 0.0
    %620 = vmatprep.subr.mxu0 0.0
    %621 = vmatpush1.msra.mxu0 0.0
    %622 = vmatprep.subr.mxu0 0.0
    %623 = vmatpush1.msra.mxu0 0.0
    %624 = vmatprep.subr.mxu0 0.0
    %625 = vmatpush1.msra.mxu0 0.0
    %626 = vmatprep.subr.mxu0 0.0
    %627 = vmatpush1.msra.mxu0 0.0
    %628 = vmatprep.subr.mxu0 0.0
    %629 = vmatpush1.msra.mxu0 0.0
    %630 = vmatprep.subr.mxu0 0.0
    %631 = vmatpush1.msra.mxu0 0.0
    %632 = vmatprep.subr.mxu0 0.0
    %633 = vmatpush1.msra.mxu0 0.0
    %634 = vmatprep.subr.mxu0 0.0
    %635 = vmatpush1.msra.mxu0 0.0
    %636 = vmatprep.subr.mxu0 0.0
    %637 = vmatpush1.msra.mxu0 0.0
    %638 = vmatprep.mubr.f32.mxu0 0.0
    %639 = vmatmul.mubr.f32.gmra.mrb[0].mxu0 %v569
    %v640 = vpop.f32.mrb[0].mxu0
    %v641 = vadd.f32 %v566, %v640
    %v642 = vpop.f32.mrb[0].mxu0
    %643 = vmatprep.mubr.f32.mxu0 0.0
    %644 = vmatmul.mubr.f32.gmra.mrb[0].mxu0 %v572
    %v645 = vpop.f32.mrb[0].mxu0
    %v646 = vadd.f32 %v566, %v645
    %v647 = vpop.f32.mrb[0].mxu0
    %648 = vdwg.mxu0
    %v649 = vmul.f32 %v641, 0.35355338
    %651 = vrot.lane.b32.xlu0 %v641, 112
    %v652 = vpop.permute.xlu0 %651
    %vm653 = vcmask 64512
    %v655 = vsel %vm653, %v649, 0
    %v657 = vsel %vm653, %v652, 0
    %659 = vmatprep.subr.mxu0 0.0
    %660 = vmatpush1.xpose.msra.mxu0 %v657
    %661 = vmatprep.subr.mxu0 0.0
    %662 = vmatpush1.xpose.msra.mxu0 0.0
    %663 = vmatprep.subr.mxu0 0.0
    %664 = vmatpush1.xpose.msra.mxu0 0.0
    %665 = vmatprep.subr.mxu0 0.0
    %666 = vmatpush1.xpose.msra.mxu0 0.0
    %667 = vmatprep.subr.mxu0 0.0
    %668 = vmatpush1.xpose.msra.mxu0 0.0
    %669 = vmatprep.subr.mxu0 0.0
    %670 = vmatpush1.xpose.msra.mxu0 0.0
    %671 = vmatprep.subr.mxu0 0.0
    %672 = vmatpush1.xpose.msra.mxu0 0.0
    %673 = vmatprep.subr.mxu0 0.0
    %674 = vmatpush1.xpose.msra.mxu0 0.0
    %675 = vmatprep.subr.mxu0 0.0
    %676 = vmatpush1.xpose.msra.mxu0 0.0
    %677 = vmatprep.subr.mxu0 0.0
    %678 = vmatpush1.xpose.msra.mxu0 0.0
    %679 = vmatprep.subr.mxu0 0.0
    %680 = vmatpush1.xpose.msra.mxu0 0.0
    %681 = vmatprep.subr.mxu0 0.0
    %682 = vmatpush1.xpose.msra.mxu0 0.0
    %683 = vmatprep.subr.mxu0 0.0
    %684 = vmatpush1.xpose.msra.mxu0 0.0
    %685 = vmatprep.subr.mxu0 0.0
    %686 = vmatpush1.xpose.msra.mxu0 0.0
    %687 = vmatprep.subr.mxu0 0.0
    %688 = vmatpush1.xpose.msra.mxu0 0.0
    %689 = vmatprep.subr.mxu0 0.0
    %690 = vmatpush1.xpose.msra.mxu0 0.0
    %691 = vmatprep.subr.mxu0 0.0
    %692 = vmatpush1.xpose.msra.mxu0 0.0
    %693 = vmatprep.subr.mxu0 0.0
    %694 = vmatpush1.xpose.msra.mxu0 0.0
    %695 = vmatprep.subr.mxu0 0.0
    %696 = vmatpush1.xpose.msra.mxu0 0.0
    %697 = vmatprep.subr.mxu0 0.0
    %698 = vmatpush1.xpose.msra.mxu0 0.0
    %699 = vmatprep.subr.mxu0 0.0
    %700 = vmatpush1.xpose.msra.mxu0 0.0
    %701 = vmatprep.subr.mxu0 0.0
    %702 = vmatpush1.xpose.msra.mxu0 0.0
    %703 = vmatprep.subr.mxu0 0.0
    %704 = vmatpush1.xpose.msra.mxu0 0.0
    %705 = vmatprep.subr.mxu0 0.0
    %706 = vmatpush1.xpose.msra.mxu0 0.0
    %707 = vmatprep.subr.mxu0 0.0
    %708 = vmatpush1.xpose.msra.mxu0 0.0
    %709 = vmatprep.subr.mxu0 0.0
    %710 = vmatpush1.xpose.msra.mxu0 0.0
    %711 = vmatprep.subr.mxu0 0.0
    %712 = vmatpush1.xpose.msra.mxu0 0.0
    %713 = vmatprep.subr.mxu0 0.0
    %714 = vmatpush1.xpose.msra.mxu0 0.0
    %715 = vmatprep.subr.mxu0 0.0
    %716 = vmatpush1.xpose.msra.mxu0 0.0
    %717 = vmatprep.subr.mxu0 0.0
    %718 = vmatpush1.xpose.msra.mxu0 0.0
    %719 = vmatprep.subr.mxu0 0.0
    %720 = vmatpush1.xpose.msra.mxu0 0.0
    %721 = vmatprep.subr.mxu0 0.0
    %722 = vmatpush1.xpose.msra.mxu0 0.0
    %723 = vmatprep.mubr.f32.mxu0 0.0
    %724 = vmatmul.mubr.f32.gmra.mrb[0].mxu0 %v655
    %v725 = vpop.f32.mrb[0].mxu0
    %v726 = vadd.f32 0.0, %v725
    %v727 = vpop.f32.mrb[0].mxu0
    %728 = vdwg.mxu0
    %vm729 = vcmask 36864
    %v730 = vsel %vm729, %v726, -inf
    %731 = vmax.xlane.f32.xlu0 %v730
    %v732 = vpop.xlane.xlu0 %731
    %v733 = vsub.f32 %v726, %v732
    %v734 = vmul.f32 %v733, 1.442695
    %v735 = vpow.pop %v734
    %v736 = vsel %vm729, %v735, 0.0
    %737 = vadd.xlane.f32.xlu0 %v736
    %v738 = vpop.xlane.xlu0 %737
    %v739 = vrcp.pop %v738
    %v740 = vmul.f32 %v735, %v739
    %741 = vrot.lane.b32.xlu0 %v641, 96
    %v742 = vpop.permute.xlu0 %741
    %vm743 = vcmask 39936
    %v745 = vsel %vm743, %v740, 0
    %vm747 = vcmask 1044480
    %v748 = vsel %vm747, %v742, 0
    %750 = vmatprep.subr.mxu0 0.0
    %751 = vmatpush1.msra.mxu0 %v748
    %752 = vmatprep.subr.mxu0 0.0
    %753 = vmatpush1.msra.mxu0 0.0
    %754 = vmatprep.subr.mxu0 0.0
    %755 = vmatpush1.msra.mxu0 0.0
    %756 = vmatprep.subr.mxu0 0.0
    %757 = vmatpush1.msra.mxu0 0.0
    %758 = vmatprep.subr.mxu0 0.0
    %759 = vmatpush1.msra.mxu0 0.0
    %760 = vmatprep.subr.mxu0 0.0
    %761 = vmatpush1.msra.mxu0 0.0
    %762 = vmatprep.subr.mxu0 0.0
    %763 = vmatpush1.msra.mxu0 0.0
    %764 = vmatprep.subr.mxu0 0.0
    %765 = vmatpush1.msra.mxu0 0.0
    %766 = vmatprep.subr.mxu0 0.0
    %767 = vmatpush1.msra.mxu0 0.0
    %768 = vmatprep.subr.mxu0 0.0
    %769 = vmatpush1.msra.mxu0 0.0
    %770 = vmatprep.subr.mxu0 0.0
    %771 = vmatpush1.msra.mxu0 0.0
    %772 = vmatprep.subr.mxu0 0.0
    %773 = vmatpush1.msra.mxu0 0.0
    %774 = vmatprep.subr.mxu0 0.0
    %775 = vmatpush1.msra.mxu0 0.0
    %776 = vmatprep.subr.mxu0 0.0
    %777 = vmatpush1.msra.mxu0 0.0
    %778 = vmatprep.subr.mxu0 0.0
    %779 = vmatpush1.msra.mxu0 0.0
    %780 = vmatprep.subr.mxu0 0.0
    %781 = vmatpush1.msra.mxu0 0.0
    %782 = vmatprep.subr.mxu0 0.0
    %783 = vmatpush1.msra.mxu0 0.0
    %784 = vmatprep.subr.mxu0 0.0
    %785 = vmatpush1.msra.mxu0 0.0
    %786 = vmatprep.subr.mxu0 0.0
    %787 = vmatpush1.msra.mxu0 0.0
    %788 = vmatprep.subr.mxu0 0.0
    %789 = vmatpush1.msra.mxu0 0.0
    %790 = vmatprep.subr.mxu0 0.0
    %791 = vmatpush1.msra.mxu0 0.0
    %792 = vmatprep.subr.mxu0 0.0
    %793 = vmatpush1.msra.mxu0 0.0
    %794 = vmatprep.subr.mxu0 0.0
    %795 = vmatpush1.msra.mxu0 0.0
    %796 = vmatprep.subr.mxu0 0.0
    %797 = vmatpush1.msra.mxu0 0.0
    %798 = vmatprep.subr.mxu0 0.0
    %799 = vmatpush1.msra.mxu0 0.0
    %800 = vmatprep.subr.mxu0 0.0
    %801 = vmatpush1.msra.mxu0 0.0
    %802 = vmatprep.subr.mxu0 0.0
    %803 = vmatpush1.msra.mxu0 0.0
    %804 = vmatprep.subr.mxu0 0.0
    %805 = vmatpush1.msra.mxu0 0.0
    %806 = vmatprep.subr.mxu0 0.0
    %807 = vmatpush1.msra.mxu0 0.0
    %808 = vmatprep.subr.mxu0 0.0
    %809 = vmatpush1.msra.mxu0 0.0
    %810 = vmatprep.subr.mxu0 0.0
    %811 = vmatpush1.msra.mxu0 0.0
    %812 = vmatprep.subr.mxu0 0.0
    %813 = vmatpush1.msra.mxu0 0.0
    %814 = vmatprep.mubr.f32.mxu0 0.0
    %815 = vmatmul.mubr.f32.gmra.mrb[0].mxu0 %v745
    %v816 = vpop.f32.mrb[0].mxu0
    %v817 = vadd.f32 0.0, %v816
    %v818 = vpop.f32.mrb[0].mxu0
    %819 = vdwg.mxu0
    %vm820 = vcmask 61440
    %821 = vst.msk [vmem:[#allocation3] sm:$0x1f] %vm820, %v817
    %822 = vrot.lane.b32.xlu0 %v649, 120
    %v823 = vpop.permute.xlu0 %822
    %824 = vrot.lane.b32.xlu0 %v641, 104
    %v825 = vpop.permute.xlu0 %824
    %v826 = vsel %vm653, %v823, 0
    %v828 = vsel %vm653, %v825, 0
    %830 = vmatprep.subr.mxu0 0.0
    %831 = vmatpush1.xpose.msra.mxu0 %v828
    %832 = vmatprep.subr.mxu0 0.0
    %833 = vmatpush1.xpose.msra.mxu0 0.0
    %834 = vmatprep.subr.mxu0 0.0
    %835 = vmatpush1.xpose.msra.mxu0 0.0
    %836 = vmatprep.subr.mxu0 0.0
    %837 = vmatpush1.xpose.msra.mxu0 0.0
    %838 = vmatprep.subr.mxu0 0.0
    %839 = vmatpush1.xpose.msra.mxu0 0.0
    %840 = vmatprep.subr.mxu0 0.0
    %841 = vmatpush1.xpose.msra.mxu0 0.0
    %842 = vmatprep.subr.mxu0 0.0
    %843 = vmatpush1.xpose.msra.mxu0 0.0
    %844 = vmatprep.subr.mxu0 0.0
    %845 = vmatpush1.xpose.msra.mxu0 0.0
    %846 = vmatprep.subr.mxu0 0.0
    %847 = vmatpush1.xpose.msra.mxu0 0.0
    %848 = vmatprep.subr.mxu0 0.0
    %849 = vmatpush1.xpose.msra.mxu0 0.0
    %850 = vmatprep.subr.mxu0 0.0
    %851 = vmatpush1.xpose.msra.mxu0 0.0
    %852 = vmatprep.subr.mxu0 0.0
    %853 = vmatpush1.xpose.msra.mxu0 0.0
    %854 = vmatprep.subr.mxu0 0.0
    %855 = vmatpush1.xpose.msra.mxu0 0.0
    %856 = vmatprep.subr.mxu0 0.0
    %857 = vmatpush1.xpose.msra.mxu0 0.0
    %858 = vmatprep.subr.mxu0 0.0
    %859 = vmatpush1.xpose.msra.mxu0 0.0
    %860 = vmatprep.subr.mxu0 0.0
    %861 = vmatpush1.xpose.msra.mxu0 0.0
    %862 = vmatprep.subr.mxu0 0.0
    %863 = vmatpush1.xpose.msra.mxu0 0.0
    %864 = vmatprep.subr.mxu0 0.0
    %865 = vmatpush1.xpose.msra.mxu0 0.0
    %866 = vmatprep.subr.mxu0 0.0
    %867 = vmatpush1.xpose.msra.mxu0 0.0
    %868 = vmatprep.subr.mxu0 0.0
    %869 = vmatpush1.xpose.msra.mxu0 0.0
    %870 = vmatprep.subr.mxu0 0.0
    %871 = vmatpush1.xpose.msra.mxu0 0.0
    %872 = vmatprep.subr.mxu0 0.0
    %873 = vmatpush1.xpose.msra.mxu0 0.0
    %874 = vmatprep.subr.mxu0 0.0
    %875 = vmatpush1.xpose.msra.mxu0 0.0
    %876 = vmatprep.subr.mxu0 0.0
    %877 = vmatpush1.xpose.msra.mxu0 0.0
    %878 = vmatprep.subr.mxu0 0.0
    %879 = vmatpush1.xpose.msra.mxu0 0.0
    %880 = vmatprep.subr.mxu0 0.0
    %881 = vmatpush1.xpose.msra.mxu0 0.0
    %882 = vmatprep.subr.mxu0 0.0
    %883 = vmatpush1.xpose.msra.mxu0 0.0
    %884 = vmatprep.subr.mxu0 0.0
    %885 = vmatpush1.xpose.msra.mxu0 0.0
    %886 = vmatprep.subr.mxu0 0.0
    %887 = vmatpush1.xpose.msra.mxu0 0.0
    %888 = vmatprep.subr.mxu0 0.0
    %889 = vmatpush1.xpose.msra.mxu0 0.0
    %890 = vmatprep.subr.mxu0 0.0
    %891 = vmatpush1.xpose.msra.mxu0 0.0
    %892 = vmatprep.subr.mxu0 0.0
    %893 = vmatpush1.xpose.msra.mxu0 0.0
    %894 = vmatprep.mubr.f32.mxu0 0.0
    %895 = vmatmul.mubr.f32.gmra.mrb[0].mxu0 %v826
    %v896 = vpop.f32.mrb[0].mxu0
    %v897 = vadd.f32 0.0, %v896
    %v898 = vpop.f32.mrb[0].mxu0
    %899 = vdwg.mxu0
    %v900 = vsel %vm729, %v897, -inf
    %901 = vmax.xlane.f32.xlu0 %v900
    %v902 = vpop.xlane.xlu0 %901
    %v903 = vsub.f32 %v897, %v902
    %v904 = vmul.f32 %v903, 1.442695
    %v905 = vpow.pop %v904
    %v906 = vsel %vm729, %v905, 0.0
    %907 = vadd.xlane.f32.xlu0 %v906
    %v908 = vpop.xlane.xlu0 %907
    %v909 = vrcp.pop %v908
    %v910 = vmul.f32 %v905, %v909
    %911 = vrot.lane.b32.xlu0 %v641, 88
    %v912 = vpop.permute.xlu0 %911
    %v914 = vsel %vm743, %v910, 0
    %v916 = vsel %vm747, %v912, 0
    %918 = vmatprep.subr.mxu0 0.0
    %919 = vmatpush1.msra.mxu0 %v916
    %920 = vmatprep.subr.mxu0 0.0
    %921 = vmatpush1.msra.mxu0 0.0
    %922 = vmatprep.subr.mxu0 0.0
    %923 = vmatpush1.msra.mxu0 0.0
    %924 = vmatprep.subr.mxu0 0.0
    %925 = vmatpush1.msra.mxu0 0.0
    %926 = vmatprep.subr.mxu0 0.0
    %927 = vmatpush1.msra.mxu0 0.0
    %928 = vmatprep.subr.mxu0 0.0
    %929 = vmatpush1.msra.mxu0 0.0
    %930 = vmatprep.subr.mxu0 0.0
    %931 = vmatpush1.msra.mxu0 0.0
    %932 = vmatprep.subr.mxu0 0.0
    %933 = vmatpush1.msra.mxu0 0.0
    %934 = vmatprep.subr.mxu0 0.0
    %935 = vmatpush1.msra.mxu0 0.0
    %936 = vmatprep.subr.mxu0 0.0
    %937 = vmatpush1.msra.mxu0 0.0
    %938 = vmatprep.subr.mxu0 0.0
    %939 = vmatpush1.msra.mxu0 0.0
    %940 = vmatprep.subr.mxu0 0.0
    %941 = vmatpush1.msra.mxu0 0.0
    %942 = vmatprep.subr.mxu0 0.0
    %943 = vmatpush1.msra.mxu0 0.0
    %944 = vmatprep.subr.mxu0 0.0
    %945 = vmatpush1.msra.mxu0 0.0
    %946 = vmatprep.subr.mxu0 0.0
    %947 = vmatpush1.msra.mxu0 0.0
    %948 = vmatprep.subr.mxu0 0.0
    %949 = vmatpush1.msra.mxu0 0.0
    %950 = vmatprep.subr.mxu0 0.0
    %951 = vmatpush1.msra.mxu0 0.0
    %952 = vmatprep.subr.mxu0 0.0
    %953 = vmatpush1.msra.mxu0 0.0
    %954 = vmatprep.subr.mxu0 0.0
    %955 = vmatpush1.msra.mxu0 0.0
    %956 = vmatprep.subr.mxu0 0.0
    %957 = vmatpush1.msra.mxu0 0.0
    %958 = vmatprep.subr.mxu0 0.0
    %959 = vmatpush1.msra.mxu0 0.0
    %960 = vmatprep.subr.mxu0 0.0
    %961 = vmatpush1.msra.mxu0 0.0
    %962 = vmatprep.subr.mxu0 0.0
    %963 = vmatpush1.msra.mxu0 0.0
    %964 = vmatprep.subr.mxu0 0.0
    %965 = vmatpush1.msra.mxu0 0.0
    %966 = vmatprep.subr.mxu0 0.0
    %967 = vmatpush1.msra.mxu0 0.0
    %968 = vmatprep.subr.mxu0 0.0
    %969 = vmatpush1.msra.mxu0 0.0
    %970 = vmatprep.subr.mxu0 0.0
    %971 = vmatpush1.msra.mxu0 0.0
    %972 = vmatprep.subr.mxu0 0.0
    %973 = vmatpush1.msra.mxu0 0.0
    %974 = vmatprep.subr.mxu0 0.0
    %975 = vmatpush1.msra.mxu0 0.0
    %976 = vmatprep.subr.mxu0 0.0
    %977 = vmatpush1.msra.mxu0 0.0
    %978 = vmatprep.subr.mxu0 0.0
    %979 = vmatpush1.msra.mxu0 0.0
    %980 = vmatprep.subr.mxu0 0.0
    %981 = vmatpush1.msra.mxu0 0.0
    %982 = vmatprep.mubr.f32.mxu0 0.0
    %983 = vmatmul.mubr.f32.gmra.mrb[0].mxu0 %v914
    %v984 = vpop.f32.mrb[0].mxu0
    %v985 = vadd.f32 0.0, %v984
    %v986 = vpop.f32.mrb[0].mxu0
    %987 = vdwg.mxu0
    %989 = vrot.lane.b32.xlu0 %v985, 8
    %v990 = vpop.permute.xlu0 %989
    %vm992 = vcmask 127040
    %993 = vst.msk [vmem:[#allocation3] sm:$0x1f] %vm992, %v990
    %v994 = vmul.f32 %v646, 0.35355338
    %vm996 = vcmask 1042432
    %v997 = vrot.slane %v649, 5
    %v998 = vrot.slane %v994, 5
    %v999 = vsel %vm996, %v997, %v998
    %v1001 = vrot.slane %v641, 5
    %v1002 = vrot.slane %v646, 5
    %v1003 = vsel %vm996, %v1001, %v1002
    %1004 = vrot.lane.b32.xlu0 %v1003, 112
    %v1005 = vpop.permute.xlu0 %1004
    %v1006 = vsel %vm653, %v999, 0
    %v1008 = vsel %vm653, %v1005, 0
    %1010 = vmatprep.subr.mxu0 0.0
    %1011 = vmatpush1.xpose.msra.mxu0 %v1008
    %1012 = vmatprep.subr.mxu0 0.0
    %1013 = vmatpush1.xpose.msra.mxu0 0.0
    %1014 = vmatprep.subr.mxu0 0.0
    %1015 = vmatpush1.xpose.msra.mxu0 0.0
    %1016 = vmatprep.subr.mxu0 0.0
    %1017 = vmatpush1.xpose.msra.mxu0 0.0
    %1018 = vmatprep.subr.mxu0 0.0
    %1019 = vmatpush1.xpose.msra.mxu0 0.0
    %1020 = vmatprep.subr.mxu0 0.0
    %1021 = vmatpush1.xpose.msra.mxu0 0.0
    %1022 = vmatprep.subr.mxu0 0.0
    %1023 = vmatpush1.xpose.msra.mxu0 0.0
    %1024 = vmatprep.subr.mxu0 0.0
    %1025 = vmatpush1.xpose.msra.mxu0 0.0
    %1026 = vmatprep.subr.mxu0 0.0
    %1027 = vmatpush1.xpose.msra.mxu0 0.0
    %1028 = vmatprep.subr.mxu0 0.0
    %1029 = vmatpush1.xpose.msra.mxu0 0.0
    %1030 = vmatprep.subr.mxu0 0.0
    %1031 = vmatpush1.xpose.msra.mxu0 0.0
    %1032 = vmatprep.subr.mxu0 0.0
    %1033 = vmatpush1.xpose.msra.mxu0 0.0
    %1034 = vmatprep.subr.mxu0 0.0
    %1035 = vmatpush1.xpose.msra.mxu0 0.0
    %1036 = vmatprep.subr.mxu0 0.0
    %1037 = vmatpush1.xpose.msra.mxu0 0.0
    %1038 = vmatprep.subr.mxu0 0.0
    %1039 = vmatpush1.xpose.msra.mxu0 0.0
    %1040 = vmatprep.subr.mxu0 0.0
    %1041 = vmatpush1.xpose.msra.mxu0 0.0
    %1042 = vmatprep.subr.mxu0 0.0
    %1043 = vmatpush1.xpose.msra.mxu0 0.0
    %1044 = vmatprep.subr.mxu0 0.0
    %1045 = vmatpush1.xpose.msra.mxu0 0.0
    %1046 = vmatprep.subr.mxu0 0.0
    %1047 = vmatpush1.xpose.msra.mxu0 0.0
    %1048 = vmatprep.subr.mxu0 0.0
    %1049 = vmatpush1.xpose.msra.mxu0 0.0
    %1050 = vmatprep.subr.mxu0 0.0
    %1051 = vmatpush1.xpose.msra.mxu0 0.0
    %1052 = vmatprep.subr.mxu0 0.0
    %1053 = vmatpush1.xpose.msra.mxu0 0.0
    %1054 = vmatprep.subr.mxu0 0.0
    %1055 = vmatpush1.xpose.msra.mxu0 0.0
    %1056 = vmatprep.subr.mxu0 0.0
    %1057 = vmatpush1.xpose.msra.mxu0 0.0
    %1058 = vmatprep.subr.mxu0 0.0
    %1059 = vmatpush1.xpose.msra.mxu0 0.0
    %1060 = vmatprep.subr.mxu0 0.0
    %1061 = vmatpush1.xpose.msra.mxu0 0.0
    %1062 = vmatprep.subr.mxu0 0.0
    %1063 = vmatpush1.xpose.msra.mxu0 0.0
    %1064 = vmatprep.subr.mxu0 0.0
    %1065 = vmatpush1.xpose.msra.mxu0 0.0
    %1066 = vmatprep.subr.mxu0 0.0
    %1067 = vmatpush1.xpose.msra.mxu0 0.0
    %1068 = vmatprep.subr.mxu0 0.0
    %1069 = vmatpush1.xpose.msra.mxu0 0.0
    %1070 = vmatprep.subr.mxu0 0.0
    %1071 = vmatpush1.xpose.msra.mxu0 0.0
    %1072 = vmatprep.subr.mxu0 0.0
    %1073 = vmatpush1.xpose.msra.mxu0 0.0
    %1074 = vmatprep.mubr.f32.mxu0 0.0
    %1075 = vmatmul.mubr.f32.gmra.mrb[0].mxu0 %v1006
    %v1076 = vpop.f32.mrb[0].mxu0
    %v1077 = vadd.f32 0.0, %v1076
    %v1078 = vpop.f32.mrb[0].mxu0
    %1079 = vdwg.mxu0
    %v1080 = vsel %vm729, %v1077, -inf
    %1081 = vmax.xlane.f32.xlu0 %v1080
    %v1082 = vpop.xlane.xlu0 %1081
    %v1083 = vsub.f32 %v1077, %v1082
    %v1084 = vmul.f32 %v1083, 1.442695
    %v1085 = vpow.pop %v1084
    %v1086 = vsel %vm729, %v1085, 0.0
    %1087 = vadd.xlane.f32.xlu0 %v1086
    %v1088 = vpop.xlane.xlu0 %1087
    %v1089 = vrcp.pop %v1088
    %v1090 = vmul.f32 %v1085, %v1089
    %1091 = vrot.lane.b32.xlu0 %v1003, 96
    %v1092 = vpop.permute.xlu0 %1091
    %v1094 = vsel %vm743, %v1090, 0
    %v1096 = vsel %vm747, %v1092, 0
    %1098 = vmatprep.subr.mxu0 0.0
    %1099 = vmatpush1.msra.mxu0 %v1096
    %1100 = vmatprep.subr.mxu0 0.0
    %1101 = vmatpush1.msra.mxu0 0.0
    %1102 = vmatprep.subr.mxu0 0.0
    %1103 = vmatpush1.msra.mxu0 0.0
    %1104 = vmatprep.subr.mxu0 0.0
    %1105 = vmatpush1.msra.mxu0 0.0
    %1106 = vmatprep.subr.mxu0 0.0
    %1107 = vmatpush1.msra.mxu0 0.0
    %1108 = vmatprep.subr.mxu0 0.0
    %1109 = vmatpush1.msra.mxu0 0.0
    %1110 = vmatprep.subr.mxu0 0.0
    %1111 = vmatpush1.msra.mxu0 0.0
    %1112 = vmatprep.subr.mxu0 0.0
    %1113 = vmatpush1.msra.mxu0 0.0
    %1114 = vmatprep.subr.mxu0 0.0
    %1115 = vmatpush1.msra.mxu0 0.0
    %1116 = vmatprep.subr.mxu0 0.0
    %1117 = vmatpush1.msra.mxu0 0.0
    %1118 = vmatprep.subr.mxu0 0.0
    %1119 = vmatpush1.msra.mxu0 0.0
    %1120 = vmatprep.subr.mxu0 0.0
    %1121 = vmatpush1.msra.mxu0 0.0
    %1122 = vmatprep.subr.mxu0 0.0
    %1123 = vmatpush1.msra.mxu0 0.0
    %1124 = vmatprep.subr.mxu0 0.0
    %1125 = vmatpush1.msra.mxu0 0.0
    %1126 = vmatprep.subr.mxu0 0.0
    %1127 = vmatpush1.msra.mxu0 0.0
    %1128 = vmatprep.subr.mxu0 0.0
    %1129 = vmatpush1.msra.mxu0 0.0
    %1130 = vmatprep.subr.mxu0 0.0
    %1131 = vmatpush1.msra.mxu0 0.0
    %1132 = vmatprep.subr.mxu0 0.0
    %1133 = vmatpush1.msra.mxu0 0.0
    %1134 = vmatprep.subr.mxu0 0.0
    %1135 = vmatpush1.msra.mxu0 0.0
    %1136 = vmatprep.subr.mxu0 0.0
    %1137 = vmatpush1.msra.mxu0 0.0
    %1138 = vmatprep.subr.mxu0 0.0
    %1139 = vmatpush1.msra.mxu0 0.0
    %1140 = vmatprep.subr.mxu0 0.0
    %1141 = vmatpush1.msra.mxu0 0.0
    %1142 = vmatprep.subr.mxu0 0.0
    %1143 = vmatpush1.msra.mxu0 0.0
    %1144 = vmatprep.subr.mxu0 0.0
    %1145 = vmatpush1.msra.mxu0 0.0
    %1146 = vmatprep.subr.mxu0 0.0
    %1147 = vmatpush1.msra.mxu0 0.0
    %1148 = vmatprep.subr.mxu0 0.0
    %1149 = vmatpush1.msra.mxu0 0.0
    %1150 = vmatprep.subr.mxu0 0.0
    %1151 = vmatpush1.msra.mxu0 0.0
    %1152 = vmatprep.subr.mxu0 0.0
    %1153 = vmatpush1.msra.mxu0 0.0
    %1154 = vmatprep.subr.mxu0 0.0
    %1155 = vmatpush1.msra.mxu0 0.0
    %1156 = vmatprep.subr.mxu0 0.0
    %1157 = vmatpush1.msra.mxu0 0.0
    %1158 = vmatprep.subr.mxu0 0.0
    %1159 = vmatpush1.msra.mxu0 0.0
    %1160 = vmatprep.subr.mxu0 0.0
    %1161 = vmatpush1.msra.mxu0 0.0
    %1162 = vmatprep.mubr.f32.mxu0 0.0
    %1163 = vmatmul.mubr.f32.gmra.mrb[0].mxu0 %v1094
    %v1164 = vpop.f32.mrb[0].mxu0
    %v1165 = vadd.f32 0.0, %v1164
    %v1166 = vpop.f32.mrb[0].mxu0
    %1167 = vdwg.mxu0
    %1168 = vst.msk [vmem:[#allocation3 + $0x5] sm:$0x1f] %vm820, %v1165
    %1169 = vrot.lane.b32.xlu0 %v999, 120
    %v1170 = vpop.permute.xlu0 %1169
    %1171 = vrot.lane.b32.xlu0 %v1003, 104
    %v1172 = vpop.permute.xlu0 %1171
    %v1173 = vsel %vm653, %v1170, 0
    %v1175 = vsel %vm653, %v1172, 0
    %1177 = vmatprep.subr.mxu0 0.0
    %1178 = vmatpush1.xpose.msra.mxu0 %v1175
    %1179 = vmatprep.subr.mxu0 0.0
    %1180 = vmatpush1.xpose.msra.mxu0 0.0
    %1181 = vmatprep.subr.mxu0 0.0
    %1182 = vmatpush1.xpose.msra.mxu0 0.0
    %1183 = vmatprep.subr.mxu0 0.0
    %1184 = vmatpush1.xpose.msra.mxu0 0.0
    %1185 = vmatprep.subr.mxu0 0.0
    %1186 = vmatpush1.xpose.msra.mxu0 0.0
    %1187 = vmatprep.subr.mxu0 0.0
    %1188 = vmatpush1.xpose.msra.mxu0 0.0
    %1189 = vmatprep.subr.mxu0 0.0
    %1190 = vmatpush1.xpose.msra.mxu0 0.0
    %1191 = vmatprep.subr.mxu0 0.0
    %1192 = vmatpush1.xpose.msra.mxu0 0.0
    %1193 = vmatprep.subr.mxu0 0.0
    %1194 = vmatpush1.xpose.msra.mxu0 0.0
    %1195 = vmatprep.subr.mxu0 0.0
    %1196 = vmatpush1.xpose.msra.mxu0 0.0
    %1197 = vmatprep.subr.mxu0 0.0
    %1198 = vmatpush1.xpose.msra.mxu0 0.0
    %1199 = vmatprep.subr.mxu0 0.0
    %1200 = vmatpush1.xpose.msra.mxu0 0.0
    %1201 = vmatprep.subr.mxu0 0.0
    %1202 = vmatpush1.xpose.msra.mxu0 0.0
    %1203 = vmatprep.subr.mxu0 0.0
    %1204 = vmatpush1.xpose.msra.mxu0 0.0
    %1205 = vmatprep.subr.mxu0 0.0
    %1206 = vmatpush1.xpose.msra.mxu0 0.0
    %1207 = vmatprep.subr.mxu0 0.0
    %1208 = vmatpush1.xpose.msra.mxu0 0.0
    %1209 = vmatprep.subr.mxu0 0.0
    %1210 = vmatpush1.xpose.msra.mxu0 0.0
    %1211 = vmatprep.subr.mxu0 0.0
    %1212 = vmatpush1.xpose.msra.mxu0 0.0
    %1213 = vmatprep.subr.mxu0 0.0
    %1214 = vmatpush1.xpose.msra.mxu0 0.0
    %1215 = vmatprep.subr.mxu0 0.0
    %1216 = vmatpush1.xpose.msra.mxu0 0.0
    %1217 = vmatprep.subr.mxu0 0.0
    %1218 = vmatpush1.xpose.msra.mxu0 0.0
    %1219 = vmatprep.subr.mxu0 0.0
    %1220 = vmatpush1.xpose.msra.mxu0 0.0
    %1221 = vmatprep.subr.mxu0 0.0
    %1222 = vmatpush1.xpose.msra.mxu0 0.0
    %1223 = vmatprep.subr.mxu0 0.0
    %1224 = vmatpush1.xpose.msra.mxu0 0.0
    %1225 = vmatprep.subr.mxu0 0.0
    %1226 = vmatpush1.xpose.msra.mxu0 0.0
    %1227 = vmatprep.subr.mxu0 0.0
    %1228 = vmatpush1.xpose.msra.mxu0 0.0
    %1229 = vmatprep.subr.mxu0 0.0
    %1230 = vmatpush1.xpose.msra.mxu0 0.0
    %1231 = vmatprep.subr.mxu0 0.0
    %1232 = vmatpush1.xpose.msra.mxu0 0.0
    %1233 = vmatprep.subr.mxu0 0.0
    %1234 = vmatpush1.xpose.msra.mxu0 0.0
    %1235 = vmatprep.subr.mxu0 0.0
    %1236 = vmatpush1.xpose.msra.mxu0 0.0
    %1237 = vmatprep.subr.mxu0 0.0
    %1238 = vmatpush1.xpose.msra.mxu0 0.0
    %1239 = vmatprep.subr.mxu0 0.0
    %1240 = vmatpush1.xpose.msra.mxu0 0.0
    %1241 = vmatprep.mubr.f32.mxu0 0.0
    %1242 = vmatmul.mubr.f32.gmra.mrb[0].mxu0 %v1173
    %v1243 = vpop.f32.mrb[0].mxu0
    %v1244 = vadd.f32 0.0, %v1243
    %v1245 = vpop.f32.mrb[0].mxu0
    %1246 = vdwg.mxu0
    %v1247 = vsel %vm729, %v1244, -inf
    %1248 = vmax.xlane.f32.xlu0 %v1247
    %v1249 = vpop.xlane.xlu0 %1248
    %v1250 = vsub.f32 %v1244, %v1249
    %v1251 = vmul.f32 %v1250, 1.442695
    %v1252 = vpow.pop %v1251
    %v1253 = vsel %vm729, %v1252, 0.0
    %1254 = vadd.xlane.f32.xlu0 %v1253
    %v1255 = vpop.xlane.xlu0 %1254
    %v1256 = vrcp.pop %v1255
    %v1257 = vmul.f32 %v1252, %v1256
    %1258 = vrot.lane.b32.xlu0 %v1003, 88
    %v1259 = vpop.permute.xlu0 %1258
    %v1261 = vsel %vm743, %v1257, 0
    %v1263 = vsel %vm747, %v1259, 0
    %1265 = vmatprep.subr.mxu0 0.0
    %1266 = vmatpush1.msra.mxu0 %v1263
    %1267 = vmatprep.subr.mxu0 0.0
    %1268 = vmatpush1.msra.mxu0 0.0
    %1269 = vmatprep.subr.mxu0 0.0
    %1270 = vmatpush1.msra.mxu0 0.0
    %1271 = vmatprep.subr.mxu0 0.0
    %1272 = vmatpush1.msra.mxu0 0.0
    %1273 = vmatprep.subr.mxu0 0.0
    %1274 = vmatpush1.msra.mxu0 0.0
    %1275 = vmatprep.subr.mxu0 0.0
    %1276 = vmatpush1.msra.mxu0 0.0
    %1277 = vmatprep.subr.mxu0 0.0
    %1278 = vmatpush1.msra.mxu0 0.0
    %1279 = vmatprep.subr.mxu0 0.0
    %1280 = vmatpush1.msra.mxu0 0.0
    %1281 = vmatprep.subr.mxu0 0.0
    %1282 = vmatpush1.msra.mxu0 0.0
    %1283 = vmatprep.subr.mxu0 0.0
    %1284 = vmatpush1.msra.mxu0 0.0
    %1285 = vmatprep.subr.mxu0 0.0
    %1286 = vmatpush1.msra.mxu0 0.0
    %1287 = vmatprep.subr.mxu0 0.0
    %1288 = vmatpush1.msra.mxu0 0.0
    %1289 = vmatprep.subr.mxu0 0.0
    %1290 = vmatpush1.msra.mxu0 0.0
    %1291 = vmatprep.subr.mxu0 0.0
    %1292 = vmatpush1.msra.mxu0 0.0
    %1293 = vmatprep.subr.mxu0 0.0
    %1294 = vmatpush1.msra.mxu0 0.0
    %1295 = vmatprep.subr.mxu0 0.0
    %1296 = vmatpush1.msra.mxu0 0.0
    %1297 = vmatprep.subr.mxu0 0.0
    %1298 = vmatpush1.msra.mxu0 0.0
    %1299 = vmatprep.subr.mxu0 0.0
    %1300 = vmatpush1.msra.mxu0 0.0
    %1301 = vmatprep.subr.mxu0 0.0
    %1302 = vmatpush1.msra.mxu0 0.0
    %1303 = vmatprep.subr.mxu0 0.0
    %1304 = vmatpush1.msra.mxu0 0.0
    %1305 = vmatprep.subr.mxu0 0.0
    %1306 = vmatpush1.msra.mxu0 0.0
    %1307 = vmatprep.subr.mxu0 0.0
    %1308 = vmatpush1.msra.mxu0 0.0
    %1309 = vmatprep.subr.mxu0 0.0
    %1310 = vmatpush1.msra.mxu0 0.0
    %1311 = vmatprep.subr.mxu0 0.0
    %1312 = vmatpush1.msra.mxu0 0.0
    %1313 = vmatprep.subr.mxu0 0.0
    %1314 = vmatpush1.msra.mxu0 0.0
    %1315 = vmatprep.subr.mxu0 0.0
    %1316 = vmatpush1.msra.mxu0 0.0
    %1317 = vmatprep.subr.mxu0 0.0
    %1318 = vmatpush1.msra.mxu0 0.0
    %1319 = vmatprep.subr.mxu0 0.0
    %1320 = vmatpush1.msra.mxu0 0.0
    %1321 = vmatprep.subr.mxu0 0.0
    %1322 = vmatpush1.msra.mxu0 0.0
    %1323 = vmatprep.subr.mxu0 0.0
    %1324 = vmatpush1.msra.mxu0 0.0
    %1325 = vmatprep.subr.mxu0 0.0
    %1326 = vmatpush1.msra.mxu0 0.0
    %1327 = vmatprep.subr.mxu0 0.0
    %1328 = vmatpush1.msra.mxu0 0.0
    %1329 = vmatprep.mubr.f32.mxu0 0.0
    %1330 = vmatmul.mubr.f32.gmra.mrb[0].mxu0 %v1261
    %v1331 = vpop.f32.mrb[0].mxu0
    %v1332 = vadd.f32 0.0, %v1331
    %v1333 = vpop.f32.mrb[0].mxu0
    %1334 = vdwg.mxu0
    %1336 = vrot.lane.b32.xlu0 %v1332, 8
    %v1337 = vpop.permute.xlu0 %1336
    %1339 = vst.msk [vmem:[#allocation3 + $0x5] sm:$0x1f] %vm992, %v1337
    %v1340 = vld [vmem:[#allocation3] sm:$0xff]
    %v1341 = vld [vmem:[#allocation3 + $0x8] sm:$0x3]
    %v1342 = vld [vmem:[#allocation15] sm:$0xff]
    %v1343 = vld [vmem:[#allocation15 + $0x8] sm:$0xff]
    %v1344 = vld [vmem:[#allocation16] sm:$0x1]
    %v1346 = vlaneseq
    %v1347 = vshrl.u32 %v1346, 7
    %v1348 = vsub.s32 0, %v1347
    %v1349 = vrot.slane %v1344, %v1348
    %v1352 = vsel %vm389, %v1340, 0
    %v1355 = vsel %vm389, %v1341, 0
    %1357 = vmatprep.subr.mxu0 0.0
    %1358 = vmatpush1.msra.mxu0 %v1342
    %1359 = vmatprep.subr.mxu0 0.0
    %1360 = vmatpush1.msra.mxu0 %v1343
    %1361 = vmatprep.subr.mxu0 0.0
    %1362 = vmatpush1.msra.mxu0 0.0
    %1363 = vmatprep.subr.mxu0 0.0
    %1364 = vmatpush1.msra.mxu0 0.0
    %1365 = vmatprep.subr.mxu0 0.0
    %1366 = vmatpush1.msra.mxu0 0.0
    %1367 = vmatprep.subr.mxu0 0.0
    %1368 = vmatpush1.msra.mxu0 0.0
    %1369 = vmatprep.subr.mxu0 0.0
    %1370 = vmatpush1.msra.mxu0 0.0
    %1371 = vmatprep.subr.mxu0 0.0
    %1372 = vmatpush1.msra.mxu0 0.0
    %1373 = vmatprep.subr.mxu0 0.0
    %1374 = vmatpush1.msra.mxu0 0.0
    %1375 = vmatprep.subr.mxu0 0.0
    %1376 = vmatpush1.msra.mxu0 0.0
    %1377 = vmatprep.subr.mxu0 0.0
    %1378 = vmatpush1.msra.mxu0 0.0
    %1379 = vmatprep.subr.mxu0 0.0
    %1380 = vmatpush1.msra.mxu0 0.0
    %1381 = vmatprep.subr.mxu0 0.0
    %1382 = vmatpush1.msra.mxu0 0.0
    %1383 = vmatprep.subr.mxu0 0.0
    %1384 = vmatpush1.msra.mxu0 0.0
    %1385 = vmatprep.subr.mxu0 0.0
    %1386 = vmatpush1.msra.mxu0 0.0
    %1387 = vmatprep.subr.mxu0 0.0
    %1388 = vmatpush1.msra.mxu0 0.0
    %1389 = vmatprep.subr.mxu0 0.0
    %1390 = vmatpush1.msra.mxu0 0.0
    %1391 = vmatprep.subr.mxu0 0.0
    %1392 = vmatpush1.msra.mxu0 0.0
    %1393 = vmatprep.subr.mxu0 0.0
    %1394 = vmatpush1.msra.mxu0 0.0
    %1395 = vmatprep.subr.mxu0 0.0
    %1396 = vmatpush1.msra.mxu0 0.0
    %1397 = vmatprep.subr.mxu0 0.0
    %1398 = vmatpush1.msra.mxu0 0.0
    %1399 = vmatprep.subr.mxu0 0.0
    %1400 = vmatpush1.msra.mxu0 0.0
    %1401 = vmatprep.subr.mxu0 0.0
    %1402 = vmatpush1.msra.mxu0 0.0
    %1403 = vmatprep.subr.mxu0 0.0
    %1404 = vmatpush1.msra.mxu0 0.0
    %1405 = vmatprep.subr.mxu0 0.0
    %1406 = vmatpush1.msra.mxu0 0.0
    %1407 = vmatprep.subr.mxu0 0.0
    %1408 = vmatpush1.msra.mxu0 0.0
    %1409 = vmatprep.subr.mxu0 0.0
    %1410 = vmatpush1.msra.mxu0 0.0
    %1411 = vmatprep.subr.mxu0 0.0
    %1412 = vmatpush1.msra.mxu0 0.0
    %1413 = vmatprep.subr.mxu0 0.0
    %1414 = vmatpush1.msra.mxu0 0.0
    %1415 = vmatprep.subr.mxu0 0.0
    %1416 = vmatpush1.msra.mxu0 0.0
    %1417 = vmatprep.subr.mxu0 0.0
    %1418 = vmatpush1.msra.mxu0 0.0
    %1419 = vmatprep.subr.mxu0 0.0
    %1420 = vmatpush1.msra.mxu0 0.0
    %1421 = vmatprep.mubr.f32.mxu0 0.0
    %1422 = vmatmul.mubr.f32.gmra.mrb[0].mxu0 %v1352
    %v1423 = vpop.f32.mrb[0].mxu0
    %v1424 = vadd.f32 %v1349, %v1423
    %v1425 = vpop.f32.mrb[0].mxu0
    %1426 = vmatprep.mubr.f32.mxu0 0.0
    %1427 = vmatmul.mubr.f32.gmra.mrb[0].mxu0 %v1355
    %v1428 = vpop.f32.mrb[0].mxu0
    %v1429 = vadd.f32 %v1349, %v1428
    %v1430 = vpop.f32.mrb[0].mxu0
    %1431 = vdwg.mxu0
    %v1432 = vadd.f32 %v505, %v1424
    %v1433 = vadd.f32 %v510, %v1429
    %v1434 = vsel %vm389, %v1432, 0.0
    %1435 = vadd.xlane.f32.xlu0 %v1434
    %v1436 = vpop.xlane.xlu0 %1435
    %v1437 = vsel %vm518, %v1433, 0.0
    %1438 = vadd.xlane.f32.xlu0 %v1437
    %v1439 = vpop.xlane.xlu0 %1438
    %v1440 = vmul.f32 %v1436, %v522
    %v1441 = vmul.f32 %v1439, %v522
    %v1442 = vsub.f32 %v1432, %v1440
    %v1443 = vsub.f32 %v1433, %v1441
    %v1444 = vmul.f32 %v1442, %v1442
    %v1445 = vmul.f32 %v1443, %v1443
    %v1446 = vsel %vm389, %v1444, 0.0
    %1447 = vadd.xlane.f32.xlu0 %v1446
    %v1448 = vpop.xlane.xlu0 %1447
    %v1449 = vsel %vm518, %v1445, 0.0
    %1450 = vadd.xlane.f32.xlu0 %v1449
    %v1451 = vpop.xlane.xlu0 %1450
    %v1452 = vmul.f32 %v1448, %v522
    %v1453 = vmul.f32 %v1451, %v522
    %v1454 = vadd.f32 %v1452, 1e-05
    %v1455 = vadd.f32 %v1453, 1e-05
    %v1456 = vrsqrt.pop %v1454
    %v1457 = vrsqrt.pop %v1455
    %v1458 = vmul.f32 %v1442, %v1456
    %v1459 = vmul.f32 %v1443, %v1457
    %v1460 = vmul.f32 %v1458, %v547
    %v1461 = vmul.f32 %v1459, %v547
    %v1462 = vadd.f32 %v1460, %v555
    %v1463 = vadd.f32 %v1461, %v555
    %v1464 = vld [vmem:[#allocation18] sm:$0xff]
    %v1465 = vld [vmem:[#allocation18 + $0x8] sm:$0xff]
    %v1466 = vld [vmem:[#allocation19] sm:$0x1]
    %v1468 = vlaneseq
    %v1469 = vshrl.u32 %v1468, 7
    %v1470 = vsub.s32 0, %v1469
    %v1471 = vrot.slane %v1466, %v1470
    %v1474 = vsel %vm389, %v1462, 0
    %v1477 = vsel %vm389, %v1463, 0
    %1479 = vmatprep.subr.mxu0 0.0
    %1480 = vmatpush1.msra.mxu0 %v1464
    %1481 = vmatprep.subr.mxu0 0.0
    %1482 = vmatpush1.msra.mxu0 %v1465
    %1483 = vmatprep.subr.mxu0 0.0
    %1484 = vmatpush1.msra.mxu0 0.0
    %1485 = vmatprep.subr.mxu0 0.0
    %1486 = vmatpush1.msra.mxu0 0.0
    %1487 = vmatprep.subr.mxu0 0.0
    %1488 = vmatpush1.msra.mxu0 0.0
    %1489 = vmatprep.subr.mxu0 0.0
    %1490 = vmatpush1.msra.mxu0 0.0
    %1491 = vmatprep.subr.mxu0 0.0
    %1492 = vmatpush1.msra.mxu0 0.0
    %1493 = vmatprep.subr.mxu0 0.0
    %1494 = vmatpush1.msra.mxu0 0.0
    %1495 = vmatprep.subr.mxu0 0.0
    %1496 = vmatpush1.msra.mxu0 0.0
    %1497 = vmatprep.subr.mxu0 0.0
    %1498 = vmatpush1.msra.mxu0 0.0
    %1499 = vmatprep.subr.mxu0 0.0
    %1500 = vmatpush1.msra.mxu0 0.0
    %1501 = vmatprep.subr.mxu0 0.0
    %1502 = vmatpush1.msra.mxu0 0.0
    %1503 = vmatprep.subr.mxu0 0.0
    %1504 = vmatpush1.msra.mxu0 0.0
    %1505 = vmatprep.subr.mxu0 0.0
    %1506 = vmatpush1.msra.mxu0 0.0
    %1507 = vmatprep.subr.mxu0 0.0
    %1508 = vmatpush1.msra.mxu0 0.0
    %1509 = vmatprep.subr.mxu0 0.0
    %1510 = vmatpush1.msra.mxu0 0.0
    %1511 = vmatprep.subr.mxu0 0.0
    %1512 = vmatpush1.msra.mxu0 0.0
    %1513 = vmatprep.subr.mxu0 0.0
    %1514 = vmatpush1.msra.mxu0 0.0
    %1515 = vmatprep.subr.mxu0 0.0
    %1516 = vmatpush1.msra.mxu0 0.0
    %1517 = vmatprep.subr.mxu0 0.0
    %1518 = vmatpush1.msra.mxu0 0.0
    %1519 = vmatprep.subr.mxu0 0.0
    %1520 = vmatpush1.msra.mxu0 0.0
    %1521 = vmatprep.subr.mxu0 0.0
    %1522 = vmatpush1.msra.mxu0 0.0
    %1523 = vmatprep.subr.mxu0 0.0
    %1524 = vmatpush1.msra.mxu0 0.0
    %1525 = vmatprep.subr.mxu0 0.0
    %1526 = vmatpush1.msra.mxu0 0.0
    %1527 = vmatprep.subr.mxu0 0.0
    %1528 = vmatpush1.msra.mxu0 0.0
    %1529 = vmatprep.subr.mxu0 0.0
    %1530 = vmatpush1.msra.mxu0 0.0
    %1531 = vmatprep.subr.mxu0 0.0
    %1532 = vmatpush1.msra.mxu0 0.0
    %1533 = vmatprep.subr.mxu0 0.0
    %1534 = vmatpush1.msra.mxu0 0.0
    %1535 = vmatprep.subr.mxu0 0.0
    %1536 = vmatpush1.msra.mxu0 0.0
    %1537 = vmatprep.subr.mxu0 0.0
    %1538 = vmatpush1.msra.mxu0 0.0
    %1539 = vmatprep.subr.mxu0 0.0
    %1540 = vmatpush1.msra.mxu0 0.0
    %1541 = vmatprep.subr.mxu0 0.0
    %1542 = vmatpush1.msra.mxu0 0.0
    %1543 = vmatprep.mubr.f32.mxu0 0.0
    %1544 = vmatmul.mubr.f32.gmra.mrb[0].mxu0 %v1474
    %v1545 = vpop.f32.mrb[0].mxu0
    %v1546 = vadd.f32 %v1471, %v1545
    %v1547 = vpop.f32.mrb[0].mxu0
    %1548 = vmatprep.mubr.f32.mxu0 0.0
    %1549 = vmatmul.mubr.f32.gmra.mrb[0].mxu0 %v1477
    %v1550 = vpop.f32.mrb[0].mxu0
    %v1551 = vadd.f32 %v1471, %v1550
    %v1552 = vpop.f32.mrb[0].mxu0
    %1553 = vdwg.mxu0
    %v1554 = vmul.f32 %v1546, 0.5
    %v1555 = vmul.f32 %v1551, 0.5
    %v1556 = vmul.f32 %v1546, 0.70710677
    %v1557 = vmul.f32 %v1551, 0.70710677
    %vm1558 = vcmp.ge.f32.partialorder %v1556, 0.0
    %vm1559 = vcmp.ge.f32.partialorder %v1557, 0.0
    %v1560 = vsel %vm1558, 1.0, -1.0
    %v1561 = vsel %vm1559, 1.0, -1.0
    %v1562 = vand.u32 2147483647, %v1556
    %v1563 = vand.u32 2147483647, %v1557
    %v1564 = vmul.f32 %v1562, 0.3275911
    %v1565 = vmul.f32 %v1563, 0.3275911
    %v1566 = vadd.f32 %v1564, 1.0
    %v1567 = vadd.f32 %v1565, 1.0
    %v1568 = vrcp.pop %v1566
    %v1569 = vmul.f32 1.0, %v1568
    %v1570 = vrcp.pop %v1567
    %v1571 = vmul.f32 1.0, %v1570
    %v1572 = vmul.f32 %v1569, 1.0614054
    %v1573 = vmul.f32 %v1571, 1.0614054
    %v1574 = vadd.f32 %v1572, -1.4531521
    %v1575 = vadd.f32 %v1573, -1.4531521
    %v1576 = vmul.f32 %v1574, %v1569
    %v1577 = vmul.f32 %v1575, %v1571
    %v1578 = vadd.f32 %v1576, 1.4214138
    %v1579 = vadd.f32 %v1577, 1.4214138
    %v1580 = vmul.f32 %v1578, %v1569
    %v1581 = vmul.f32 %v1579, %v1571
    %v1582 = vadd.f32 %v1580, -0.28449672
    %v1583 = vadd.f32 %v1581, -0.28449672
    %v1584 = vmul.f32 %v1582, %v1569
    %v1585 = vmul.f32 %v1583, %v1571
    %v1586 = vadd.f32 %v1584, 0.2548296
    %v1587 = vadd.f32 %v1585, 0.2548296
    %v1588 = vmul.f32 %v1586, %v1569
    %v1589 = vmul.f32 %v1587, %v1571
    %v1590 = vsub.f32 0.0, %v1562
    %v1591 = vsub.f32 0.0, %v1563
    %v1592 = vmul.f32 %v1590, %v1562
    %v1593 = vmul.f32 %v1591, %v1563
    %v1594 = vmul.f32 %v1592, 1.442695
    %v1595 = vpow.pop %v1594
    %v1596 = vmul.f32 %v1593, 1.442695
    %v1597 = vpow.pop %v1596
    %v1598 = vmul.f32 %v1588, %v1595
    %v1599 = vmul.f32 %v1589, %v1597
    %v1600 = vsub.f32 1.0, %v1598
    %v1601 = vsub.f32 1.0, %v1599
    %v1602 = vmul.f32 %v1560, %v1600
    %v1603 = vmul.f32 %v1561, %v1601
    %v1604 = vadd.f32 %v1602, 1.0
    %v1605 = vadd.f32 %v1603, 1.0
    %v1606 = vmul.f32 %v1554, %v1604
    %v1607 = vmul.f32 %v1555, %v1605
    %v1608 = vld [vmem:[%s13] sm:$0xff]
    %v1609 = vld [vmem:[%s13 + $0x8] sm:$0xff]
    %v1610 = vld [vmem:[%s13 + $0x10] sm:$0xff]
    %v1611 = vld [vmem:[%s13 + $0x18] sm:$0xff]
    %v1612 = vld [vmem:[#allocation21] sm:$0x1]
    %v1614 = vlaneseq
    %v1615 = vshrl.u32 %v1614, 7
    %v1616 = vsub.s32 0, %v1615
    %v1617 = vrot.slane %v1612, %v1616
    %v1620 = vsel %vm391, %v1606, 0
    %v1623 = vsel %vm391, %v1607, 0
    %1625 = vmatprep.subr.mxu0 0.0
    %1626 = vmatpush1.msra.mxu0 %v1608
    %1627 = vmatprep.subr.mxu0 0.0
    %1628 = vmatpush1.msra.mxu0 %v1609
    %1629 = vmatprep.subr.mxu0 0.0
    %1630 = vmatpush1.msra.mxu0 %v1610
    %1631 = vmatprep.subr.mxu0 0.0
    %1632 = vmatpush1.msra.mxu0 %v1611
    %1633 = vmatprep.subr.mxu0 0.0
    %1634 = vmatpush1.msra.mxu0 0.0
    %1635 = vmatprep.subr.mxu0 0.0
    %1636 = vmatpush1.msra.mxu0 0.0
    %1637 = vmatprep.subr.mxu0 0.0
    %1638 = vmatpush1.msra.mxu0 0.0
    %1639 = vmatprep.subr.mxu0 0.0
    %1640 = vmatpush1.msra.mxu0 0.0
    %1641 = vmatprep.subr.mxu0 0.0
    %1642 = vmatpush1.msra.mxu0 0.0
    %1643 = vmatprep.subr.mxu0 0.0
    %1644 = vmatpush1.msra.mxu0 0.0
    %1645 = vmatprep.subr.mxu0 0.0
    %1646 = vmatpush1.msra.mxu0 0.0
    %1647 = vmatprep.subr.mxu0 0.0
    %1648 = vmatpush1.msra.mxu0 0.0
    %1649 = vmatprep.subr.mxu0 0.0
    %1650 = vmatpush1.msra.mxu0 0.0
    %1651 = vmatprep.subr.mxu0 0.0
    %1652 = vmatpush1.msra.mxu0 0.0
    %1653 = vmatprep.subr.mxu0 0.0
    %1654 = vmatpush1.msra.mxu0 0.0
    %1655 = vmatprep.subr.mxu0 0.0
    %1656 = vmatpush1.msra.mxu0 0.0
    %1657 = vmatprep.subr.mxu0 0.0
    %1658 = vmatpush1.msra.mxu0 0.0
    %1659 = vmatprep.subr.mxu0 0.0
    %1660 = vmatpush1.msra.mxu0 0.0
    %1661 = vmatprep.subr.mxu0 0.0
    %1662 = vmatpush1.msra.mxu0 0.0
    %1663 = vmatprep.subr.mxu0 0.0
    %1664 = vmatpush1.msra.mxu0 0.0
    %1665 = vmatprep.subr.mxu0 0.0
    %1666 = vmatpush1.msra.mxu0 0.0
    %1667 = vmatprep.subr.mxu0 0.0
    %1668 = vmatpush1.msra.mxu0 0.0
    %1669 = vmatprep.subr.mxu0 0.0
    %1670 = vmatpush1.msra.mxu0 0.0
    %1671 = vmatprep.subr.mxu0 0.0
    %1672 = vmatpush1.msra.mxu0 0.0
    %1673 = vmatprep.subr.mxu0 0.0
    %1674 = vmatpush1.msra.mxu0 0.0
    %1675 = vmatprep.subr.mxu0 0.0
    %1676 = vmatpush1.msra.mxu0 0.0
    %1677 = vmatprep.subr.mxu0 0.0
    %1678 = vmatpush1.msra.mxu0 0.0
    %1679 = vmatprep.subr.mxu0 0.0
    %1680 = vmatpush1.msra.mxu0 0.0
    %1681 = vmatprep.subr.mxu0 0.0
    %1682 = vmatpush1.msra.mxu0 0.0
    %1683 = vmatprep.subr.mxu0 0.0
    %1684 = vmatpush1.msra.mxu0 0.0
    %1685 = vmatprep.subr.mxu0 0.0
    %1686 = vmatpush1.msra.mxu0 0.0
    %1687 = vmatprep.subr.mxu0 0.0
    %1688 = vmatpush1.msra.mxu0 0.0
    %1689 = vmatprep.mubr.f32.mxu0 0.0
    %1690 = vmatmul.mubr.f32.gmra.mrb[0].mxu0 %v1620
    %v1691 = vpop.f32.mrb[0].mxu0
    %v1692 = vadd.f32 %v1617, %v1691
    %v1693 = vpop.f32.mrb[0].mxu0
    %1694 = vmatprep.mubr.f32.mxu0 0.0
    %1695 = vmatmul.mubr.f32.gmra.mrb[0].mxu0 %v1623
    %v1696 = vpop.f32.mrb[0].mxu0
    %v1697 = vadd.f32 %v1617, %v1696
    %v1698 = vpop.f32.mrb[0].mxu0
    %1699 = vdwg.mxu0
    %v1700 = vadd.f32 %v1432, %v1692
    %v1701 = vadd.f32 %v1433, %v1697
    %s1702 = scalar_lea.vmem %s5, 1
    %v1703 = vld [vmem:[%s1702] sm:$0x1]
    %s1704 = scalar_lea.vmem %s6, 1
    %v1705 = vld [vmem:[%s1704] sm:$0x1]
    %v1706 = vsel %vm389, %v1700, 0.0
    %1707 = vadd.xlane.f32.xlu0 %v1706
    %v1708 = vpop.xlane.xlu0 %1707
    %v1709 = vsel %vm518, %v1701, 0.0
    %1710 = vadd.xlane.f32.xlu0 %v1709
    %v1711 = vpop.xlane.xlu0 %1710
    %v1712 = vmul.f32 %v1708, %v522
    %v1713 = vmul.f32 %v1711, %v522
    %v1714 = vsub.f32 %v1700, %v1712
    %v1715 = vsub.f32 %v1701, %v1713
    %v1716 = vmul.f32 %v1714, %v1714
    %v1717 = vmul.f32 %v1715, %v1715
    %v1718 = vsel %vm389, %v1716, 0.0
    %1719 = vadd.xlane.f32.xlu0 %v1718
    %v1720 = vpop.xlane.xlu0 %1719
    %v1721 = vsel %vm518, %v1717, 0.0
    %1722 = vadd.xlane.f32.xlu0 %v1721
    %v1723 = vpop.xlane.xlu0 %1722
    %v1724 = vmul.f32 %v1720, %v522
    %v1725 = vmul.f32 %v1723, %v522
    %v1726 = vadd.f32 %v1724, 1e-05
    %v1727 = vadd.f32 %v1725, 1e-05
    %v1728 = vrsqrt.pop %v1726
    %v1729 = vrsqrt.pop %v1727
    %v1730 = vmul.f32 %v1714, %v1728
    %v1731 = vmul.f32 %v1715, %v1729
    %v1733 = vlaneseq
    %v1734 = vshrl.u32 %v1733, 7
    %v1735 = vsub.s32 0, %v1734
    %v1736 = vrot.slane %v1703, %v1735
    %v1738 = vmul.f32 %v1730, %v1736
    %v1739 = vmul.f32 %v1731, %v1736
    %v1741 = vlaneseq
    %v1742 = vshrl.u32 %v1741, 7
    %v1743 = vsub.s32 0, %v1742
    %v1744 = vrot.slane %v1705, %v1743
    %v1746 = vadd.f32 %v1738, %v1744
    %v1747 = vadd.f32 %v1739, %v1744
    %s1748 = scalar_lea.vmem [#allocation12], 16
    %v1749 = vld [vmem:[%s1748] sm:$0xff]
    %v1750 = vld [vmem:[%s1748 + $0x8] sm:$0xff]
    %s1751 = scalar_lea.vmem [#allocation13], 1
    %v1752 = vld [vmem:[%s1751] sm:$0x1]
    %v1754 = vlaneseq
    %v1755 = vshrl.u32 %v1754, 7
    %v1756 = vsub.s32 0, %v1755
    %v1757 = vrot.slane %v1752, %v1756
    %v1760 = vsel %vm389, %v1746, 0
    %v1763 = vsel %vm389, %v1747, 0
    %1765 = vmatprep.subr.mxu0 0.0
    %1766 = vmatpush1.msra.mxu0 %v1749
    %1767 = vmatprep.subr.mxu0 0.0
    %1768 = vmatpush1.msra.mxu0 %v1750
    %1769 = vmatprep.subr.mxu0 0.0
    %1770 = vmatpush1.msra.mxu0 0.0
    %1771 = vmatprep.subr.mxu0 0.0
    %1772 = vmatpush1.msra.mxu0 0.0
    %1773 = vmatprep.subr.mxu0 0.0
    %1774 = vmatpush1.msra.mxu0 0.0
    %1775 = vmatprep.subr.mxu0 0.0
    %1776 = vmatpush1.msra.mxu0 0.0
    %1777 = vmatprep.subr.mxu0 0.0
    %1778 = vmatpush1.msra.mxu0 0.0
    %1779 = vmatprep.subr.mxu0 0.0
    %1780 = vmatpush1.msra.mxu0 0.0
    %1781 = vmatprep.subr.mxu0 0.0
    %1782 = vmatpush1.msra.mxu0 0.0
    %1783 = vmatprep.subr.mxu0 0.0
    %1784 = vmatpush1.msra.mxu0 0.0
    %1785 = vmatprep.subr.mxu0 0.0
    %1786 = vmatpush1.msra.mxu0 0.0
    %1787 = vmatprep.subr.mxu0 0.0
    %1788 = vmatpush1.msra.mxu0 0.0
    %1789 = vmatprep.subr.mxu0 0.0
    %1790 = vmatpush1.msra.mxu0 0.0
    %1791 = vmatprep.subr.mxu0 0.0
    %1792 = vmatpush1.msra.mxu0 0.0
    %1793 = vmatprep.subr.mxu0 0.0
    %1794 = vmatpush1.msra.mxu0 0.0
    %1795 = vmatprep.subr.mxu0 0.0
    %1796 = vmatpush1.msra.mxu0 0.0
    %1797 = vmatprep.subr.mxu0 0.0
    %1798 = vmatpush1.msra.mxu0 0.0
    %1799 = vmatprep.subr.mxu0 0.0
    %1800 = vmatpush1.msra.mxu0 0.0
    %1801 = vmatprep.subr.mxu0 0.0
    %1802 = vmatpush1.msra.mxu0 0.0
    %1803 = vmatprep.subr.mxu0 0.0
    %1804 = vmatpush1.msra.mxu0 0.0
    %1805 = vmatprep.subr.mxu0 0.0
    %1806 = vmatpush1.msra.mxu0 0.0
    %1807 = vmatprep.subr.mxu0 0.0
    %1808 = vmatpush1.msra.mxu0 0.0
    %1809 = vmatprep.subr.mxu0 0.0
    %1810 = vmatpush1.msra.mxu0 0.0
    %1811 = vmatprep.subr.mxu0 0.0
    %1812 = vmatpush1.msra.mxu0 0.0
    %1813 = vmatprep.subr.mxu0 0.0
    %1814 = vmatpush1.msra.mxu0 0.0
    %1815 = vmatprep.subr.mxu0 0.0
    %1816 = vmatpush1.msra.mxu0 0.0
    %1817 = vmatprep.subr.mxu0 0.0
    %1818 = vmatpush1.msra.mxu0 0.0
    %1819 = vmatprep.subr.mxu0 0.0
    %1820 = vmatpush1.msra.mxu0 0.0
    %1821 = vmatprep.subr.mxu0 0.0
    %1822 = vmatpush1.msra.mxu0 0.0
    %1823 = vmatprep.subr.mxu0 0.0
    %1824 = vmatpush1.msra.mxu0 0.0
    %1825 = vmatprep.subr.mxu0 0.0
    %1826 = vmatpush1.msra.mxu0 0.0
    %1827 = vmatprep.subr.mxu0 0.0
    %1828 = vmatpush1.msra.mxu0 0.0
    %1829 = vmatprep.mubr.f32.mxu0 0.0
    %1830 = vmatmul.mubr.f32.gmra.mrb[0].mxu0 %v1760
    %v1831 = vpop.f32.mrb[0].mxu0
    %v1832 = vadd.f32 %v1757, %v1831
    %v1833 = vpop.f32.mrb[0].mxu0
    %1834 = vmatprep.mubr.f32.mxu0 0.0
    %1835 = vmatmul.mubr.f32.gmra.mrb[0].mxu0 %v1763
    %v1836 = vpop.f32.mrb[0].mxu0
    %v1837 = vadd.f32 %v1757, %v1836
    %v1838 = vpop.f32.mrb[0].mxu0
    %1839 = vdwg.mxu0
    %v1840 = vmul.f32 %v1832, 0.35355338
    %1842 = vrot.lane.b32.xlu0 %v1832, 112
    %v1843 = vpop.permute.xlu0 %1842
    %v1845 = vsel %vm653, %v1840, 0
    %v1847 = vsel %vm653, %v1843, 0
    %1849 = vmatprep.subr.mxu0 0.0
    %1850 = vmatpush1.xpose.msra.mxu0 %v1847
    %1851 = vmatprep.subr.mxu0 0.0
    %1852 = vmatpush1.xpose.msra.mxu0 0.0
    %1853 = vmatprep.subr.mxu0 0.0
    %1854 = vmatpush1.xpose.msra.mxu0 0.0
    %1855 = vmatprep.subr.mxu0 0.0
    %1856 = vmatpush1.xpose.msra.mxu0 0.0
    %1857 = vmatprep.subr.mxu0 0.0
    %1858 = vmatpush1.xpose.msra.mxu0 0.0
    %1859 = vmatprep.subr.mxu0 0.0
    %1860 = vmatpush1.xpose.msra.mxu0 0.0
    %1861 = vmatprep.subr.mxu0 0.0
    %1862 = vmatpush1.xpose.msra.mxu0 0.0
    %1863 = vmatprep.subr.mxu0 0.0
    %1864 = vmatpush1.xpose.msra.mxu0 0.0
    %1865 = vmatprep.subr.mxu0 0.0
    %1866 = vmatpush1.xpose.msra.mxu0 0.0
    %1867 = vmatprep.subr.mxu0 0.0
    %1868 = vmatpush1.xpose.msra.mxu0 0.0
    %1869 = vmatprep.subr.mxu0 0.0
    %1870 = vmatpush1.xpose.msra.mxu0 0.0
    %1871 = vmatprep.subr.mxu0 0.0
    %1872 = vmatpush1.xpose.msra.mxu0 0.0
    %1873 = vmatprep.subr.mxu0 0.0
    %1874 = vmatpush1.xpose.msra.mxu0 0.0
    %1875 = vmatprep.subr.mxu0 0.0
    %1876 = vmatpush1.xpose.msra.mxu0 0.0
    %1877 = vmatprep.subr.mxu0 0.0
    %1878 = vmatpush1.xpose.msra.mxu0 0.0
    %1879 = vmatprep.subr.mxu0 0.0
    %1880 = vmatpush1.xpose.msra.mxu0 0.0
    %1881 = vmatprep.subr.mxu0 0.0
    %1882 = vmatpush1.xpose.msra.mxu0 0.0
    %1883 = vmatprep.subr.mxu0 0.0
    %1884 = vmatpush1.xpose.msra.mxu0 0.0
    %1885 = vmatprep.subr.mxu0 0.0
    %1886 = vmatpush1.xpose.msra.mxu0 0.0
    %1887 = vmatprep.subr.mxu0 0.0
    %1888 = vmatpush1.xpose.msra.mxu0 0.0
    %1889 = vmatprep.subr.mxu0 0.0
    %1890 = vmatpush1.xpose.msra.mxu0 0.0
    %1891 = vmatprep.subr.mxu0 0.0
    %1892 = vmatpush1.xpose.msra.mxu0 0.0
    %1893 = vmatprep.subr.mxu0 0.0
    %1894 = vmatpush1.xpose.msra.mxu0 0.0
    %1895 = vmatprep.subr.mxu0 0.0
    %1896 = vmatpush1.xpose.msra.mxu0 0.0
    %1897 = vmatprep.subr.mxu0 0.0
    %1898 = vmatpush1.xpose.msra.mxu0 0.0
    %1899 = vmatprep.subr.mxu0 0.0
    %1900 = vmatpush1.xpose.msra.mxu0 0.0
    %1901 = vmatprep.subr.mxu0 0.0
    %1902 = vmatpush1.xpose.msra.mxu0 0.0
    %1903 = vmatprep.subr.mxu0 0.0
    %1904 = vmatpush1.xpose.msra.mxu0 0.0
    %1905 = vmatprep.subr.mxu0 0.0
    %1906 = vmatpush1.xpose.msra.mxu0 0.0
    %1907 = vmatprep.subr.mxu0 0.0
    %1908 = vmatpush1.xpose.msra.mxu0 0.0
    %1909 = vmatprep.subr.mxu0 0.0
    %1910 = vmatpush1.xpose.msra.mxu0 0.0
    %1911 = vmatprep.subr.mxu0 0.0
    %1912 = vmatpush1.xpose.msra.mxu0 0.0
    %1913 = vmatprep.mubr.f32.mxu0 0.0
    %1914 = vmatmul.mubr.f32.gmra.mrb[0].mxu0 %v1845
    %v1915 = vpop.f32.mrb[0].mxu0
    %v1916 = vadd.f32 0.0, %v1915
    %v1917 = vpop.f32.mrb[0].mxu0
    %1918 = vdwg.mxu0
    %v1919 = vsel %vm729, %v1916, -inf
    %1920 = vmax.xlane.f32.xlu0 %v1919
    %v1921 = vpop.xlane.xlu0 %1920
    %v1922 = vsub.f32 %v1916, %v1921
    %v1923 = vmul.f32 %v1922, 1.442695
    %v1924 = vpow.pop %v1923
    %v1925 = vsel %vm729, %v1924, 0.0
    %1926 = vadd.xlane.f32.xlu0 %v1925
    %v1927 = vpop.xlane.xlu0 %1926
    %v1928 = vrcp.pop %v1927
    %v1929 = vmul.f32 %v1924, %v1928
    %1930 = vrot.lane.b32.xlu0 %v1832, 96
    %v1931 = vpop.permute.xlu0 %1930
    %v1933 = vsel %vm743, %v1929, 0
    %v1935 = vsel %vm747, %v1931, 0
    %1937 = vmatprep.subr.mxu0 0.0
    %1938 = vmatpush1.msra.mxu0 %v1935
    %1939 = vmatprep.subr.mxu0 0.0
    %1940 = vmatpush1.msra.mxu0 0.0
    %1941 = vmatprep.subr.mxu0 0.0
    %1942 = vmatpush1.msra.mxu0 0.0
    %1943 = vmatprep.subr.mxu0 0.0
    %1944 = vmatpush1.msra.mxu0 0.0
    %1945 = vmatprep.subr.mxu0 0.0
    %1946 = vmatpush1.msra.mxu0 0.0
    %1947 = vmatprep.subr.mxu0 0.0
    %1948 = vmatpush1.msra.mxu0 0.0
    %1949 = vmatprep.subr.mxu0 0.0
    %1950 = vmatpush1.msra.mxu0 0.0
    %1951 = vmatprep.subr.mxu0 0.0
    %1952 = vmatpush1.msra.mxu0 0.0
    %1953 = vmatprep.subr.mxu0 0.0
    %1954 = vmatpush1.msra.mxu0 0.0
    %1955 = vmatprep.subr.mxu0 0.0
    %1956 = vmatpush1.msra.mxu0 0.0
    %1957 = vmatprep.subr.mxu0 0.0
    %1958 = vmatpush1.msra.mxu0 0.0
    %1959 = vmatprep.subr.mxu0 0.0
    %1960 = vmatpush1.msra.mxu0 0.0
    %1961 = vmatprep.subr.mxu0 0.0
    %1962 = vmatpush1.msra.mxu0 0.0
    %1963 = vmatprep.subr.mxu0 0.0
    %1964 = vmatpush1.msra.mxu0 0.0
    %1965 = vmatprep.subr.mxu0 0.0
    %1966 = vmatpush1.msra.mxu0 0.0
    %1967 = vmatprep.subr.mxu0 0.0
    %1968 = vmatpush1.msra.mxu0 0.0
    %1969 = vmatprep.subr.mxu0 0.0
    %1970 = vmatpush1.msra.mxu0 0.0
    %1971 = vmatprep.subr.mxu0 0.0
    %1972 = vmatpush1.msra.mxu0 0.0
    %1973 = vmatprep.subr.mxu0 0.0
    %1974 = vmatpush1.msra.mxu0 0.0
    %1975 = vmatprep.subr.mxu0 0.0
    %1976 = vmatpush1.msra.mxu0 0.0
    %1977 = vmatprep.subr.mxu0 0.0
    %1978 = vmatpush1.msra.mxu0 0.0
    %1979 = vmatprep.subr.mxu0 0.0
    %1980 = vmatpush1.msra.mxu0 0.0
    %1981 = vmatprep.subr.mxu0 0.0
    %1982 = vmatpush1.msra.mxu0 0.0
    %1983 = vmatprep.subr.mxu0 0.0
    %1984 = vmatpush1.msra.mxu0 0.0
    %1985 = vmatprep.subr.mxu0 0.0
    %1986 = vmatpush1.msra.mxu0 0.0
    %1987 = vmatprep.subr.mxu0 0.0
    %1988 = vmatpush1.msra.mxu0 0.0
    %1989 = vmatprep.subr.mxu0 0.0
    %1990 = vmatpush1.msra.mxu0 0.0
    %1991 = vmatprep.subr.mxu0 0.0
    %1992 = vmatpush1.msra.mxu0 0.0
    %1993 = vmatprep.subr.mxu0 0.0
    %1994 = vmatpush1.msra.mxu0 0.0
    %1995 = vmatprep.subr.mxu0 0.0
    %1996 = vmatpush1.msra.mxu0 0.0
    %1997 = vmatprep.subr.mxu0 0.0
    %1998 = vmatpush1.msra.mxu0 0.0
    %1999 = vmatprep.subr.mxu0 0.0
    %2000 = vmatpush1.msra.mxu0 0.0
    %2001 = vmatprep.mubr.f32.mxu0 0.0
    %2002 = vmatmul.mubr.f32.gmra.mrb[0].mxu0 %v1933
    %v2003 = vpop.f32.mrb[0].mxu0
    %v2004 = vadd.f32 0.0, %v2003
    %v2005 = vpop.f32.mrb[0].mxu0
    %2006 = vdwg.mxu0
    %2007 = vst.msk [vmem:[#allocation3] sm:$0x1f] %vm820, %v2004
    %2008 = vrot.lane.b32.xlu0 %v1840, 120
    %v2009 = vpop.permute.xlu0 %2008
    %2010 = vrot.lane.b32.xlu0 %v1832, 104
    %v2011 = vpop.permute.xlu0 %2010
    %v2012 = vsel %vm653, %v2009, 0
    %v2014 = vsel %vm653, %v2011, 0
    %2016 = vmatprep.subr.mxu0 0.0
    %2017 = vmatpush1.xpose.msra.mxu0 %v2014
    %2018 = vmatprep.subr.mxu0 0.0
    %2019 = vmatpush1.xpose.msra.mxu0 0.0
    %2020 = vmatprep.subr.mxu0 0.0
    %2021 = vmatpush1.xpose.msra.mxu0 0.0
    %2022 = vmatprep.subr.mxu0 0.0
    %2023 = vmatpush1.xpose.msra.mxu0 0.0
    %2024 = vmatprep.subr.mxu0 0.0
    %2025 = vmatpush1.xpose.msra.mxu0 0.0
    %2026 = vmatprep.subr.mxu0 0.0
    %2027 = vmatpush1.xpose.msra.mxu0 0.0
    %2028 = vmatprep.subr.mxu0 0.0
    %2029 = vmatpush1.xpose.msra.mxu0 0.0
    %2030 = vmatprep.subr.mxu0 0.0
    %2031 = vmatpush1.xpose.msra.mxu0 0.0
    %2032 = vmatprep.subr.mxu0 0.0
    %2033 = vmatpush1.xpose.msra.mxu0 0.0
    %2034 = vmatprep.subr.mxu0 0.0
    %2035 = vmatpush1.xpose.msra.mxu0 0.0
    %2036 = vmatprep.subr.mxu0 0.0
    %2037 = vmatpush1.xpose.msra.mxu0 0.0
    %2038 = vmatprep.subr.mxu0 0.0
    %2039 = vmatpush1.xpose.msra.mxu0 0.0
    %2040 = vmatprep.subr.mxu0 0.0
    %2041 = vmatpush1.xpose.msra.mxu0 0.0
    %2042 = vmatprep.subr.mxu0 0.0
    %2043 = vmatpush1.xpose.msra.mxu0 0.0
    %2044 = vmatprep.subr.mxu0 0.0
    %2045 = vmatpush1.xpose.msra.mxu0 0.0
    %2046 = vmatprep.subr.mxu0 0.0
    %2047 = vmatpush1.xpose.msra.mxu0 0.0
    %2048 = vmatprep.subr.mxu0 0.0
    %2049 = vmatpush1.xpose.msra.mxu0 0.0
    %2050 = vmatprep.subr.mxu0 0.0
    %2051 = vmatpush1.xpose.msra.mxu0 0.0
    %2052 = vmatprep.subr.mxu0 0.0
    %2053 = vmatpush1.xpose.msra.mxu0 0.0
    %2054 = vmatprep.subr.mxu0 0.0
    %2055 = vmatpush1.xpose.msra.mxu0 0.0
    %2056 = vmatprep.subr.mxu0 0.0
    %2057 = vmatpush1.xpose.msra.mxu0 0.0
    %2058 = vmatprep.subr.mxu0 0.0
    %2059 = vmatpush1.xpose.msra.mxu0 0.0
    %2060 = vmatprep.subr.mxu0 0.0
    %2061 = vmatpush1.xpose.msra.mxu0 0.0
    %2062 = vmatprep.subr.mxu0 0.0
    %2063 = vmatpush1.xpose.msra.mxu0 0.0
    %2064 = vmatprep.subr.mxu0 0.0
    %2065 = vmatpush1.xpose.msra.mxu0 0.0
    %2066 = vmatprep.subr.mxu0 0.0
    %2067 = vmatpush1.xpose.msra.mxu0 0.0
    %2068 = vmatprep.subr.mxu0 0.0
    %2069 = vmatpush1.xpose.msra.mxu0 0.0
    %2070 = vmatprep.subr.mxu0 0.0
    %2071 = vmatpush1.xpose.msra.mxu0 0.0
    %2072 = vmatprep.subr.mxu0 0.0
    %2073 = vmatpush1.xpose.msra.mxu0 0.0
    %2074 = vmatprep.subr.mxu0 0.0
    %2075 = vmatpush1.xpose.msra.mxu0 0.0
    %2076 = vmatprep.subr.mxu0 0.0
    %2077 = vmatpush1.xpose.msra.mxu0 0.0
    %2078 = vmatprep.subr.mxu0 0.0
    %2079 = vmatpush1.xpose.msra.mxu0 0.0
    %2080 = vmatprep.mubr.f32.mxu0 0.0
    %2081 = vmatmul.mubr.f32.gmra.mrb[0].mxu0 %v2012
    %v2082 = vpop.f32.mrb[0].mxu0
    %v2083 = vadd.f32 0.0, %v2082
    %v2084 = vpop.f32.mrb[0].mxu0
    %2085 = vdwg.mxu0
    %v2086 = vsel %vm729, %v2083, -inf
    %2087 = vmax.xlane.f32.xlu0 %v2086
    %v2088 = vpop.xlane.xlu0 %2087
    %v2089 = vsub.f32 %v2083, %v2088
    %v2090 = vmul.f32 %v2089, 1.442695
    %v2091 = vpow.pop %v2090
    %v2092 = vsel %vm729, %v2091, 0.0
    %2093 = vadd.xlane.f32.xlu0 %v2092
    %v2094 = vpop.xlane.xlu0 %2093
    %v2095 = vrcp.pop %v2094
    %v2096 = vmul.f32 %v2091, %v2095
    %2097 = vrot.lane.b32.xlu0 %v1832, 88
    %v2098 = vpop.permute.xlu0 %2097
    %v2100 = vsel %vm743, %v2096, 0
    %v2102 = vsel %vm747, %v2098, 0
    %2104 = vmatprep.subr.mxu0 0.0
    %2105 = vmatpush1.msra.mxu0 %v2102
    %2106 = vmatprep.subr.mxu0 0.0
    %2107 = vmatpush1.msra.mxu0 0.0
    %2108 = vmatprep.subr.mxu0 0.0
    %2109 = vmatpush1.msra.mxu0 0.0
    %2110 = vmatprep.subr.mxu0 0.0
    %2111 = vmatpush1.msra.mxu0 0.0
    %2112 = vmatprep.subr.mxu0 0.0
    %2113 = vmatpush1.msra.mxu0 0.0
    %2114 = vmatprep.subr.mxu0 0.0
    %2115 = vmatpush1.msra.mxu0 0.0
    %2116 = vmatprep.subr.mxu0 0.0
    %2117 = vmatpush1.msra.mxu0 0.0
    %2118 = vmatprep.subr.mxu0 0.0
    %2119 = vmatpush1.msra.mxu0 0.0
    %2120 = vmatprep.subr.mxu0 0.0
    %2121 = vmatpush1.msra.mxu0 0.0
    %2122 = vmatprep.subr.mxu0 0.0
    %2123 = vmatpush1.msra.mxu0 0.0
    %2124 = vmatprep.subr.mxu0 0.0
    %2125 = vmatpush1.msra.mxu0 0.0
    %2126 = vmatprep.subr.mxu0 0.0
    %2127 = vmatpush1.msra.mxu0 0.0
    %2128 = vmatprep.subr.mxu0 0.0
    %2129 = vmatpush1.msra.mxu0 0.0
    %2130 = vmatprep.subr.mxu0 0.0
    %2131 = vmatpush1.msra.mxu0 0.0
    %2132 = vmatprep.subr.mxu0 0.0
    %2133 = vmatpush1.msra.mxu0 0.0
    %2134 = vmatprep.subr.mxu0 0.0
    %2135 = vmatpush1.msra.mxu0 0.0
    %2136 = vmatprep.subr.mxu0 0.0
    %2137 = vmatpush1.msra.mxu0 0.0
    %2138 = vmatprep.subr.mxu0 0.0
    %2139 = vmatpush1.msra.mxu0 0.0
    %2140 = vmatprep.subr.mxu0 0.0
    %2141 = vmatpush1.msra.mxu0 0.0
    %2142 = vmatprep.subr.mxu0 0.0
    %2143 = vmatpush1.msra.mxu0 0.0
    %2144 = vmatprep.subr.mxu0 0.0
    %2145 = vmatpush1.msra.mxu0 0.0
    %2146 = vmatprep.subr.mxu0 0.0
    %2147 = vmatpush1.msra.mxu0 0.0
    %2148 = vmatprep.subr.mxu0 0.0
    %2149 = vmatpush1.msra.mxu0 0.0
    %2150 = vmatprep.subr.mxu0 0.0
    %2151 = vmatpush1.msra.mxu0 0.0
    %2152 = vmatprep.subr.mxu0 0.0
    %2153 = vmatpush1.msra.mxu0 0.0
    %2154 = vmatprep.subr.mxu0 0.0
    %2155 = vmatpush1.msra.mxu0 0.0
    %2156 = vmatprep.subr.mxu0 0.0
    %2157 = vmatpush1.msra.mxu0 0.0
    %2158 = vmatprep.subr.mxu0 0.0
    %2159 = vmatpush1.msra.mxu0 0.0
    %2160 = vmatprep.subr.mxu0 0.0
    %2161 = vmatpush1.msra.mxu0 0.0
    %2162 = vmatprep.subr.mxu0 0.0
    %2163 = vmatpush1.msra.mxu0 0.0
    %2164 = vmatprep.subr.mxu0 0.0
    %2165 = vmatpush1.msra.mxu0 0.0
    %2166 = vmatprep.subr.mxu0 0.0
    %2167 = vmatpush1.msra.mxu0 0.0
    %2168 = vmatprep.mubr.f32.mxu0 0.0
    %2169 = vmatmul.mubr.f32.gmra.mrb[0].mxu0 %v2100
    %v2170 = vpop.f32.mrb[0].mxu0
    %v2171 = vadd.f32 0.0, %v2170
    %v2172 = vpop.f32.mrb[0].mxu0
    %2173 = vdwg.mxu0
    %2175 = vrot.lane.b32.xlu0 %v2171, 8
    %v2176 = vpop.permute.xlu0 %2175
    %2178 = vst.msk [vmem:[#allocation3] sm:$0x1f] %vm992, %v2176
    %v2179 = vmul.f32 %v1837, 0.35355338
    %v2181 = vrot.slane %v1840, 5
    %v2182 = vrot.slane %v2179, 5
    %v2183 = vsel %vm996, %v2181, %v2182
    %v2185 = vrot.slane %v1832, 5
    %v2186 = vrot.slane %v1837, 5
    %v2187 = vsel %vm996, %v2185, %v2186
    %2188 = vrot.lane.b32.xlu0 %v2187, 112
    %v2189 = vpop.permute.xlu0 %2188
    %v2190 = vsel %vm653, %v2183, 0
    %v2192 = vsel %vm653, %v2189, 0
    %2194 = vmatprep.subr.mxu0 0.0
    %2195 = vmatpush1.xpose.msra.mxu0 %v2192
    %2196 = vmatprep.subr.mxu0 0.0
    %2197 = vmatpush1.xpose.msra.mxu0 0.0
    %2198 = vmatprep.subr.mxu0 0.0
    %2199 = vmatpush1.xpose.msra.mxu0 0.0
    %2200 = vmatprep.subr.mxu0 0.0
    %2201 = vmatpush1.xpose.msra.mxu0 0.0
    %2202 = vmatprep.subr.mxu0 0.0
    %2203 = vmatpush1.xpose.msra.mxu0 0.0
    %2204 = vmatprep.subr.mxu0 0.0
    %2205 = vmatpush1.xpose.msra.mxu0 0.0
    %2206 = vmatprep.subr.mxu0 0.0
    %2207 = vmatpush1.xpose.msra.mxu0 0.0
    %2208 = vmatprep.subr.mxu0 0.0
    %2209 = vmatpush1.xpose.msra.mxu0 0.0
    %2210 = vmatprep.subr.mxu0 0.0
    %2211 = vmatpush1.xpose.msra.mxu0 0.0
    %2212 = vmatprep.subr.mxu0 0.0
    %2213 = vmatpush1.xpose.msra.mxu0 0.0
    %2214 = vmatprep.subr.mxu0 0.0
    %2215 = vmatpush1.xpose.msra.mxu0 0.0
    %2216 = vmatprep.subr.mxu0 0.0
    %2217 = vmatpush1.xpose.msra.mxu0 0.0
    %2218 = vmatprep.subr.mxu0 0.0
    %2219 = vmatpush1.xpose.msra.mxu0 0.0
    %2220 = vmatprep.subr.mxu0 0.0
    %2221 = vmatpush1.xpose.msra.mxu0 0.0
    %2222 = vmatprep.subr.mxu0 0.0
    %2223 = vmatpush1.xpose.msra.mxu0 0.0
    %2224 = vmatprep.subr.mxu0 0.0
    %2225 = vmatpush1.xpose.msra.mxu0 0.0
    %2226 = vmatprep.subr.mxu0 0.0
    %2227 = vmatpush1.xpose.msra.mxu0 0.0
    %2228 = vmatprep.subr.mxu0 0.0
    %2229 = vmatpush1.xpose.msra.mxu0 0.0
    %2230 = vmatprep.subr.mxu0 0.0
    %2231 = vmatpush1.xpose.msra.mxu0 0.0
    %2232 = vmatprep.subr.mxu0 0.0
    %2233 = vmatpush1.xpose.msra.mxu0 0.0
    %2234 = vmatprep.subr.mxu0 0.0
    %2235 = vmatpush1.xpose.msra.mxu0 0.0
    %2236 = vmatprep.subr.mxu0 0.0
    %2237 = vmatpush1.xpose.msra.mxu0 0.0
    %2238 = vmatprep.subr.mxu0 0.0
    %2239 = vmatpush1.xpose.msra.mxu0 0.0
    %2240 = vmatprep.subr.mxu0 0.0
    %2241 = vmatpush1.xpose.msra.mxu0 0.0
    %2242 = vmatprep.subr.mxu0 0.0
    %2243 = vmatpush1.xpose.msra.mxu0 0.0
    %2244 = vmatprep.subr.mxu0 0.0
    %2245 = vmatpush1.xpose.msra.mxu0 0.0
    %2246 = vmatprep.subr.mxu0 0.0
    %2247 = vmatpush1.xpose.msra.mxu0 0.0
    %2248 = vmatprep.subr.mxu0 0.0
    %2249 = vmatpush1.xpose.msra.mxu0 0.0
    %2250 = vmatprep.subr.mxu0 0.0
    %2251 = vmatpush1.xpose.msra.mxu0 0.0
    %2252 = vmatprep.subr.mxu0 0.0
    %2253 = vmatpush1.xpose.msra.mxu0 0.0
    %2254 = vmatprep.subr.mxu0 0.0
    %2255 = vmatpush1.xpose.msra.mxu0 0.0
    %2256 = vmatprep.subr.mxu0 0.0
    %2257 = vmatpush1.xpose.msra.mxu0 0.0
    %2258 = vmatprep.mubr.f32.mxu0 0.0
    %2259 = vmatmul.mubr.f32.gmra.mrb[0].mxu0 %v2190
    %v2260 = vpop.f32.mrb[0].mxu0
    %v2261 = vadd.f32 0.0, %v2260
    %v2262 = vpop.f32.mrb[0].mxu0
    %2263 = vdwg.mxu0
    %v2264 = vsel %vm729, %v2261, -inf
    %2265 = vmax.xlane.f32.xlu0 %v2264
    %v2266 = vpop.xlane.xlu0 %2265
    %v2267 = vsub.f32 %v2261, %v2266
    %v2268 = vmul.f32 %v2267, 1.442695
    %v2269 = vpow.pop %v2268
    %v2270 = vsel %vm729, %v2269, 0.0
    %2271 = vadd.xlane.f32.xlu0 %v2270
    %v2272 = vpop.xlane.xlu0 %2271
    %v2273 = vrcp.pop %v2272
    %v2274 = vmul.f32 %v2269, %v2273
    %2275 = vrot.lane.b32.xlu0 %v2187, 96
    %v2276 = vpop.permute.xlu0 %2275
    %v2278 = vsel %vm743, %v2274, 0
    %v2280 = vsel %vm747, %v2276, 0
    %2282 = vmatprep.subr.mxu0 0.0
    %2283 = vmatpush1.msra.mxu0 %v2280
    %2284 = vmatprep.subr.mxu0 0.0
    %2285 = vmatpush1.msra.mxu0 0.0
    %2286 = vmatprep.subr.mxu0 0.0
    %2287 = vmatpush1.msra.mxu0 0.0
    %2288 = vmatprep.subr.mxu0 0.0
    %2289 = vmatpush1.msra.mxu0 0.0
    %2290 = vmatprep.subr.mxu0 0.0
    %2291 = vmatpush1.msra.mxu0 0.0
    %2292 = vmatprep.subr.mxu0 0.0
    %2293 = vmatpush1.msra.mxu0 0.0
    %2294 = vmatprep.subr.mxu0 0.0
    %2295 = vmatpush1.msra.mxu0 0.0
    %2296 = vmatprep.subr.mxu0 0.0
    %2297 = vmatpush1.msra.mxu0 0.0
    %2298 = vmatprep.subr.mxu0 0.0
    %2299 = vmatpush1.msra.mxu0 0.0
    %2300 = vmatprep.subr.mxu0 0.0
    %2301 = vmatpush1.msra.mxu0 0.0
    %2302 = vmatprep.subr.mxu0 0.0
    %2303 = vmatpush1.msra.mxu0 0.0
    %2304 = vmatprep.subr.mxu0 0.0
    %2305 = vmatpush1.msra.mxu0 0.0
    %2306 = vmatprep.subr.mxu0 0.0
    %2307 = vmatpush1.msra.mxu0 0.0
    %2308 = vmatprep.subr.mxu0 0.0
    %2309 = vmatpush1.msra.mxu0 0.0
    %2310 = vmatprep.subr.mxu0 0.0
    %2311 = vmatpush1.msra.mxu0 0.0
    %2312 = vmatprep.subr.mxu0 0.0
    %2313 = vmatpush1.msra.mxu0 0.0
    %2314 = vmatprep.subr.mxu0 0.0
    %2315 = vmatpush1.msra.mxu0 0.0
    %2316 = vmatprep.subr.mxu0 0.0
    %2317 = vmatpush1.msra.mxu0 0.0
    %2318 = vmatprep.subr.mxu0 0.0
    %2319 = vmatpush1.msra.mxu0 0.0
    %2320 = vmatprep.subr.mxu0 0.0
    %2321 = vmatpush1.msra.mxu0 0.0
    %2322 = vmatprep.subr.mxu0 0.0
    %2323 = vmatpush1.msra.mxu0 0.0
    %2324 = vmatprep.subr.mxu0 0.0
    %2325 = vmatpush1.msra.mxu0 0.0
    %2326 = vmatprep.subr.mxu0 0.0
    %2327 = vmatpush1.msra.mxu0 0.0
    %2328 = vmatprep.subr.mxu0 0.0
    %2329 = vmatpush1.msra.mxu0 0.0
    %2330 = vmatprep.subr.mxu0 0.0
    %2331 = vmatpush1.msra.mxu0 0.0
    %2332 = vmatprep.subr.mxu0 0.0
    %2333 = vmatpush1.msra.mxu0 0.0
    %2334 = vmatprep.subr.mxu0 0.0
    %2335 = vmatpush1.msra.mxu0 0.0
    %2336 = vmatprep.subr.mxu0 0.0
    %2337 = vmatpush1.msra.mxu0 0.0
    %2338 = vmatprep.subr.mxu0 0.0
    %2339 = vmatpush1.msra.mxu0 0.0
    %2340 = vmatprep.subr.mxu0 0.0
    %2341 = vmatpush1.msra.mxu0 0.0
    %2342 = vmatprep.subr.mxu0 0.0
    %2343 = vmatpush1.msra.mxu0 0.0
    %2344 = vmatprep.subr.mxu0 0.0
    %2345 = vmatpush1.msra.mxu0 0.0
    %2346 = vmatprep.mubr.f32.mxu0 0.0
    %2347 = vmatmul.mubr.f32.gmra.mrb[0].mxu0 %v2278
    %v2348 = vpop.f32.mrb[0].mxu0
    %v2349 = vadd.f32 0.0, %v2348
    %v2350 = vpop.f32.mrb[0].mxu0
    %2351 = vdwg.mxu0
    %2352 = vst.msk [vmem:[#allocation3 + $0x5] sm:$0x1f] %vm820, %v2349
    %2353 = vrot.lane.b32.xlu0 %v2183, 120
    %v2354 = vpop.permute.xlu0 %2353
    %2355 = vrot.lane.b32.xlu0 %v2187, 104
    %v2356 = vpop.permute.xlu0 %2355
    %v2357 = vsel %vm653, %v2354, 0
    %v2359 = vsel %vm653, %v2356, 0
    %2361 = vmatprep.subr.mxu0 0.0
    %2362 = vmatpush1.xpose.msra.mxu0 %v2359
    %2363 = vmatprep.subr.mxu0 0.0
    %2364 = vmatpush1.xpose.msra.mxu0 0.0
    %2365 = vmatprep.subr.mxu0 0.0
    %2366 = vmatpush1.xpose.msra.mxu0 0.0
    %2367 = vmatprep.subr.mxu0 0.0
    %2368 = vmatpush1.xpose.msra.mxu0 0.0
    %2369 = vmatprep.subr.mxu0 0.0
    %2370 = vmatpush1.xpose.msra.mxu0 0.0
    %2371 = vmatprep.subr.mxu0 0.0
    %2372 = vmatpush1.xpose.msra.mxu0 0.0
    %2373 = vmatprep.subr.mxu0 0.0
    %2374 = vmatpush1.xpose.msra.mxu0 0.0
    %2375 = vmatprep.subr.mxu0 0.0
    %2376 = vmatpush1.xpose.msra.mxu0 0.0
    %2377 = vmatprep.subr.mxu0 0.0
    %2378 = vmatpush1.xpose.msra.mxu0 0.0
    %2379 = vmatprep.subr.mxu0 0.0
    %2380 = vmatpush1.xpose.msra.mxu0 0.0
    %2381 = vmatprep.subr.mxu0 0.0
    %2382 = vmatpush1.xpose.msra.mxu0 0.0
    %2383 = vmatprep.subr.mxu0 0.0
    %2384 = vmatpush1.xpose.msra.mxu0 0.0
    %2385 = vmatprep.subr.mxu0 0.0
    %2386 = vmatpush1.xpose.msra.mxu0 0.0
    %2387 = vmatprep.subr.mxu0 0.0
    %2388 = vmatpush1.xpose.msra.mxu0 0.0
    %2389 = vmatprep.subr.mxu0 0.0
    %2390 = vmatpush1.xpose.msra.mxu0 0.0
    %2391 = vmatprep.subr.mxu0 0.0
    %2392 = vmatpush1.xpose.msra.mxu0 0.0
    %2393 = vmatprep.subr.mxu0 0.0
    %2394 = vmatpush1.xpose.msra.mxu0 0.0
    %2395 = vmatprep.subr.mxu0 0.0
    %2396 = vmatpush1.xpose.msra.mxu0 0.0
    %2397 = vmatprep.subr.mxu0 0.0
    %2398 = vmatpush1.xpose.msra.mxu0 0.0
    %2399 = vmatprep.subr.mxu0 0.0
    %2400 = vmatpush1.xpose.msra.mxu0 0.0
    %2401 = vmatprep.subr.mxu0 0.0
    %2402 = vmatpush1.xpose.msra.mxu0 0.0
    %2403 = vmatprep.subr.mxu0 0.0
    %2404 = vmatpush1.xpose.msra.mxu0 0.0
    %2405 = vmatprep.subr.mxu0 0.0
    %2406 = vmatpush1.xpose.msra.mxu0 0.0
    %2407 = vmatprep.subr.mxu0 0.0
    %2408 = vmatpush1.xpose.msra.mxu0 0.0
    %2409 = vmatprep.subr.mxu0 0.0
    %2410 = vmatpush1.xpose.msra.mxu0 0.0
    %2411 = vmatprep.subr.mxu0 0.0
    %2412 = vmatpush1.xpose.msra.mxu0 0.0
    %2413 = vmatprep.subr.mxu0 0.0
    %2414 = vmatpush1.xpose.msra.mxu0 0.0
    %2415 = vmatprep.subr.mxu0 0.0
    %2416 = vmatpush1.xpose.msra.mxu0 0.0
    %2417 = vmatprep.subr.mxu0 0.0
    %2418 = vmatpush1.xpose.msra.mxu0 0.0
    %2419 = vmatprep.subr.mxu0 0.0
    %2420 = vmatpush1.xpose.msra.mxu0 0.0
    %2421 = vmatprep.subr.mxu0 0.0
    %2422 = vmatpush1.xpose.msra.mxu0 0.0
    %2423 = vmatprep.subr.mxu0 0.0
    %2424 = vmatpush1.xpose.msra.mxu0 0.0
    %2425 = vmatprep.mubr.f32.mxu0 0.0
    %2426 = vmatmul.mubr.f32.gmra.mrb[0].mxu0 %v2357
    %v2427 = vpop.f32.mrb[0].mxu0
    %v2428 = vadd.f32 0.0, %v2427
    %v2429 = vpop.f32.mrb[0].mxu0
    %2430 = vdwg.mxu0
    %v2431 = vsel %vm729, %v2428, -inf
    %2432 = vmax.xlane.f32.xlu0 %v2431
    %v2433 = vpop.xlane.xlu0 %2432
    %v2434 = vsub.f32 %v2428, %v2433
    %v2435 = vmul.f32 %v2434, 1.442695
    %v2436 = vpow.pop %v2435
    %v2437 = vsel %vm729, %v2436, 0.0
    %2438 = vadd.xlane.f32.xlu0 %v2437
    %v2439 = vpop.xlane.xlu0 %2438
    %v2440 = vrcp.pop %v2439
    %v2441 = vmul.f32 %v2436, %v2440
    %2442 = vrot.lane.b32.xlu0 %v2187, 88
    %v2443 = vpop.permute.xlu0 %2442
    %v2445 = vsel %vm743, %v2441, 0
    %v2447 = vsel %vm747, %v2443, 0
    %2449 = vmatprep.subr.mxu0 0.0
    %2450 = vmatpush1.msra.mxu0 %v2447
    %2451 = vmatprep.subr.mxu0 0.0
    %2452 = vmatpush1.msra.mxu0 0.0
    %2453 = vmatprep.subr.mxu0 0.0
    %2454 = vmatpush1.msra.mxu0 0.0
    %2455 = vmatprep.subr.mxu0 0.0
    %2456 = vmatpush1.msra.mxu0 0.0
    %2457 = vmatprep.subr.mxu0 0.0
    %2458 = vmatpush1.msra.mxu0 0.0
    %2459 = vmatprep.subr.mxu0 0.0
    %2460 = vmatpush1.msra.mxu0 0.0
    %2461 = vmatprep.subr.mxu0 0.0
    %2462 = vmatpush1.msra.mxu0 0.0
    %2463 = vmatprep.subr.mxu0 0.0
    %2464 = vmatpush1.msra.mxu0 0.0
    %2465 = vmatprep.subr.mxu0 0.0
    %2466 = vmatpush1.msra.mxu0 0.0
    %2467 = vmatprep.subr.mxu0 0.0
    %2468 = vmatpush1.msra.mxu0 0.0
    %2469 = vmatprep.subr.mxu0 0.0
    %2470 = vmatpush1.msra.mxu0 0.0
    %2471 = vmatprep.subr.mxu0 0.0
    %2472 = vmatpush1.msra.mxu0 0.0
    %2473 = vmatprep.subr.mxu0 0.0
    %2474 = vmatpush1.msra.mxu0 0.0
    %2475 = vmatprep.subr.mxu0 0.0
    %2476 = vmatpush1.msra.mxu0 0.0
    %2477 = vmatprep.subr.mxu0 0.0
    %2478 = vmatpush1.msra.mxu0 0.0
    %2479 = vmatprep.subr.mxu0 0.0
    %2480 = vmatpush1.msra.mxu0 0.0
    %2481 = vmatprep.subr.mxu0 0.0
    %2482 = vmatpush1.msra.mxu0 0.0
    %2483 = vmatprep.subr.mxu0 0.0
    %2484 = vmatpush1.msra.mxu0 0.0
    %2485 = vmatprep.subr.mxu0 0.0
    %2486 = vmatpush1.msra.mxu0 0.0
    %2487 = vmatprep.subr.mxu0 0.0
    %2488 = vmatpush1.msra.mxu0 0.0
    %2489 = vmatprep.subr.mxu0 0.0
    %2490 = vmatpush1.msra.mxu0 0.0
    %2491 = vmatprep.subr.mxu0 0.0
    %2492 = vmatpush1.msra.mxu0 0.0
    %2493 = vmatprep.subr.mxu0 0.0
    %2494 = vmatpush1.msra.mxu0 0.0
    %2495 = vmatprep.subr.mxu0 0.0
    %2496 = vmatpush1.msra.mxu0 0.0
    %2497 = vmatprep.subr.mxu0 0.0
    %2498 = vmatpush1.msra.mxu0 0.0
    %2499 = vmatprep.subr.mxu0 0.0
    %2500 = vmatpush1.msra.mxu0 0.0
    %2501 = vmatprep.subr.mxu0 0.0
    %2502 = vmatpush1.msra.mxu0 0.0
    %2503 = vmatprep.subr.mxu0 0.0
    %2504 = vmatpush1.msra.mxu0 0.0
    %2505 = vmatprep.subr.mxu0 0.0
    %2506 = vmatpush1.msra.mxu0 0.0
    %2507 = vmatprep.subr.mxu0 0.0
    %2508 = vmatpush1.msra.mxu0 0.0
    %2509 = vmatprep.subr.mxu0 0.0
    %2510 = vmatpush1.msra.mxu0 0.0
    %2511 = vmatprep.subr.mxu0 0.0
    %2512 = vmatpush1.msra.mxu0 0.0
    %2513 = vmatprep.mubr.f32.mxu0 0.0
    %2514 = vmatmul.mubr.f32.gmra.mrb[0].mxu0 %v2445
    %v2515 = vpop.f32.mrb[0].mxu0
    %v2516 = vadd.f32 0.0, %v2515
    %v2517 = vpop.f32.mrb[0].mxu0
    %2518 = vdwg.mxu0
    %2520 = vrot.lane.b32.xlu0 %v2516, 8
    %v2521 = vpop.permute.xlu0 %2520
    %2523 = vst.msk [vmem:[#allocation3 + $0x5] sm:$0x1f] %vm992, %v2521
    %v2524 = vld [vmem:[#allocation3] sm:$0xff]
    %v2525 = vld [vmem:[#allocation3 + $0x8] sm:$0x3]
    %s2526 = scalar_lea.vmem [#allocation15], 16
    %v2527 = vld [vmem:[%s2526] sm:$0xff]
    %v2528 = vld [vmem:[%s2526 + $0x8] sm:$0xff]
    %s2529 = scalar_lea.vmem [#allocation16], 1
    %v2530 = vld [vmem:[%s2529] sm:$0x1]
    %v2532 = vlaneseq
    %v2533 = vshrl.u32 %v2532, 7
    %v2534 = vsub.s32 0, %v2533
    %v2535 = vrot.slane %v2530, %v2534
    %v2538 = vsel %vm389, %v2524, 0
    %v2541 = vsel %vm389, %v2525, 0
    %2543 = vmatprep.subr.mxu0 0.0
    %2544 = vmatpush1.msra.mxu0 %v2527
    %2545 = vmatprep.subr.mxu0 0.0
    %2546 = vmatpush1.msra.mxu0 %v2528
    %2547 = vmatprep.subr.mxu0 0.0
    %2548 = vmatpush1.msra.mxu0 0.0
    %2549 = vmatprep.subr.mxu0 0.0
    %2550 = vmatpush1.msra.mxu0 0.0
    %2551 = vmatprep.subr.mxu0 0.0
    %2552 = vmatpush1.msra.mxu0 0.0
    %2553 = vmatprep.subr.mxu0 0.0
    %2554 = vmatpush1.msra.mxu0 0.0
    %2555 = vmatprep.subr.mxu0 0.0
    %2556 = vmatpush1.msra.mxu0 0.0
    %2557 = vmatprep.subr.mxu0 0.0
    %2558 = vmatpush1.msra.mxu0 0.0
    %2559 = vmatprep.subr.mxu0 0.0
    %2560 = vmatpush1.msra.mxu0 0.0
    %2561 = vmatprep.subr.mxu0 0.0
    %2562 = vmatpush1.msra.mxu0 0.0
    %2563 = vmatprep.subr.mxu0 0.0
    %2564 = vmatpush1.msra.mxu0 0.0
    %2565 = vmatprep.subr.mxu0 0.0
    %2566 = vmatpush1.msra.mxu0 0.0
    %2567 = vmatprep.subr.mxu0 0.0
    %2568 = vmatpush1.msra.mxu0 0.0
    %2569 = vmatprep.subr.mxu0 0.0
    %2570 = vmatpush1.msra.mxu0 0.0
    %2571 = vmatprep.subr.mxu0 0.0
    %2572 = vmatpush1.msra.mxu0 0.0
    %2573 = vmatprep.subr.mxu0 0.0
    %2574 = vmatpush1.msra.mxu0 0.0
    %2575 = vmatprep.subr.mxu0 0.0
    %2576 = vmatpush1.msra.mxu0 0.0
    %2577 = vmatprep.subr.mxu0 0.0
    %2578 = vmatpush1.msra.mxu0 0.0
    %2579 = vmatprep.subr.mxu0 0.0
    %2580 = vmatpush1.msra.mxu0 0.0
    %2581 = vmatprep.subr.mxu0 0.0
    %2582 = vmatpush1.msra.mxu0 0.0
    %2583 = vmatprep.subr.mxu0 0.0
    %2584 = vmatpush1.msra.mxu0 0.0
    %2585 = vmatprep.subr.mxu0 0.0
    %2586 = vmatpush1.msra.mxu0 0.0
    %2587 = vmatprep.subr.mxu0 0.0
    %2588 = vmatpush1.msra.mxu0 0.0
    %2589 = vmatprep.subr.mxu0 0.0
    %2590 = vmatpush1.msra.mxu0 0.0
    %2591 = vmatprep.subr.mxu0 0.0
    %2592 = vmatpush1.msra.mxu0 0.0
    %2593 = vmatprep.subr.mxu0 0.0
    %2594 = vmatpush1.msra.mxu0 0.0
    %2595 = vmatprep.subr.mxu0 0.0
    %2596 = vmatpush1.msra.mxu0 0.0
    %2597 = vmatprep.subr.mxu0 0.0
    %2598 = vmatpush1.msra.mxu0 0.0
    %2599 = vmatprep.subr.mxu0 0.0
    %2600 = vmatpush1.msra.mxu0 0.0
    %2601 = vmatprep.subr.mxu0 0.0
    %2602 = vmatpush1.msra.mxu0 0.0
    %2603 = vmatprep.subr.mxu0 0.0
    %2604 = vmatpush1.msra.mxu0 0.0
    %2605 = vmatprep.subr.mxu0 0.0
    %2606 = vmatpush1.msra.mxu0 0.0
    %2607 = vmatprep.mubr.f32.mxu0 0.0
    %2608 = vmatmul.mubr.f32.gmra.mrb[0].mxu0 %v2538
    %v2609 = vpop.f32.mrb[0].mxu0
    %v2610 = vadd.f32 %v2535, %v2609
    %v2611 = vpop.f32.mrb[0].mxu0
    %2612 = vmatprep.mubr.f32.mxu0 0.0
    %2613 = vmatmul.mubr.f32.gmra.mrb[0].mxu0 %v2541
    %v2614 = vpop.f32.mrb[0].mxu0
    %v2615 = vadd.f32 %v2535, %v2614
    %v2616 = vpop.f32.mrb[0].mxu0
    %2617 = vdwg.mxu0
    %v2618 = vadd.f32 %v1700, %v2610
    %v2619 = vadd.f32 %v1701, %v2615
    %v2620 = vsel %vm389, %v2618, 0.0
    %2621 = vadd.xlane.f32.xlu0 %v2620
    %v2622 = vpop.xlane.xlu0 %2621
    %v2623 = vsel %vm518, %v2619, 0.0
    %2624 = vadd.xlane.f32.xlu0 %v2623
    %v2625 = vpop.xlane.xlu0 %2624
    %v2626 = vmul.f32 %v2622, %v522
    %v2627 = vmul.f32 %v2625, %v522
    %v2628 = vsub.f32 %v2618, %v2626
    %v2629 = vsub.f32 %v2619, %v2627
    %v2630 = vmul.f32 %v2628, %v2628
    %v2631 = vmul.f32 %v2629, %v2629
    %v2632 = vsel %vm389, %v2630, 0.0
    %2633 = vadd.xlane.f32.xlu0 %v2632
    %v2634 = vpop.xlane.xlu0 %2633
    %v2635 = vsel %vm518, %v2631, 0.0
    %2636 = vadd.xlane.f32.xlu0 %v2635
    %v2637 = vpop.xlane.xlu0 %2636
    %v2638 = vmul.f32 %v2634, %v522
    %v2639 = vmul.f32 %v2637, %v522
    %v2640 = vadd.f32 %v2638, 1e-05
    %v2641 = vadd.f32 %v2639, 1e-05
    %v2642 = vrsqrt.pop %v2640
    %v2643 = vrsqrt.pop %v2641
    %v2644 = vmul.f32 %v2628, %v2642
    %v2645 = vmul.f32 %v2629, %v2643
    %v2646 = vmul.f32 %v2644, %v1736
    %v2647 = vmul.f32 %v2645, %v1736
    %v2648 = vadd.f32 %v2646, %v1744
    %v2649 = vadd.f32 %v2647, %v1744
    %s2650 = scalar_lea.vmem [#allocation18], 16
    %v2651 = vld [vmem:[%s2650] sm:$0xff]
    %v2652 = vld [vmem:[%s2650 + $0x8] sm:$0xff]
    %s2653 = scalar_lea.vmem [#allocation19], 1
    %v2654 = vld [vmem:[%s2653] sm:$0x1]
    %v2656 = vlaneseq
    %v2657 = vshrl.u32 %v2656, 7
    %v2658 = vsub.s32 0, %v2657
    %v2659 = vrot.slane %v2654, %v2658
    %v2662 = vsel %vm389, %v2648, 0
    %v2665 = vsel %vm389, %v2649, 0
    %2667 = vmatprep.subr.mxu0 0.0
    %2668 = vmatpush1.msra.mxu0 %v2651
    %2669 = vmatprep.subr.mxu0 0.0
    %2670 = vmatpush1.msra.mxu0 %v2652
    %2671 = vmatprep.subr.mxu0 0.0
    %2672 = vmatpush1.msra.mxu0 0.0
    %2673 = vmatprep.subr.mxu0 0.0
    %2674 = vmatpush1.msra.mxu0 0.0
    %2675 = vmatprep.subr.mxu0 0.0
    %2676 = vmatpush1.msra.mxu0 0.0
    %2677 = vmatprep.subr.mxu0 0.0
    %2678 = vmatpush1.msra.mxu0 0.0
    %2679 = vmatprep.subr.mxu0 0.0
    %2680 = vmatpush1.msra.mxu0 0.0
    %2681 = vmatprep.subr.mxu0 0.0
    %2682 = vmatpush1.msra.mxu0 0.0
    %2683 = vmatprep.subr.mxu0 0.0
    %2684 = vmatpush1.msra.mxu0 0.0
    %2685 = vmatprep.subr.mxu0 0.0
    %2686 = vmatpush1.msra.mxu0 0.0
    %2687 = vmatprep.subr.mxu0 0.0
    %2688 = vmatpush1.msra.mxu0 0.0
    %2689 = vmatprep.subr.mxu0 0.0
    %2690 = vmatpush1.msra.mxu0 0.0
    %2691 = vmatprep.subr.mxu0 0.0
    %2692 = vmatpush1.msra.mxu0 0.0
    %2693 = vmatprep.subr.mxu0 0.0
    %2694 = vmatpush1.msra.mxu0 0.0
    %2695 = vmatprep.subr.mxu0 0.0
    %2696 = vmatpush1.msra.mxu0 0.0
    %2697 = vmatprep.subr.mxu0 0.0
    %2698 = vmatpush1.msra.mxu0 0.0
    %2699 = vmatprep.subr.mxu0 0.0
    %2700 = vmatpush1.msra.mxu0 0.0
    %2701 = vmatprep.subr.mxu0 0.0
    %2702 = vmatpush1.msra.mxu0 0.0
    %2703 = vmatprep.subr.mxu0 0.0
    %2704 = vmatpush1.msra.mxu0 0.0
    %2705 = vmatprep.subr.mxu0 0.0
    %2706 = vmatpush1.msra.mxu0 0.0
    %2707 = vmatprep.subr.mxu0 0.0
    %2708 = vmatpush1.msra.mxu0 0.0
    %2709 = vmatprep.subr.mxu0 0.0
    %2710 = vmatpush1.msra.mxu0 0.0
    %2711 = vmatprep.subr.mxu0 0.0
    %2712 = vmatpush1.msra.mxu0 0.0
    %2713 = vmatprep.subr.mxu0 0.0
    %2714 = vmatpush1.msra.mxu0 0.0
    %2715 = vmatprep.subr.mxu0 0.0
    %2716 = vmatpush1.msra.mxu0 0.0
    %2717 = vmatprep.subr.mxu0 0.0
    %2718 = vmatpush1.msra.mxu0 0.0
    %2719 = vmatprep.subr.mxu0 0.0
    %2720 = vmatpush1.msra.mxu0 0.0
    %2721 = vmatprep.subr.mxu0 0.0
    %2722 = vmatpush1.msra.mxu0 0.0
    %2723 = vmatprep.subr.mxu0 0.0
    %2724 = vmatpush1.msra.mxu0 0.0
    %2725 = vmatprep.subr.mxu0 0.0
    %2726 = vmatpush1.msra.mxu0 0.0
    %2727 = vmatprep.subr.mxu0 0.0
    %2728 = vmatpush1.msra.mxu0 0.0
    %2729 = vmatprep.subr.mxu0 0.0
    %2730 = vmatpush1.msra.mxu0 0.0
    %2731 = vmatprep.mubr.f32.mxu0 0.0
    %2732 = vmatmul.mubr.f32.gmra.mrb[0].mxu0 %v2662
    %v2733 = vpop.f32.mrb[0].mxu0
    %v2734 = vadd.f32 %v2659, %v2733
    %v2735 = vpop.f32.mrb[0].mxu0
    %2736 = vmatprep.mubr.f32.mxu0 0.0
    %2737 = vmatmul.mubr.f32.gmra.mrb[0].mxu0 %v2665
    %v2738 = vpop.f32.mrb[0].mxu0
    %v2739 = vadd.f32 %v2659, %v2738
    %v2740 = vpop.f32.mrb[0].mxu0
    %2741 = vdwg.mxu0
    %v2742 = vmul.f32 %v2734, 0.5
    %v2743 = vmul.f32 %v2739, 0.5
    %v2744 = vmul.f32 %v2734, 0.70710677
    %v2745 = vmul.f32 %v2739, 0.70710677
    %vm2746 = vcmp.ge.f32.partialorder %v2744, 0.0
    %vm2747 = vcmp.ge.f32.partialorder %v2745, 0.0
    %v2748 = vsel %vm2746, 1.0, -1.0
    %v2749 = vsel %vm2747, 1.0, -1.0
    %v2750 = vand.u32 2147483647, %v2744
    %v2751 = vand.u32 2147483647, %v2745
    %v2752 = vmul.f32 %v2750, 0.3275911
    %v2753 = vmul.f32 %v2751, 0.3275911
    %v2754 = vadd.f32 %v2752, 1.0
    %v2755 = vadd.f32 %v2753, 1.0
    %v2756 = vrcp.pop %v2754
    %v2757 = vmul.f32 1.0, %v2756
    %v2758 = vrcp.pop %v2755
    %v2759 = vmul.f32 1.0, %v2758
    %v2760 = vmul.f32 %v2757, 1.0614054
    %v2761 = vmul.f32 %v2759, 1.0614054
    %v2762 = vadd.f32 %v2760, -1.4531521
    %v2763 = vadd.f32 %v2761, -1.4531521
    %v2764 = vmul.f32 %v2762, %v2757
    %v2765 = vmul.f32 %v2763, %v2759
    %v2766 = vadd.f32 %v2764, 1.4214138
    %v2767 = vadd.f32 %v2765, 1.4214138
    %v2768 = vmul.f32 %v2766, %v2757
    %v2769 = vmul.f32 %v2767, %v2759
    %v2770 = vadd.f32 %v2768, -0.28449672
    %v2771 = vadd.f32 %v2769, -0.28449672
    %v2772 = vmul.f32 %v2770, %v2757
    %v2773 = vmul.f32 %v2771, %v2759
    %v2774 = vadd.f32 %v2772, 0.2548296
    %v2775 = vadd.f32 %v2773, 0.2548296
    %v2776 = vmul.f32 %v2774, %v2757
    %v2777 = vmul.f32 %v2775, %v2759
    %v2778 = vsub.f32 0.0, %v2750
    %v2779 = vsub.f32 0.0, %v2751
    %v2780 = vmul.f32 %v2778, %v2750
    %v2781 = vmul.f32 %v2779, %v2751
    %v2782 = vmul.f32 %v2780, 1.442695
    %v2783 = vpow.pop %v2782
    %v2784 = vmul.f32 %v2781, 1.442695
    %v2785 = vpow.pop %v2784
    %v2786 = vmul.f32 %v2776, %v2783
    %v2787 = vmul.f32 %v2777, %v2785
    %v2788 = vsub.f32 1.0, %v2786
    %v2789 = vsub.f32 1.0, %v2787
    %v2790 = vmul.f32 %v2748, %v2788
    %v2791 = vmul.f32 %v2749, %v2789
    %v2792 = vadd.f32 %v2790, 1.0
    %v2793 = vadd.f32 %v2791, 1.0
    %v2794 = vmul.f32 %v2742, %v2792
    %v2795 = vmul.f32 %v2743, %v2793
    %s2796 = scalar_lea.vmem %s13, 32
    %v2797 = vld [vmem:[%s2796] sm:$0xff]
    %v2798 = vld [vmem:[%s2796 + $0x8] sm:$0xff]
    %v2799 = vld [vmem:[%s2796 + $0x10] sm:$0xff]
    %v2800 = vld [vmem:[%s2796 + $0x18] sm:$0xff]
    %s2801 = scalar_lea.vmem [#allocation21], 1
    %v2802 = vld [vmem:[%s2801] sm:$0x1]
    %v2804 = vlaneseq
    %v2805 = vshrl.u32 %v2804, 7
    %v2806 = vsub.s32 0, %v2805
    %v2807 = vrot.slane %v2802, %v2806
    %v2810 = vsel %vm391, %v2794, 0
    %v2813 = vsel %vm391, %v2795, 0
    %2815 = vmatprep.subr.mxu0 0.0
    %2816 = vmatpush1.msra.mxu0 %v2797
    %2817 = vmatprep.subr.mxu0 0.0
    %2818 = vmatpush1.msra.mxu0 %v2798
    %2819 = vmatprep.subr.mxu0 0.0
    %2820 = vmatpush1.msra.mxu0 %v2799
    %2821 = vmatprep.subr.mxu0 0.0
    %2822 = vmatpush1.msra.mxu0 %v2800
    %2823 = vmatprep.subr.mxu0 0.0
    %2824 = vmatpush1.msra.mxu0 0.0
    %2825 = vmatprep.subr.mxu0 0.0
    %2826 = vmatpush1.msra.mxu0 0.0
    %2827 = vmatprep.subr.mxu0 0.0
    %2828 = vmatpush1.msra.mxu0 0.0
    %2829 = vmatprep.subr.mxu0 0.0
    %2830 = vmatpush1.msra.mxu0 0.0
    %2831 = vmatprep.subr.mxu0 0.0
    %2832 = vmatpush1.msra.mxu0 0.0
    %2833 = vmatprep.subr.mxu0 0.0
    %2834 = vmatpush1.msra.mxu0 0.0
    %2835 = vmatprep.subr.mxu0 0.0
    %2836 = vmatpush1.msra.mxu0 0.0
    %2837 = vmatprep.subr.mxu0 0.0
    %2838 = vmatpush1.msra.mxu0 0.0
    %2839 = vmatprep.subr.mxu0 0.0
    %2840 = vmatpush1.msra.mxu0 0.0
    %2841 = vmatprep.subr.mxu0 0.0
    %2842 = vmatpush1.msra.mxu0 0.0
    %2843 = vmatprep.subr.mxu0 0.0
    %2844 = vmatpush1.msra.mxu0 0.0
    %2845 = vmatprep.subr.mxu0 0.0
    %2846 = vmatpush1.msra.mxu0 0.0
    %2847 = vmatprep.subr.mxu0 0.0
    %2848 = vmatpush1.msra.mxu0 0.0
    %2849 = vmatprep.subr.mxu0 0.0
    %2850 = vmatpush1.msra.mxu0 0.0
    %2851 = vmatprep.subr.mxu0 0.0
    %2852 = vmatpush1.msra.mxu0 0.0
    %2853 = vmatprep.subr.mxu0 0.0
    %2854 = vmatpush1.msra.mxu0 0.0
    %2855 = vmatprep.subr.mxu0 0.0
    %2856 = vmatpush1.msra.mxu0 0.0
    %2857 = vmatprep.subr.mxu0 0.0
    %2858 = vmatpush1.msra.mxu0 0.0
    %2859 = vmatprep.subr.mxu0 0.0
    %2860 = vmatpush1.msra.mxu0 0.0
    %2861 = vmatprep.subr.mxu0 0.0
    %2862 = vmatpush1.msra.mxu0 0.0
    %2863 = vmatprep.subr.mxu0 0.0
    %2864 = vmatpush1.msra.mxu0 0.0
    %2865 = vmatprep.subr.mxu0 0.0
    %2866 = vmatpush1.msra.mxu0 0.0
    %2867 = vmatprep.subr.mxu0 0.0
    %2868 = vmatpush1.msra.mxu0 0.0
    %2869 = vmatprep.subr.mxu0 0.0
    %2870 = vmatpush1.msra.mxu0 0.0
    %2871 = vmatprep.subr.mxu0 0.0
    %2872 = vmatpush1.msra.mxu0 0.0
    %2873 = vmatprep.subr.mxu0 0.0
    %2874 = vmatpush1.msra.mxu0 0.0
    %2875 = vmatprep.subr.mxu0 0.0
    %2876 = vmatpush1.msra.mxu0 0.0
    %2877 = vmatprep.subr.mxu0 0.0
    %2878 = vmatpush1.msra.mxu0 0.0
    %2879 = vmatprep.mubr.f32.mxu0 0.0
    %2880 = vmatmul.mubr.f32.gmra.mrb[0].mxu0 %v2810
    %v2881 = vpop.f32.mrb[0].mxu0
    %v2882 = vadd.f32 %v2807, %v2881
    %v2883 = vpop.f32.mrb[0].mxu0
    %2884 = vmatprep.mubr.f32.mxu0 0.0
    %2885 = vmatmul.mubr.f32.gmra.mrb[0].mxu0 %v2813
    %v2886 = vpop.f32.mrb[0].mxu0
    %v2887 = vadd.f32 %v2807, %v2886
    %v2888 = vpop.f32.mrb[0].mxu0
    %2889 = vdwg.mxu0
    %v2890 = vadd.f32 %v2618, %v2882
    %v2891 = vadd.f32 %v2619, %v2887
    %v2892 = vld [vmem:[%s15] sm:$0xff]
    %v2893 = vld [vmem:[%s15 + $0x8] sm:$0xff]
    %v2894 = vld [vmem:[%s16] sm:$0x1]
    %v2896 = vlaneseq
    %v2897 = vshrl.u32 %v2896, 7
    %v2898 = vsub.s32 0, %v2897
    %v2899 = vrot.slane %v2894, %v2898
    %v2902 = vsel %vm389, %v2890, 0
    %v2905 = vsel %vm389, %v2891, 0
    %2907 = vmatprep.subr.mxu0 0.0
    %2908 = vmatpush1.msra.mxu0 %v2892
    %2909 = vmatprep.subr.mxu0 0.0
    %2910 = vmatpush1.msra.mxu0 %v2893
    %2911 = vmatprep.subr.mxu0 0.0
    %2912 = vmatpush1.msra.mxu0 0.0
    %2913 = vmatprep.subr.mxu0 0.0
    %2914 = vmatpush1.msra.mxu0 0.0
    %2915 = vmatprep.subr.mxu0 0.0
    %2916 = vmatpush1.msra.mxu0 0.0
    %2917 = vmatprep.subr.mxu0 0.0
    %2918 = vmatpush1.msra.mxu0 0.0
    %2919 = vmatprep.subr.mxu0 0.0
    %2920 = vmatpush1.msra.mxu0 0.0
    %2921 = vmatprep.subr.mxu0 0.0
    %2922 = vmatpush1.msra.mxu0 0.0
    %2923 = vmatprep.subr.mxu0 0.0
    %2924 = vmatpush1.msra.mxu0 0.0
    %2925 = vmatprep.subr.mxu0 0.0
    %2926 = vmatpush1.msra.mxu0 0.0
    %2927 = vmatprep.subr.mxu0 0.0
    %2928 = vmatpush1.msra.mxu0 0.0
    %2929 = vmatprep.subr.mxu0 0.0
    %2930 = vmatpush1.msra.mxu0 0.0
    %2931 = vmatprep.subr.mxu0 0.0
    %2932 = vmatpush1.msra.mxu0 0.0
    %2933 = vmatprep.subr.mxu0 0.0
    %2934 = vmatpush1.msra.mxu0 0.0
    %2935 = vmatprep.subr.mxu0 0.0
    %2936 = vmatpush1.msra.mxu0 0.0
    %2937 = vmatprep.subr.mxu0 0.0
    %2938 = vmatpush1.msra.mxu0 0.0
    %2939 = vmatprep.subr.mxu0 0.0
    %2940 = vmatpush1.msra.mxu0 0.0
    %2941 = vmatprep.subr.mxu0 0.0
    %2942 = vmatpush1.msra.mxu0 0.0
    %2943 = vmatprep.subr.mxu0 0.0
    %2944 = vmatpush1.msra.mxu0 0.0
    %2945 = vmatprep.subr.mxu0 0.0
    %2946 = vmatpush1.msra.mxu0 0.0
    %2947 = vmatprep.subr.mxu0 0.0
    %2948 = vmatpush1.msra.mxu0 0.0
    %2949 = vmatprep.subr.mxu0 0.0
    %2950 = vmatpush1.msra.mxu0 0.0
    %2951 = vmatprep.subr.mxu0 0.0
    %2952 = vmatpush1.msra.mxu0 0.0
    %2953 = vmatprep.subr.mxu0 0.0
    %2954 = vmatpush1.msra.mxu0 0.0
    %2955 = vmatprep.subr.mxu0 0.0
    %2956 = vmatpush1.msra.mxu0 0.0
    %2957 = vmatprep.subr.mxu0 0.0
    %2958 = vmatpush1.msra.mxu0 0.0
    %2959 = vmatprep.subr.mxu0 0.0
    %2960 = vmatpush1.msra.mxu0 0.0
    %2961 = vmatprep.subr.mxu0 0.0
    %2962 = vmatpush1.msra.mxu0 0.0
    %2963 = vmatprep.subr.mxu0 0.0
    %2964 = vmatpush1.msra.mxu0 0.0
    %2965 = vmatprep.subr.mxu0 0.0
    %2966 = vmatpush1.msra.mxu0 0.0
    %2967 = vmatprep.subr.mxu0 0.0
    %2968 = vmatpush1.msra.mxu0 0.0
    %2969 = vmatprep.subr.mxu0 0.0
    %2970 = vmatpush1.msra.mxu0 0.0
    %2971 = vmatprep.mubr.f32.mxu0 0.0
    %2972 = vmatmul.mubr.f32.gmra.mrb[0].mxu0 %v2902
    %v2973 = vpop.f32.mrb[0].mxu0
    %v2974 = vadd.f32 %v2899, %v2973
    %v2975 = vpop.f32.mrb[0].mxu0
    %2976 = vmatprep.mubr.f32.mxu0 0.0
    %2977 = vmatmul.mubr.f32.gmra.mrb[0].mxu0 %v2905
    %v2978 = vpop.f32.mrb[0].mxu0
    %v2979 = vadd.f32 %v2899, %v2978
    %v2980 = vpop.f32.mrb[0].mxu0
    %2981 = vdwg.mxu0
    %vm2982 = vcmp.gt.f32.partialorder %v2974, 0.0
    %vm2983 = vcmp.gt.f32.partialorder %v2979, 0.0
    %v2984 = vmin.f32 %v2974, 0.0
    %v2985 = vmin.f32 %v2979, 0.0
    %v2986 = vmul.f32 %v2984, 1.442695
    %v2987 = vpow.pop %v2986
    %v2988 = vmul.f32 %v2985, 1.442695
    %v2989 = vpow.pop %v2988
    %v2990 = vsub.f32 %v2987, 1.0
    %v2991 = vsub.f32 %v2989, 1.0
    %v2992 = vsel %vm2982, %v2974, %v2990
    %v2993 = vsel %vm2983, %v2979, %v2991
    %v2994 = vld [vmem:[%s17] sm:$0x1]
    %v2996 = vlaneseq
    %v2997 = vshrl.u32 %v2996, 7
    %v2998 = vsub.s32 0, %v2997
    %v2999 = vrot.slane %v2994, %v2998
    %v3001 = vmul.f32 %v2992, %v2999
    %v3002 = vmul.f32 %v2993, %v2999
    %v3003 = vld [vmem:[%s18] sm:$0x1]
    %v3005 = vlaneseq
    %v3006 = vshrl.u32 %v3005, 7
    %v3007 = vsub.s32 0, %v3006
    %v3008 = vrot.slane %v3003, %v3007
    %v3010 = vadd.f32 %v3001, %v3008
    %v3011 = vadd.f32 %v3002, %v3008
    %3012 = vst.msk [vmem:[#allocation4] sm:$0x1] %vm396, %v3010
    %3014 = vrot.lane.b32.xlu0 %v3010, 16
    %v3015 = vpop.permute.xlu0 %3014
    %vm3017 = vcmask 255105
    %3018 = vst.msk [vmem:[#allocation4 - $0x1] sm:$0x2] %vm3017, %v3015
    %3019 = vrot.lane.b32.xlu0 %v3010, 32
    %v3020 = vpop.permute.xlu0 %3019
    %vm3022 = vcmask 387330
    %3023 = vst.msk [vmem:[#allocation4 - $0x2] sm:$0x4] %vm3022, %v3020
    %3024 = vrot.lane.b32.xlu0 %v3010, 48
    %v3025 = vpop.permute.xlu0 %3024
    %vm3027 = vcmask 519555
    %3028 = vst.msk [vmem:[#allocation4 - $0x3] sm:$0x8] %vm3027, %v3025
    %3029 = vrot.lane.b32.xlu0 %v3010, 64
    %v3030 = vpop.permute.xlu0 %3029
    %vm3032 = vcmask 651780
    %3033 = vst.msk [vmem:[#allocation4 - $0x4] sm:$0x10] %vm3032, %v3030
    %vm3034 = vcmask 128005
    %3035 = vst.msk [vmem:[#allocation4 - $0x4] sm:$0x20] %vm3034, %v3010
    %vm3036 = vcmask 260230
    %3037 = vst.msk [vmem:[#allocation4 - $0x5] sm:$0x40] %vm3036, %v3015
    %vm3038 = vcmask 392455
    %3039 = vst.msk [vmem:[#allocation4 - $0x6] sm:$0x80] %vm3038, %v3020
    %3041 = vrot.lane.b32.xlu0 %v3011, 48
    %v3042 = vpop.permute.xlu0 %3041
    %vm3044 = vcmask 516480
    %3045 = vst.msk [vmem:[#allocation4 + $0x1] sm:$0x1] %vm3044, %v3042
    %3046 = vrot.lane.b32.xlu0 %v3011, 64
    %v3047 = vpop.permute.xlu0 %3046
    %vm3049 = vcmask 648705
    %3050 = vst.msk [vmem:[#allocation4] sm:$0x2] %vm3049, %v3047
    %v3051 = vld [vmem:[#allocation4] sm:$0x3]
    %v3052 = vld [vmem:[#allocation22] sm:$0xff]
    %v3053 = vld [vmem:[#allocation22 + $0x8] sm:$0xff]
    %v3054 = vld [vmem:[#allocation22 + $0x10] sm:$0xff]
    %v3055 = vld [vmem:[#allocation22 + $0x18] sm:$0xff]
    %v3056 = vld [vmem:[#allocation22 + $0x20] sm:$0xff]
    %v3057 = vld [vmem:[#allocation22 + $0x28] sm:$0xff]
    %v3058 = vld [vmem:[#allocation22 + $0x30] sm:$0xff]
    %v3059 = vld [vmem:[#allocation22 + $0x38] sm:$0xff]
    %v3060 = vld [vmem:[#allocation22 + $0x40] sm:$0xff]
    %v3061 = vld [vmem:[#allocation22 + $0x48] sm:$0xff]
    %v3062 = vld [vmem:[#allocation22 + $0x50] sm:$0xff]
    %v3063 = vld [vmem:[#allocation22 + $0x58] sm:$0xff]
    %v3064 = vld [vmem:[#allocation22 + $0x60] sm:$0xff]
    %v3065 = vld [vmem:[#allocation22 + $0x68] sm:$0xff]
    %v3066 = vld [vmem:[#allocation22 + $0x70] sm:$0xff]
    %v3067 = vld [vmem:[#allocation22 + $0x78] sm:$0xff]
    %v3068 = vld [vmem:[#allocation22 + $0x80] sm:$0xff]
    %v3069 = vld [vmem:[#allocation22 + $0x88] sm:$0xff]
    %v3070 = vld [vmem:[#allocation22 + $0x90] sm:$0xff]
    %v3071 = vld [vmem:[#allocation22 + $0x98] sm:$0xff]
    %v3072 = vld [vmem:[#allocation22 + $0xa0] sm:$0xff]
    %v3073 = vld [vmem:[#allocation22 + $0xa8] sm:$0xff]
    %v3074 = vld [vmem:[#allocation22 + $0xb0] sm:$0xff]
    %v3075 = vld [vmem:[#allocation22 + $0xb8] sm:$0xff]
    %v3076 = vld [vmem:[#allocation22 + $0xc0] sm:$0xff]
    %v3077 = vld [vmem:[#allocation22 + $0xc8] sm:$0xff]
    %v3078 = vld [vmem:[#allocation22 + $0xd0] sm:$0xff]
    %v3079 = vld [vmem:[#allocation22 + $0xd8] sm:$0xff]
    %v3080 = vld [vmem:[#allocation22 + $0xe0] sm:$0xff]
    %v3081 = vld [vmem:[#allocation22 + $0xe8] sm:$0xff]
    %v3082 = vld [vmem:[#allocation22 + $0xf0] sm:$0xff]
    %v3083 = vld [vmem:[#allocation22 + $0xf8] sm:$0xff]
    %v3084 = vld [vmem:[#allocation22 + $0x100] sm:$0xff]
    %v3085 = vld [vmem:[#allocation22 + $0x108] sm:$0xff]
    %v3086 = vld [vmem:[#allocation22 + $0x110] sm:$0xff]
    %v3087 = vld [vmem:[#allocation22 + $0x118] sm:$0xff]
    %v3088 = vld [vmem:[#allocation22 + $0x120] sm:$0xff]
    %v3089 = vld [vmem:[#allocation22 + $0x128] sm:$0xff]
    %v3090 = vld [vmem:[#allocation22 + $0x130] sm:$0xff]
    %v3091 = vld [vmem:[#allocation22 + $0x138] sm:$0xff]
    %v3092 = vld [vmem:[%s20] sm:$0xf]
    %v3094 = vlaneseq
    %v3095 = vshrl.u32 %v3094, 7
    %v3096 = vsub.s32 0, %v3095
    %v3097 = vrot.slane %v3092, %v3096
    %v3098 = vlaneseq
    %v3099 = vshrl.u32 %v3098, 7
    %v3100 = vsub.s32 1, %v3099
    %v3101 = vrot.slane %v3092, %v3100
    %v3102 = vlaneseq
    %v3103 = vshrl.u32 %v3102, 7
    %v3104 = vsub.s32 2, %v3103
    %v3105 = vrot.slane %v3092, %v3104
    %v3106 = vlaneseq
    %v3107 = vshrl.u32 %v3106, 7
    %v3108 = vsub.s32 3, %v3107
    %v3109 = vrot.slane %v3092, %v3108
    %vm3114 = vcmask 654336
    %v3116 = vsel %vm3114, %v3051, 0
    %3118 = vmatprep.subr.mxu0 %v3053
    %3119 = vmatpush1.msra.mxu0 %v3052
    %3120 = vmatprep.subr.mxu0 %v3057
    %3121 = vmatpush1.msra.mxu0 %v3056
    %3122 = vmatprep.subr.mxu0 %v3061
    %3123 = vmatpush1.msra.mxu0 %v3060
    %3124 = vmatprep.subr.mxu0 %v3065
    %3125 = vmatpush1.msra.mxu0 %v3064
    %3126 = vmatprep.subr.mxu0 %v3069
    %3127 = vmatpush1.msra.mxu0 %v3068
    %3128 = vmatprep.subr.mxu0 %v3073
    %3129 = vmatpush1.msra.mxu0 %v3072
    %3130 = vmatprep.subr.mxu0 %v3077
    %3131 = vmatpush1.msra.mxu0 %v3076
    %3132 = vmatprep.subr.mxu0 %v3081
    %3133 = vmatpush1.msra.mxu0 %v3080
    %3134 = vmatprep.subr.mxu0 %v3085
    %3135 = vmatpush1.msra.mxu0 %v3084
    %3136 = vmatprep.subr.mxu0 %v3089
    %3137 = vmatpush1.msra.mxu0 %v3088
    %3138 = vmatprep.subr.mxu0 0.0
    %3139 = vmatpush1.msra.mxu0 0.0
    %3140 = vmatprep.subr.mxu0 0.0
    %3141 = vmatpush1.msra.mxu0 0.0
    %3142 = vmatprep.subr.mxu0 0.0
    %3143 = vmatpush1.msra.mxu0 0.0
    %3144 = vmatprep.subr.mxu0 0.0
    %3145 = vmatpush1.msra.mxu0 0.0
    %3146 = vmatprep.subr.mxu0 0.0
    %3147 = vmatpush1.msra.mxu0 0.0
    %3148 = vmatprep.subr.mxu0 0.0
    %3149 = vmatpush1.msra.mxu0 0.0
    %3150 = vmatprep.subr.mxu0 0.0
    %3151 = vmatpush1.msra.mxu0 0.0
    %3152 = vmatprep.subr.mxu0 0.0
    %3153 = vmatpush1.msra.mxu0 0.0
    %3154 = vmatprep.subr.mxu0 0.0
    %3155 = vmatpush1.msra.mxu0 0.0
    %3156 = vmatprep.subr.mxu0 0.0
    %3157 = vmatpush1.msra.mxu0 0.0
    %3158 = vmatprep.subr.mxu0 0.0
    %3159 = vmatpush1.msra.mxu0 0.0
    %3160 = vmatprep.subr.mxu0 0.0
    %3161 = vmatpush1.msra.mxu0 0.0
    %3162 = vmatprep.subr.mxu0 0.0
    %3163 = vmatpush1.msra.mxu0 0.0
    %3164 = vmatprep.subr.mxu0 0.0
    %3165 = vmatpush1.msra.mxu0 0.0
    %3166 = vmatprep.subr.mxu0 0.0
    %3167 = vmatpush1.msra.mxu0 0.0
    %3168 = vmatprep.subr.mxu0 0.0
    %3169 = vmatpush1.msra.mxu0 0.0
    %3170 = vmatprep.subr.mxu0 0.0
    %3171 = vmatpush1.msra.mxu0 0.0
    %3172 = vmatprep.subr.mxu0 0.0
    %3173 = vmatpush1.msra.mxu0 0.0
    %3174 = vmatprep.subr.mxu0 0.0
    %3175 = vmatpush1.msra.mxu0 0.0
    %3176 = vmatprep.subr.mxu0 0.0
    %3177 = vmatpush1.msra.mxu0 0.0
    %3178 = vmatprep.subr.mxu0 0.0
    %3179 = vmatpush1.msra.mxu0 0.0
    %3180 = vmatprep.subr.mxu0 0.0
    %3181 = vmatpush1.msra.mxu0 0.0
    %3182 = vmatprep.mubr.f32.mxu0 0.0
    %3183 = vmatmul.mubr.f32.gmra.mrb[0].mxu0 %v3116
    %v3184 = vpop.f32.mrb[0].mxu0
    %v3185 = vadd.f32 %v3097, %v3184
    %v3186 = vpop.f32.mrb[0].mxu0
    %v3187 = vadd.f32 %v3101, %v3186
    %3188 = vdwg.mxu0
    %3189 = vmatprep.subr.mxu0 %v3055
    %3190 = vmatpush1.msra.mxu0 %v3054
    %3191 = vmatprep.subr.mxu0 %v3059
    %3192 = vmatpush1.msra.mxu0 %v3058
    %3193 = vmatprep.subr.mxu0 %v3063
    %3194 = vmatpush1.msra.mxu0 %v3062
    %3195 = vmatprep.subr.mxu0 %v3067
    %3196 = vmatpush1.msra.mxu0 %v3066
    %3197 = vmatprep.subr.mxu0 %v3071
    %3198 = vmatpush1.msra.mxu0 %v3070
    %3199 = vmatprep.subr.mxu0 %v3075
    %3200 = vmatpush1.msra.mxu0 %v3074
    %3201 = vmatprep.subr.mxu0 %v3079
    %3202 = vmatpush1.msra.mxu0 %v3078
    %3203 = vmatprep.subr.mxu0 %v3083
    %3204 = vmatpush1.msra.mxu0 %v3082
    %3205 = vmatprep.subr.mxu0 %v3087
    %3206 = vmatpush1.msra.mxu0 %v3086
    %3207 = vmatprep.subr.mxu0 %v3091
    %3208 = vmatpush1.msra.mxu0 %v3090
    %3209 = vmatprep.subr.mxu0 0.0
    %3210 = vmatpush1.msra.mxu0 0.0
    %3211 = vmatprep.subr.mxu0 0.0
    %3212 = vmatpush1.msra.mxu0 0.0
    %3213 = vmatprep.subr.mxu0 0.0
    %3214 = vmatpush1.msra.mxu0 0.0
    %3215 = vmatprep.subr.mxu0 0.0
    %3216 = vmatpush1.msra.mxu0 0.0
    %3217 = vmatprep.subr.mxu0 0.0
    %3218 = vmatpush1.msra.mxu0 0.0
    %3219 = vmatprep.subr.mxu0 0.0
    %3220 = vmatpush1.msra.mxu0 0.0
    %3221 = vmatprep.subr.mxu0 0.0
    %3222 = vmatpush1.msra.mxu0 0.0
    %3223 = vmatprep.subr.mxu0 0.0
    %3224 = vmatpush1.msra.mxu0 0.0
    %3225 = vmatprep.subr.mxu0 0.0
    %3226 = vmatpush1.msra.mxu0 0.0
    %3227 = vmatprep.subr.mxu0 0.0
    %3228 = vmatpush1.msra.mxu0 0.0
    %3229 = vmatprep.subr.mxu0 0.0
    %3230 = vmatpush1.msra.mxu0 0.0
    %3231 = vmatprep.subr.mxu0 0.0
    %3232 = vmatpush1.msra.mxu0 0.0
    %3233 = vmatprep.subr.mxu0 0.0
    %3234 = vmatpush1.msra.mxu0 0.0
    %3235 = vmatprep.subr.mxu0 0.0
    %3236 = vmatpush1.msra.mxu0 0.0
    %3237 = vmatprep.subr.mxu0 0.0
    %3238 = vmatpush1.msra.mxu0 0.0
    %3239 = vmatprep.subr.mxu0 0.0
    %3240 = vmatpush1.msra.mxu0 0.0
    %3241 = vmatprep.subr.mxu0 0.0
    %3242 = vmatpush1.msra.mxu0 0.0
    %3243 = vmatprep.subr.mxu0 0.0
    %3244 = vmatpush1.msra.mxu0 0.0
    %3245 = vmatprep.subr.mxu0 0.0
    %3246 = vmatpush1.msra.mxu0 0.0
    %3247 = vmatprep.subr.mxu0 0.0
    %3248 = vmatpush1.msra.mxu0 0.0
    %3249 = vmatprep.subr.mxu0 0.0
    %3250 = vmatpush1.msra.mxu0 0.0
    %3251 = vmatprep.subr.mxu0 0.0
    %3252 = vmatpush1.msra.mxu0 0.0
    %3253 = vmatprep.mubr.f32.mxu0 0.0
    %3254 = vmatmul.mubr.f32.gmra.mrb[0].mxu0 %v3116
    %v3255 = vpop.f32.mrb[0].mxu0
    %v3256 = vadd.f32 %v3105, %v3255
    %v3257 = vpop.f32.mrb[0].mxu0
    %v3258 = vadd.f32 %v3109, %v3257
    %3259 = vdwg.mxu0
    %v3264 = vcombine.low %v3185, %v3187
    %v3265 = vcombine.low %v3256, %v3258
    %v3267 = vunpack.c.l.s4 1983009808
    %v3268 = vunpack.c.0.s8 %v3267
    %v3269 = vlaneseq
    %v3270 = vshrl.u32 %v3269, 7
    %v3271 = vsub.s32 %v3268, %v3270
    %v3272 = vrot.slane %v3264, %v3271
    %v3274 = vunpack.c.l.s4 1983009808
    %v3275 = vunpack.c.0.s8 %v3274
    %v3276 = vlaneseq
    %v3277 = vshrl.u32 %v3276, 7
    %v3278 = vsub.s32 %v3275, %v3277
    %v3279 = vrot.slane %v3265, %v3278
    %v3280 = vcombine.low %v3272, %v3279
    %vm3282 = vcmask 1041408
    %vm3283 = vcmask 1043458
    %vm3284 = vmor %vm3283, %vm3282
    %vm3285 = vcmask 1045508
    %vm3286 = vmor %vm3285, %vm3284
    %vm3287 = vcmask 392198
    %vm3288 = vmor %vm3287, %vm3286
    %3289 = vst.msk [vmem:[%s21] sm:$0xff] %vm3288, %v3280
    // Predicated region
    $region134: #{forward.1} parent=1 // pred_check
      _
    $region135: #{forward.1} parent=1 // pred_check_branch
      %3291 = sbr.rel (0) target = $region137
    $region136: #{forward.1} parent=1 // pred_region
      _
    $region137: #{forward.1} parent=1 // pred_fallthru
      _
    // Predicated region
    $region138: #{forward.1} parent=1 // pred_check
      _
    $region139: #{forward.1} parent=1 // pred_check_branch
      %3293 = sbr.rel (0) target = $region141
    $region140: #{forward.1} parent=1 // pred_region
      _
    $region141: #{forward.1} parent=1 // pred_fallthru
      _
    %3294 = vsyncpa [#allocation6], 1
    %3295 = vsyncpa [#allocation8], 1
    %3296 = vsyncpa [#allocation11], 1
    %3297 = vsyncpa [#allocation14], 1
    %3298 = vsyncpa [#allocation17], 1
    %3299 = vsyncpa [#allocation20], 1
    %3300 = vsyncpa [#allocation23], 1

</llo_original>
